<compile_context>
chip_gen: v5e
topology: v5e:2x2
jax: 0.10.0
libtpu: 0.0.40
codegen_flags: <defaults>
</compile_context>

<pallas_src>
import functools

import jax
import jax.numpy as jnp
from jax.experimental import pallas as pl
from jax.experimental.pallas import tpu as pltpu


def _round_up(n, m):
    return ((n + m - 1) // m) * m


def _vae_kernel(
    x_ref,        # (tb, Dp)      bf16
    eps_ref,      # (tb, Lp)      f32  standard-normal noise
    w1_ref, b1_ref,        # encoder fc1:          (Dp, H) bf16, (1, H) f32
    wh_ref, bh_ref,        # fused [mean|logvar]:  (H, 2Lp) bf16, (1, 2Lp) f32
    wd1_ref, bd1_ref,      # decoder fc1:          (Lp, H) bf16, (1, H) f32
    wd2_ref, bd2_ref,      # decoder fc2:          (H, Dp) bf16, (1, Dp) f32
    recon_ref,    # (tb, Dp) f32
    mean_ref,     # (tb, Lp) f32
    logvar_ref,   # (tb, Lp) f32
    *, lp,
):
    x = x_ref[...]  # bf16

    # ---- Encoder fc1 + ReLU (bf16 operands, f32 MXU accumulation) ----
    h = jnp.dot(x, w1_ref[...], preferred_element_type=jnp.float32) + b1_ref[...]
    h = jnp.maximum(h, 0.0)

    # ---- Fused encoder head: one N = 2*Lp matmul, then slice mean/logvar ----
    head = jnp.dot(h.astype(jnp.bfloat16), wh_ref[...],
                   preferred_element_type=jnp.float32) + bh_ref[...]
    mean = head[:, :lp]
    logvar = head[:, lp:]

    # ---- Reparameterize (f32): z = mean + eps * exp(0.5 * logvar) ----
    z = mean + eps_ref[...] * jnp.exp(0.5 * logvar)

    # ---- Decoder: fc1 + ReLU, fc2 + sigmoid ----
    hd = jnp.dot(z.astype(jnp.bfloat16), wd1_ref[...],
                 preferred_element_type=jnp.float32) + bd1_ref[...]
    hd = jnp.maximum(hd, 0.0)
    logits = jnp.dot(hd.astype(jnp.bfloat16), wd2_ref[...],
                     preferred_element_type=jnp.float32) + bd2_ref[...]

    recon_ref[...] = jax.nn.sigmoid(logits).astype(recon_ref.dtype)
    mean_ref[...] = mean.astype(mean_ref.dtype)
    logvar_ref[...] = logvar.astype(logvar_ref.dtype)


@functools.partial(jax.jit, static_argnames=("tb",))
def vae_forward(x_img, eps, params, *, tb=128):
    """x_img: (B, C, H, W) float32 image batch (NCHW, like the PyTorch module)."""
    B = x_img.shape[0]
    d_in = 1
    for s in x_img.shape[1:]:
        d_in *= s
    x = x_img.reshape(B, d_in).astype(jnp.float32)  # torch.flatten(x, start_dim=1)

    (w1, b1, wm, bm, wv, bv, wd1, bd1, wd2, bd2) = params
    H = w1.shape[1]
    L = wm.shape[1]

    assert H % 128 == 0, "hidden dim must be a multiple of 128 for clean MXU tiling"
    assert tb % 16 == 0, "tb must be a multiple of 16 (bf16 sublane packing)"

    d_pad = _round_up(d_in, 128)      # 784 -> 896 : lane-dense loads/stores
    l_pad = _round_up(L, 128)         # 300 -> 384
    tb_eff = min(tb, _round_up(B, 16))
    b_pad = _round_up(B, tb_eff)      # no trailing rows are dropped

    f32, bf16 = jnp.float32, jnp.bfloat16

    # ---- pad & pack operands (zero padding is inert through the network) ----
    x_p = jnp.zeros((b_pad, d_pad), f32).at[:B, :d_in].set(x).astype(bf16)
    eps_p = jnp.zeros((b_pad, l_pad), f32).at[:B, :L].set(eps)

    w1_p = jnp.zeros((d_pad, H), f32).at[:d_in, :].set(w1).astype(bf16)
    b1_p = b1.reshape(1, H).astype(f32)

    # Fused encoder head: [mean | logvar] packed along N.
    wm_p = jnp.zeros((H, l_pad), f32).at[:, :L].set(wm)
    wv_p = jnp.zeros((H, l_pad), f32).at[:, :L].set(wv)
    wh_p = jnp.concatenate([wm_p, wv_p], axis=1).astype(bf16)
    bm_p = jnp.zeros((1, l_pad), f32).at[:, :L].set(bm.reshape(1, L))
    bv_p = jnp.zeros((1, l_pad), f32).at[:, :L].set(bv.reshape(1, L))
    bh_p = jnp.concatenate([bm_p, bv_p], axis=1)

    wd1_p = jnp.zeros((l_pad, H), f32).at[:L, :].set(wd1).astype(bf16)
    bd1_p = bd1.reshape(1, H).astype(f32)
    wd2_p = jnp.zeros((H, d_pad), f32).at[:, :d_in].set(wd2).astype(bf16)
    bd2_p = jnp.zeros((1, d_pad), f32).at[:, :d_in].set(bd2.reshape(1, d_in))

    grid = (b_pad // tb_eff,)

    def rep_spec(shape):
        # Weight blocks: full extent, constant index map -> resident across tiles.
        return pl.BlockSpec(shape, lambda i, _s=shape: tuple(0 for _ in _s))

    in_specs = [
        pl.BlockSpec((tb_eff, d_pad), lambda i: (i, 0)),     # x
        pl.BlockSpec((tb_eff, l_pad), lambda i: (i, 0)),     # eps
        rep_spec((d_pad, H)), rep_spec((1, H)),              # encoder fc1
        rep_spec((H, 2 * l_pad)), rep_spec((1, 2 * l_pad)),  # fused mean|logvar
        rep_spec((l_pad, H)), rep_spec((1, H)),              # decoder fc1
        rep_spec((H, d_pad)), rep_spec((1, d_pad)),          # decoder fc2
    ]
    out_specs = (
        pl.BlockSpec((tb_eff, d_pad), lambda i: (i, 0)),
        pl.BlockSpec((tb_eff, l_pad), lambda i: (i, 0)),
        pl.BlockSpec((tb_eff, l_pad), lambda i: (i, 0)),
    )
    out_shapes = (
        jax.ShapeDtypeStruct((b_pad, d_pad), f32),   # recon_x
        jax.ShapeDtypeStruct((b_pad, l_pad), f32),   # mean
        jax.ShapeDtypeStruct((b_pad, l_pad), f32),   # logvar
    )

    # Advisory cost hint so XLA schedules the custom call correctly.
    flops = 2 * b_pad * (d_pad * H + H * 2 * l_pad + l_pad * H + H * d_pad)
    transcendentals = b_pad * (l_pad + d_pad)  # exp (reparam) + sigmoid
    weight_bytes = sum(
        int(a.size) * a.dtype.itemsize
        for a in (w1_p, b1_p, wh_p, bh_p, wd1_p, bd1_p, wd2_p, bd2_p))
    bytes_accessed = (int(x_p.size) * 2 + int(eps_p.size) * 4 + weight_bytes
                      + b_pad * d_pad * 4 + 2 * b_pad * l_pad * 4)

    recon_p, mean_p, logvar_p = pl.pallas_call(
        functools.partial(_vae_kernel, lp=l_pad),
        out_shape=out_shapes,
        grid_spec=pltpu.PrefetchScalarGridSpec(
            num_scalar_prefetch=0,
            grid=grid,
            in_specs=in_specs,
            out_specs=out_specs,
        ),
        compiler_params=pltpu.CompilerParams(
            dimension_semantics=("parallel",),
            vmem_limit_bytes=96 * 1024 * 1024),
        cost_estimate=pl.CostEstimate(
            flops=flops,
            transcendentals=transcendentals,
            bytes_accessed=bytes_accessed),
    )(x_p, eps_p, w1_p, b1_p, wh_p, bh_p, wd1_p, bd1_p, wd2_p, bd2_p)

    # Slice off batch / feature padding.
    return (recon_p[:B, :d_in], mean_p[:B, :L], logvar_p[:B, :L])


def init_params(key, d_in, hidden, latent):
    """Deterministic synthetic init (nn.Linear-style uniform). Weights stored (in, out)."""
    ks = jax.random.split(key, 10)

    def lin(kw, kb, fan_in, fan_out):
        bound = 1.0 / jnp.sqrt(fan_in)
        w = jax.random.uniform(kw, (fan_in, fan_out), jnp.float32, -bound, bound)
        b = jax.random.uniform(kb, (1, fan_out), jnp.float32, -bound, bound)
        return w, b

    w1, b1 = lin(ks[0], ks[1], d_in, hidden)      # encoder.fc1
    wm, bm = lin(ks[2], ks[3], hidden, latent)    # encoder.fc2_mean
    wv, bv = lin(ks[4], ks[5], hidden, latent)    # encoder.fc2_logvar
    wd1, bd1 = lin(ks[6], ks[7], latent, hidden)  # decoder.fc1
    wd2, bd2 = lin(ks[8], ks[9], hidden, d_in)    # decoder.fc2
    return (w1, b1, wm, bm, wv, bv, wd1, bd1, wd2, bd2)


def vae_reference(x_img, eps, params):
    """Pure-JAX reference mirroring the PyTorch forward, with the same
    bf16-operand / f32-accumulate matmul numerics as the kernel."""
    (w1, b1, wm, bm, wv, bv, wd1, bd1, wd2, bd2) = params
    x = x_img.reshape(x_img.shape[0], -1)

    def mm(a, w):
        return jnp.dot(a.astype(jnp.bfloat16), w.astype(jnp.bfloat16),
                       preferred_element_type=jnp.float32)

    h = jax.nn.relu(mm(x, w1) + b1)
    mean = mm(h, wm) + bm
    logvar = mm(h, wv) + bv
    z = mean + eps * jnp.exp(0.5 * logvar)
    hd = jax.nn.relu(mm(z, wd1) + bd1)
    recon = jax.nn.sigmoid(mm(hd, wd2) + bd2)
    return recon, mean, logvar


if __name__ == "__main__":
    # Shapes from the PyTorch spec: input_dim=28*28, hidden_dim=512, latent_dim=300.
    INPUT_DIM = 28 * 28
    HIDDEN = 512
    LATENT = 300
    B = 32  # small batch; one 32-row tile -> grid=(1,)

    key = jax.random.PRNGKey(0)
    k_x, k_eps, k_p, k_x2, k_eps2 = jax.random.split(key, 5)

    x_img = jax.random.uniform(k_x, (B, 1, 28, 28), jnp.float32)   # NCHW
    # torch.randn_like(std) -> deterministic N(0,1) noise passed into the kernel.
    eps = jax.random.normal(k_eps, (B, LATENT), jnp.float32)
    params = init_params(k_p, INPUT_DIM, HIDDEN, LATENT)

    recon, mean, logvar = vae_forward(x_img, eps, params, tb=128)
    jax.block_until_ready((recon, mean, logvar))

    r_ref, m_ref, lv_ref = vae_reference(x_img, eps, params)
    assert recon.shape == (B, INPUT_DIM)
    assert mean.shape == (B, LATENT) and logvar.shape == (B, LATENT)
    assert jnp.allclose(recon, r_ref, atol=2e-3, rtol=2e-3)
    assert jnp.allclose(mean, m_ref, atol=5e-3, rtol=5e-3)
    assert jnp.allclose(logvar, lv_ref, atol=5e-3, rtol=5e-3)

    # Ragged batch (B not a multiple of the tile): handled by padding + slicing.
    B2 = 19
    x2 = jax.random.uniform(k_x2, (B2, 1, 28, 28), jnp.float32)
    eps2 = jax.random.normal(k_eps2, (B2, LATENT), jnp.float32)
    r2, m2, lv2 = vae_forward(x2, eps2, params, tb=128)
    jax.block_until_ready((r2, m2, lv2))
    r2_ref, m2_ref, lv2_ref = vae_reference(x2, eps2, params)
    assert r2.shape == (B2, INPUT_DIM) and m2.shape == (B2, LATENT)
    assert jnp.allclose(r2, r2_ref, atol=2e-3, rtol=2e-3)
    assert jnp.allclose(m2, m2_ref, atol=5e-3, rtol=5e-3)
    assert jnp.allclose(lv2, lv2_ref, atol=5e-3, rtol=5e-3)

    print("KERNEL_OK")
</pallas_src>

<mosaic_0001>
module attributes {stable_mosaic.version = 11 : i64} {
  func.func @_vae_kernel(%arg0: i32, %arg1: memref<32x896xbf16, #tpu.memory_space<vmem>>, %arg2: memref<32x384xf32, #tpu.memory_space<vmem>>, %arg3: memref<896x512xbf16, #tpu.memory_space<vmem>>, %arg4: memref<1x512xf32, #tpu.memory_space<vmem>>, %arg5: memref<512x768xbf16, #tpu.memory_space<vmem>>, %arg6: memref<1x768xf32, #tpu.memory_space<vmem>>, %arg7: memref<384x512xbf16, #tpu.memory_space<vmem>>, %arg8: memref<1x512xf32, #tpu.memory_space<vmem>>, %arg9: memref<512x896xbf16, #tpu.memory_space<vmem>>, %arg10: memref<1x896xf32, #tpu.memory_space<vmem>>, %arg11: memref<32x896xf32, #tpu.memory_space<vmem>>, %arg12: memref<32x384xf32, #tpu.memory_space<vmem>>, %arg13: memref<32x384xf32, #tpu.memory_space<vmem>>) attributes {dimension_semantics = [#tpu.dimension_semantics<parallel>], iteration_bounds = array<i64: 1>, scalar_prefetch = 0 : i64, scratch_operands = 0 : i64, tpu.core_type = #tpu.core_type<tc>, window_params = [{transform_indices = @transform_0, window_bounds = array<i64: 32, 896>}, {transform_indices = @transform_1, window_bounds = array<i64: 32, 384>}, {pipeline_mode = #tpu.pipeline_mode<synchronous>, transform_indices = @transform_2, window_bounds = array<i64: 896, 512>}, {pipeline_mode = #tpu.pipeline_mode<synchronous>, transform_indices = @transform_3, window_bounds = array<i64: 1, 512>}, {pipeline_mode = #tpu.pipeline_mode<synchronous>, transform_indices = @transform_4, window_bounds = array<i64: 512, 768>}, {pipeline_mode = #tpu.pipeline_mode<synchronous>, transform_indices = @transform_5, window_bounds = array<i64: 1, 768>}, {pipeline_mode = #tpu.pipeline_mode<synchronous>, transform_indices = @transform_6, window_bounds = array<i64: 384, 512>}, {pipeline_mode = #tpu.pipeline_mode<synchronous>, transform_indices = @transform_7, window_bounds = array<i64: 1, 512>}, {pipeline_mode = #tpu.pipeline_mode<synchronous>, transform_indices = @transform_8, window_bounds = array<i64: 512, 896>}, {pipeline_mode = #tpu.pipeline_mode<synchronous>, transform_indices = @transform_9, window_bounds = array<i64: 1, 896>}, {transform_indices = @transform_10, window_bounds = array<i64: 32, 896>}, {transform_indices = @transform_11, window_bounds = array<i64: 32, 384>}, {transform_indices = @transform_12, window_bounds = array<i64: 32, 384>}]} {
    %c0 = arith.constant 0 : index
    %c0_0 = arith.constant 0 : index
    %0 = vector.load %arg1[%c0, %c0_0] : memref<32x896xbf16, #tpu.memory_space<vmem>>, vector<32x896xbf16>
    %c0_1 = arith.constant 0 : index
    %c0_2 = arith.constant 0 : index
    %1 = vector.load %arg3[%c0_1, %c0_2] : memref<896x512xbf16, #tpu.memory_space<vmem>>, vector<896x512xbf16>
    %cst = arith.constant dense<0.000000e+00> : vector<32x512xf32>
    %2 = tpu.matmul %0, %1, %cst {dimension_numbers = #tpu.dot_dimension_numbers<[1], [0], [0], [1], [0, 0, 1, 1], [], []>} : vector<32x896xbf16>, vector<896x512xbf16>, vector<32x512xf32> -> vector<32x512xf32>
    %c0_3 = arith.constant 0 : index
    %c0_4 = arith.constant 0 : index
    %3 = vector.load %arg4[%c0_3, %c0_4] : memref<1x512xf32, #tpu.memory_space<vmem>>, vector<1x512xf32>
    %4 = vector.broadcast %3 : vector<1x512xf32> to vector<32x512xf32>
    %5 = arith.addf %2, %4 : vector<32x512xf32>
    %cst_5 = arith.constant 0.000000e+00 : f32
    %6 = vector.broadcast %cst_5 : f32 to vector<32x512xf32>
    %7 = arith.maximumf %5, %6 : vector<32x512xf32>
    %8 = arith.truncf %7 : vector<32x512xf32> to vector<32x512xbf16>
    %c0_6 = arith.constant 0 : index
    %c0_7 = arith.constant 0 : index
    %9 = vector.load %arg5[%c0_6, %c0_7] : memref<512x768xbf16, #tpu.memory_space<vmem>>, vector<512x768xbf16>
    %cst_8 = arith.constant dense<0.000000e+00> : vector<32x768xf32>
    %10 = tpu.matmul %8, %9, %cst_8 {dimension_numbers = #tpu.dot_dimension_numbers<[1], [0], [0], [1], [0, 0, 1, 1], [], []>} : vector<32x512xbf16>, vector<512x768xbf16>, vector<32x768xf32> -> vector<32x768xf32>
    %c0_9 = arith.constant 0 : index
    %c0_10 = arith.constant 0 : index
    %11 = vector.load %arg6[%c0_9, %c0_10] : memref<1x768xf32, #tpu.memory_space<vmem>>, vector<1x768xf32>
    %12 = vector.broadcast %11 : vector<1x768xf32> to vector<32x768xf32>
    %13 = arith.addf %10, %12 : vector<32x768xf32>
    %14 = vector.extract_strided_slice %13 {offsets = [0, 0], sizes = [32, 384], strides = [1, 1]} : vector<32x768xf32> to vector<32x384xf32>
    %15 = vector.extract_strided_slice %13 {offsets = [0, 384], sizes = [32, 384], strides = [1, 1]} : vector<32x768xf32> to vector<32x384xf32>
    %c0_11 = arith.constant 0 : index
    %c0_12 = arith.constant 0 : index
    %16 = vector.load %arg2[%c0_11, %c0_12] : memref<32x384xf32, #tpu.memory_space<vmem>>, vector<32x384xf32>
    %cst_13 = arith.constant 5.000000e-01 : f32
    %17 = vector.broadcast %cst_13 : f32 to vector<32x384xf32>
    %18 = arith.mulf %17, %15 : vector<32x384xf32>
    %19 = math.exp %18 : vector<32x384xf32>
    %20 = arith.mulf %16, %19 : vector<32x384xf32>
    %21 = arith.addf %14, %20 : vector<32x384xf32>
    %22 = arith.truncf %21 : vector<32x384xf32> to vector<32x384xbf16>
    %c0_14 = arith.constant 0 : index
    %c0_15 = arith.constant 0 : index
    %23 = vector.load %arg7[%c0_14, %c0_15] : memref<384x512xbf16, #tpu.memory_space<vmem>>, vector<384x512xbf16>
    %cst_16 = arith.constant dense<0.000000e+00> : vector<32x512xf32>
    %24 = tpu.matmul %22, %23, %cst_16 {dimension_numbers = #tpu.dot_dimension_numbers<[1], [0], [0], [1], [0, 0, 1, 1], [], []>} : vector<32x384xbf16>, vector<384x512xbf16>, vector<32x512xf32> -> vector<32x512xf32>
    %c0_17 = arith.constant 0 : index
    %c0_18 = arith.constant 0 : index
    %25 = vector.load %arg8[%c0_17, %c0_18] : memref<1x512xf32, #tpu.memory_space<vmem>>, vector<1x512xf32>
    %26 = vector.broadcast %25 : vector<1x512xf32> to vector<32x512xf32>
    %27 = arith.addf %24, %26 : vector<32x512xf32>
    %cst_19 = arith.constant 0.000000e+00 : f32
    %28 = vector.broadcast %cst_19 : f32 to vector<32x512xf32>
    %29 = arith.maximumf %27, %28 : vector<32x512xf32>
    %30 = arith.truncf %29 : vector<32x512xf32> to vector<32x512xbf16>
    %c0_20 = arith.constant 0 : index
    %c0_21 = arith.constant 0 : index
    %31 = vector.load %arg9[%c0_20, %c0_21] : memref<512x896xbf16, #tpu.memory_space<vmem>>, vector<512x896xbf16>
    %cst_22 = arith.constant dense<0.000000e+00> : vector<32x896xf32>
    %32 = tpu.matmul %30, %31, %cst_22 {dimension_numbers = #tpu.dot_dimension_numbers<[1], [0], [0], [1], [0, 0, 1, 1], [], []>} : vector<32x512xbf16>, vector<512x896xbf16>, vector<32x896xf32> -> vector<32x896xf32>
    %c0_23 = arith.constant 0 : index
    %c0_24 = arith.constant 0 : index
    %33 = vector.load %arg10[%c0_23, %c0_24] : memref<1x896xf32, #tpu.memory_space<vmem>>, vector<1x896xf32>
    %34 = vector.broadcast %33 : vector<1x896xf32> to vector<32x896xf32>
    %35 = arith.addf %32, %34 : vector<32x896xf32>
    %36 = arith.negf %35 : vector<32x896xf32>
    %37 = math.exp %36 : vector<32x896xf32>
    %cst_25 = arith.constant 1.000000e+00 : f32
    %38 = vector.broadcast %cst_25 : f32 to vector<32x896xf32>
    %39 = arith.addf %38, %37 : vector<32x896xf32>
    %40 = arith.divf %38, %39 : vector<32x896xf32>
    %c0_26 = arith.constant 0 : index
    %c0_27 = arith.constant 0 : index
    %41 = vector.load %arg11[%c0_26, %c0_27] : memref<32x896xf32, #tpu.memory_space<vmem>>, vector<32x896xf32>
    tpu.vector_store %arg11[%c0_26, %c0_27], %40 {strides = array<i32>} : memref<32x896xf32, #tpu.memory_space<vmem>>, vector<32x896xf32>,
    %c0_28 = arith.constant 0 : index
    %c0_29 = arith.constant 0 : index
    %42 = vector.load %arg12[%c0_28, %c0_29] : memref<32x384xf32, #tpu.memory_space<vmem>>, vector<32x384xf32>
    tpu.vector_store %arg12[%c0_28, %c0_29], %14 {strides = array<i32>} : memref<32x384xf32, #tpu.memory_space<vmem>>, vector<32x384xf32>,
    %c0_30 = arith.constant 0 : index
    %c0_31 = arith.constant 0 : index
    %43 = vector.load %arg13[%c0_30, %c0_31] : memref<32x384xf32, #tpu.memory_space<vmem>>, vector<32x384xf32>
    tpu.vector_store %arg13[%c0_30, %c0_31], %15 {strides = array<i32>} : memref<32x384xf32, #tpu.memory_space<vmem>>, vector<32x384xf32>,
    return
  }
  func.func @transform_0(%arg0: i32) -> (i32, i32) {
    %c0_i32 = arith.constant 0 : i32
    %c0_i32_0 = arith.constant 0 : i32
    return %arg0, %c0_i32 : i32, i32
  }
  func.func @transform_1(%arg0: i32) -> (i32, i32) {
    %c0_i32 = arith.constant 0 : i32
    %c0_i32_0 = arith.constant 0 : i32
    return %arg0, %c0_i32 : i32, i32
  }
  func.func @transform_2(%arg0: i32) -> (i32, i32) {
    %c0_i32 = arith.constant 0 : i32
    %c0_i32_0 = arith.constant 0 : i32
    %c0_i32_1 = arith.constant 0 : i32
    return %c0_i32, %c0_i32_0 : i32, i32
  }
  func.func @transform_3(%arg0: i32) -> (i32, i32) {
    %c0_i32 = arith.constant 0 : i32
    %c0_i32_0 = arith.constant 0 : i32
    %c0_i32_1 = arith.constant 0 : i32
    return %c0_i32, %c0_i32_0 : i32, i32
  }
  func.func @transform_4(%arg0: i32) -> (i32, i32) {
    %c0_i32 = arith.constant 0 : i32
    %c0_i32_0 = arith.constant 0 : i32
    %c0_i32_1 = arith.constant 0 : i32
    return %c0_i32, %c0_i32_0 : i32, i32
  }
  func.func @transform_5(%arg0: i32) -> (i32, i32) {
    %c0_i32 = arith.constant 0 : i32
    %c0_i32_0 = arith.constant 0 : i32
    %c0_i32_1 = arith.constant 0 : i32
    return %c0_i32, %c0_i32_0 : i32, i32
  }
  func.func @transform_6(%arg0: i32) -> (i32, i32) {
    %c0_i32 = arith.constant 0 : i32
    %c0_i32_0 = arith.constant 0 : i32
    %c0_i32_1 = arith.constant 0 : i32
    return %c0_i32, %c0_i32_0 : i32, i32
  }
  func.func @transform_7(%arg0: i32) -> (i32, i32) {
    %c0_i32 = arith.constant 0 : i32
    %c0_i32_0 = arith.constant 0 : i32
    %c0_i32_1 = arith.constant 0 : i32
    return %c0_i32, %c0_i32_0 : i32, i32
  }
  func.func @transform_8(%arg0: i32) -> (i32, i32) {
    %c0_i32 = arith.constant 0 : i32
    %c0_i32_0 = arith.constant 0 : i32
    %c0_i32_1 = arith.constant 0 : i32
    return %c0_i32, %c0_i32_0 : i32, i32
  }
  func.func @transform_9(%arg0: i32) -> (i32, i32) {
    %c0_i32 = arith.constant 0 : i32
    %c0_i32_0 = arith.constant 0 : i32
    %c0_i32_1 = arith.constant 0 : i32
    return %c0_i32, %c0_i32_0 : i32, i32
  }
  func.func @transform_10(%arg0: i32) -> (i32, i32) {
    %c0_i32 = arith.constant 0 : i32
    %c0_i32_0 = arith.constant 0 : i32
    return %arg0, %c0_i32 : i32, i32
  }
  func.func @transform_11(%arg0: i32) -> (i32, i32) {
    %c0_i32 = arith.constant 0 : i32
    %c0_i32_0 = arith.constant 0 : i32
    return %arg0, %c0_i32 : i32, i32
  }
  func.func @transform_12(%arg0: i32) -> (i32, i32) {
    %c0_i32 = arith.constant 0 : i32
    %c0_i32_0 = arith.constant 0 : i32
    return %arg0, %c0_i32 : i32, i32
  }
}

</mosaic_0001>

<llo_original>
// kernel: vae_forward.1
$region0: #{vae_forward.1}
  #allocation0 [shape = 'u32[]', space=smem, size = 0x4, offset = 0x4, fixed_abs, tag = 'smem constant byte address 0x4 - core index']
  #allocation1 [shape = 'u32[72,128]{1,0:T(1,128)}', space=vmem, size = 0x9000, scoped, tag = 'internal scratch']
  %s0 = inlined_call_operand.vmem [shape: bf16[32,896], index: 0, kind: input, shape index: {}]
  %s1 = inlined_call_operand.vmem [shape: f32[32,384], index: 1, kind: input, shape index: {}]
  %s2 = inlined_call_operand.vmem [shape: bf16[896,512], index: 2, kind: input, shape index: {}]
  %s3 = inlined_call_operand.vmem [shape: f32[1,512], index: 3, kind: input, shape index: {}]
  %s4 = inlined_call_operand.vmem [shape: bf16[512,768], index: 4, kind: input, shape index: {}]
  %s5 = inlined_call_operand.vmem [shape: f32[1,768], index: 5, kind: input, shape index: {}]
  %s6 = inlined_call_operand.vmem [shape: bf16[384,512], index: 6, kind: input, shape index: {}]
  %s7 = inlined_call_operand.vmem [shape: f32[1,512], index: 7, kind: input, shape index: {}]
  %s8 = inlined_call_operand.vmem [shape: bf16[512,896], index: 8, kind: input, shape index: {}]
  %s9 = inlined_call_operand.vmem [shape: f32[1,896], index: 9, kind: input, shape index: {}]
  %s10 = inlined_call_operand.hbm [shape: f32[32,896], index: 10, kind: output, shape index: {0}]
  %s11 = inlined_call_operand.hbm [shape: f32[32,384], index: 11, kind: output, shape index: {1}]
  %s12 = inlined_call_operand.hbm [shape: f32[32,384], index: 12, kind: output, shape index: {2}]
  %13 = xla_tuple %s10, %s11, %s12
  %s14 = sld [smem:[#allocation0]]
  $region66: #{vae_forward.1} parent=0
    _
  %s16 = ssub.s32 1, %s14
  %s17 = scalar_select 0, %s16, %s14
  $region1: #{vae_forward.1} parent=0
    #allocation2 [shape = 'u8[114688]{0}', space=vmem, size = 0x1c000, scoped, tag = 'output window, operand 0, single buffered']
    #allocation3 [shape = 's32[1]{0}', space=sflag, size = 0x4, scoped, tag = 'scoped memory for vae_forward.1']
    #allocation4 [shape = 'u8[49152]{0}', space=vmem, size = 0xc000, scoped, tag = 'output window, operand 1, single buffered']
    #allocation5 [shape = 's32[1]{0}', space=sflag, size = 0x4, scoped, tag = 'scoped memory for vae_forward.1']
    #allocation6 [shape = 'u8[49152]{0}', space=vmem, size = 0xc000, scoped, tag = 'output window, operand 2, single buffered']
    %18 = vsyncpa [#allocation3], 0
    %19 = vsyncpa [#allocation5], 0
    // Predicated region
    $region2: #{vae_forward.1} parent=1 // pred_check
      _
    $region3: #{vae_forward.1} parent=1 // pred_check_branch
      %21 = sbr.rel (0) target = $region5
    $region4: #{vae_forward.1} parent=1 // pred_region
      _
    $region5: #{vae_forward.1} parent=1 // pred_fallthru
      _
    // Predicated region
    $region6: #{vae_forward.1} parent=1 // pred_check
      _
    $region7: #{vae_forward.1} parent=1 // pred_check_branch
      %23 = sbr.rel (0) target = $region9
    $region8: #{vae_forward.1} parent=1 // pred_region
      _
    $region9: #{vae_forward.1} parent=1 // pred_fallthru
      _
    // Predicated region
    $region10: #{vae_forward.1} parent=1 // pred_check
      _
    $region11: #{vae_forward.1} parent=1 // pred_check_branch
      %25 = sbr.rel (0) target = $region13
    $region12: #{vae_forward.1} parent=1 // pred_region
      _
    $region13: #{vae_forward.1} parent=1 // pred_fallthru
      _
    // Predicated region
    $region14: #{vae_forward.1} parent=1 // pred_check
      _
    $region15: #{vae_forward.1} parent=1 // pred_check_branch
      %27 = sbr.rel (0) target = $region17
    $region16: #{vae_forward.1} parent=1 // pred_region
      _
    $region17: #{vae_forward.1} parent=1 // pred_fallthru
      _
    // Predicated region
    $region18: #{vae_forward.1} parent=1 // pred_check
      _
    $region19: #{vae_forward.1} parent=1 // pred_check_branch
      %29 = sbr.rel (0) target = $region21
    $region20: #{vae_forward.1} parent=1 // pred_region
      _
    $region21: #{vae_forward.1} parent=1 // pred_fallthru
      _
    // Predicated region
    $region22: #{vae_forward.1} parent=1 // pred_check
      _
    $region23: #{vae_forward.1} parent=1 // pred_check_branch
      %31 = sbr.rel (0) target = $region25
    $region24: #{vae_forward.1} parent=1 // pred_region
      _
    $region25: #{vae_forward.1} parent=1 // pred_fallthru
      _
    // Predicated region
    $region26: #{vae_forward.1} parent=1 // pred_check
      _
    $region27: #{vae_forward.1} parent=1 // pred_check_branch
      %33 = sbr.rel (0) target = $region29
    $region28: #{vae_forward.1} parent=1 // pred_region
      _
    $region29: #{vae_forward.1} parent=1 // pred_fallthru
      _
    // Predicated region
    $region30: #{vae_forward.1} parent=1 // pred_check
      _
    $region31: #{vae_forward.1} parent=1 // pred_check_branch
      %35 = sbr.rel (0) target = $region33
    $region32: #{vae_forward.1} parent=1 // pred_region
      _
    $region33: #{vae_forward.1} parent=1 // pred_fallthru
      _
    // Predicated region
    $region34: #{vae_forward.1} parent=1 // pred_check
      _
    $region35: #{vae_forward.1} parent=1 // pred_check_branch
      %37 = sbr.rel (0) target = $region37
    $region36: #{vae_forward.1} parent=1 // pred_region
      _
    $region37: #{vae_forward.1} parent=1 // pred_fallthru
      _
    // Predicated region
    $region38: #{vae_forward.1} parent=1 // pred_check
      _
    $region39: #{vae_forward.1} parent=1 // pred_check_branch
      %39 = sbr.rel (0) target = $region41
    $region40: #{vae_forward.1} parent=1 // pred_region
      _
    $region41: #{vae_forward.1} parent=1 // pred_fallthru
      _
    %v40 = vld [vmem:[%s0] sm:$0xff]
    %v41 = vld [vmem:[%s0 + $0x8] sm:$0xff]
    %v42 = vld [vmem:[%s0 + $0x10] sm:$0xff]
    %v43 = vld [vmem:[%s0 + $0x18] sm:$0xf]
    %v44 = vld [vmem:[%s0 + $0x1c] sm:$0xff]
    %v45 = vld [vmem:[%s0 + $0x24] sm:$0xff]
    %v46 = vld [vmem:[%s0 + $0x2c] sm:$0xff]
    %v47 = vld [vmem:[%s0 + $0x34] sm:$0xf]
    %v48 = vld [vmem:[%s0 + $0x38] sm:$0xff]
    %v49 = vld [vmem:[%s0 + $0x40] sm:$0xff]
    %v50 = vld [vmem:[%s0 + $0x48] sm:$0xff]
    %v51 = vld [vmem:[%s0 + $0x50] sm:$0xf]
    %v52 = vld [vmem:[%s0 + $0x54] sm:$0xff]
    %v53 = vld [vmem:[%s0 + $0x5c] sm:$0xff]
    %v54 = vld [vmem:[%s0 + $0x64] sm:$0xff]
    %v55 = vld [vmem:[%s0 + $0x6c] sm:$0xf]
    %v56 = vld [vmem:[%s2] sm:$0xff]
    %v57 = vld [vmem:[%s2 + $0x8] sm:$0xff]
    %v58 = vld [vmem:[%s2 + $0x10] sm:$0xff]
    %v59 = vld [vmem:[%s2 + $0x18] sm:$0xff]
    %v60 = vld [vmem:[%s2 + $0x20] sm:$0xff]
    %v61 = vld [vmem:[%s2 + $0x28] sm:$0xff]
    %v62 = vld [vmem:[%s2 + $0x30] sm:$0xff]
    %v63 = vld [vmem:[%s2 + $0x38] sm:$0xff]
    %v64 = vld [vmem:[%s2 + $0x40] sm:$0xff]
    %v65 = vld [vmem:[%s2 + $0x48] sm:$0xff]
    %v66 = vld [vmem:[%s2 + $0x50] sm:$0xff]
    %v67 = vld [vmem:[%s2 + $0x58] sm:$0xff]
    %v68 = vld [vmem:[%s2 + $0x60] sm:$0xff]
    %v69 = vld [vmem:[%s2 + $0x68] sm:$0xff]
    %v70 = vld [vmem:[%s2 + $0x70] sm:$0xff]
    %v71 = vld [vmem:[%s2 + $0x78] sm:$0xff]
    %v72 = vld [vmem:[%s2 + $0x80] sm:$0xff]
    %v73 = vld [vmem:[%s2 + $0x88] sm:$0xff]
    %v74 = vld [vmem:[%s2 + $0x90] sm:$0xff]
    %v75 = vld [vmem:[%s2 + $0x98] sm:$0xff]
    %v76 = vld [vmem:[%s2 + $0xa0] sm:$0xff]
    %v77 = vld [vmem:[%s2 + $0xa8] sm:$0xff]
    %v78 = vld [vmem:[%s2 + $0xb0] sm:$0xff]
    %v79 = vld [vmem:[%s2 + $0xb8] sm:$0xff]
    %v80 = vld [vmem:[%s2 + $0xc0] sm:$0xff]
    %v81 = vld [vmem:[%s2 + $0xc8] sm:$0xff]
    %v82 = vld [vmem:[%s2 + $0xd0] sm:$0xff]
    %v83 = vld [vmem:[%s2 + $0xd8] sm:$0xff]
    %v84 = vld [vmem:[%s2 + $0xe0] sm:$0xff]
    %v85 = vld [vmem:[%s2 + $0xe8] sm:$0xff]
    %v86 = vld [vmem:[%s2 + $0xf0] sm:$0xff]
    %v87 = vld [vmem:[%s2 + $0xf8] sm:$0xff]
    %v88 = vld [vmem:[%s2 + $0x100] sm:$0xff]
    %v89 = vld [vmem:[%s2 + $0x108] sm:$0xff]
    %v90 = vld [vmem:[%s2 + $0x110] sm:$0xff]
    %v91 = vld [vmem:[%s2 + $0x118] sm:$0xff]
    %v92 = vld [vmem:[%s2 + $0x120] sm:$0xff]
    %v93 = vld [vmem:[%s2 + $0x128] sm:$0xff]
    %v94 = vld [vmem:[%s2 + $0x130] sm:$0xff]
    %v95 = vld [vmem:[%s2 + $0x138] sm:$0xff]
    %v96 = vld [vmem:[%s2 + $0x140] sm:$0xff]
    %v97 = vld [vmem:[%s2 + $0x148] sm:$0xff]
    %v98 = vld [vmem:[%s2 + $0x150] sm:$0xff]
    %v99 = vld [vmem:[%s2 + $0x158] sm:$0xff]
    %v100 = vld [vmem:[%s2 + $0x160] sm:$0xff]
    %v101 = vld [vmem:[%s2 + $0x168] sm:$0xff]
    %v102 = vld [vmem:[%s2 + $0x170] sm:$0xff]
    %v103 = vld [vmem:[%s2 + $0x178] sm:$0xff]
    %v104 = vld [vmem:[%s2 + $0x180] sm:$0xff]
    %v105 = vld [vmem:[%s2 + $0x188] sm:$0xff]
    %v106 = vld [vmem:[%s2 + $0x190] sm:$0xff]
    %v107 = vld [vmem:[%s2 + $0x198] sm:$0xff]
    %v108 = vld [vmem:[%s2 + $0x1a0] sm:$0xff]
    %v109 = vld [vmem:[%s2 + $0x1a8] sm:$0xff]
    %v110 = vld [vmem:[%s2 + $0x1b0] sm:$0xff]
    %v111 = vld [vmem:[%s2 + $0x1b8] sm:$0xff]
    %v112 = vld [vmem:[%s2 + $0x1c0] sm:$0xff]
    %v113 = vld [vmem:[%s2 + $0x1c8] sm:$0xff]
    %v114 = vld [vmem:[%s2 + $0x1d0] sm:$0xff]
    %v115 = vld [vmem:[%s2 + $0x1d8] sm:$0xff]
    %v116 = vld [vmem:[%s2 + $0x1e0] sm:$0xff]
    %v117 = vld [vmem:[%s2 + $0x1e8] sm:$0xff]
    %v118 = vld [vmem:[%s2 + $0x1f0] sm:$0xff]
    %v119 = vld [vmem:[%s2 + $0x1f8] sm:$0xff]
    %v120 = vld [vmem:[%s2 + $0x200] sm:$0xff]
    %v121 = vld [vmem:[%s2 + $0x208] sm:$0xff]
    %v122 = vld [vmem:[%s2 + $0x210] sm:$0xff]
    %v123 = vld [vmem:[%s2 + $0x218] sm:$0xff]
    %v124 = vld [vmem:[%s2 + $0x220] sm:$0xff]
    %v125 = vld [vmem:[%s2 + $0x228] sm:$0xff]
    %v126 = vld [vmem:[%s2 + $0x230] sm:$0xff]
    %v127 = vld [vmem:[%s2 + $0x238] sm:$0xff]
    %v128 = vld [vmem:[%s2 + $0x240] sm:$0xff]
    %v129 = vld [vmem:[%s2 + $0x248] sm:$0xff]
    %v130 = vld [vmem:[%s2 + $0x250] sm:$0xff]
    %v131 = vld [vmem:[%s2 + $0x258] sm:$0xff]
    %v132 = vld [vmem:[%s2 + $0x260] sm:$0xff]
    %v133 = vld [vmem:[%s2 + $0x268] sm:$0xff]
    %v134 = vld [vmem:[%s2 + $0x270] sm:$0xff]
    %v135 = vld [vmem:[%s2 + $0x278] sm:$0xff]
    %v136 = vld [vmem:[%s2 + $0x280] sm:$0xff]
    %v137 = vld [vmem:[%s2 + $0x288] sm:$0xff]
    %v138 = vld [vmem:[%s2 + $0x290] sm:$0xff]
    %v139 = vld [vmem:[%s2 + $0x298] sm:$0xff]
    %v140 = vld [vmem:[%s2 + $0x2a0] sm:$0xff]
    %v141 = vld [vmem:[%s2 + $0x2a8] sm:$0xff]
    %v142 = vld [vmem:[%s2 + $0x2b0] sm:$0xff]
    %v143 = vld [vmem:[%s2 + $0x2b8] sm:$0xff]
    %v144 = vld [vmem:[%s2 + $0x2c0] sm:$0xff]
    %v145 = vld [vmem:[%s2 + $0x2c8] sm:$0xff]
    %v146 = vld [vmem:[%s2 + $0x2d0] sm:$0xff]
    %v147 = vld [vmem:[%s2 + $0x2d8] sm:$0xff]
    %v148 = vld [vmem:[%s2 + $0x2e0] sm:$0xff]
    %v149 = vld [vmem:[%s2 + $0x2e8] sm:$0xff]
    %v150 = vld [vmem:[%s2 + $0x2f0] sm:$0xff]
    %v151 = vld [vmem:[%s2 + $0x2f8] sm:$0xff]
    %v152 = vld [vmem:[%s2 + $0x300] sm:$0xff]
    %v153 = vld [vmem:[%s2 + $0x308] sm:$0xff]
    %v154 = vld [vmem:[%s2 + $0x310] sm:$0xff]
    %v155 = vld [vmem:[%s2 + $0x318] sm:$0xff]
    %v156 = vld [vmem:[%s2 + $0x320] sm:$0xff]
    %v157 = vld [vmem:[%s2 + $0x328] sm:$0xff]
    %v158 = vld [vmem:[%s2 + $0x330] sm:$0xff]
    %v159 = vld [vmem:[%s2 + $0x338] sm:$0xff]
    %v160 = vld [vmem:[%s2 + $0x340] sm:$0xff]
    %v161 = vld [vmem:[%s2 + $0x348] sm:$0xff]
    %v162 = vld [vmem:[%s2 + $0x350] sm:$0xff]
    %v163 = vld [vmem:[%s2 + $0x358] sm:$0xff]
    %v164 = vld [vmem:[%s2 + $0x360] sm:$0xff]
    %v165 = vld [vmem:[%s2 + $0x368] sm:$0xff]
    %v166 = vld [vmem:[%s2 + $0x370] sm:$0xff]
    %v167 = vld [vmem:[%s2 + $0x378] sm:$0xff]
    %v168 = vld [vmem:[%s2 + $0x380] sm:$0xff]
    %v169 = vld [vmem:[%s2 + $0x388] sm:$0xff]
    %v170 = vld [vmem:[%s2 + $0x390] sm:$0xff]
    %v171 = vld [vmem:[%s2 + $0x398] sm:$0xff]
    %v172 = vld [vmem:[%s2 + $0x3a0] sm:$0xff]
    %v173 = vld [vmem:[%s2 + $0x3a8] sm:$0xff]
    %v174 = vld [vmem:[%s2 + $0x3b0] sm:$0xff]
    %v175 = vld [vmem:[%s2 + $0x3b8] sm:$0xff]
    %v176 = vld [vmem:[%s2 + $0x3c0] sm:$0xff]
    %v177 = vld [vmem:[%s2 + $0x3c8] sm:$0xff]
    %v178 = vld [vmem:[%s2 + $0x3d0] sm:$0xff]
    %v179 = vld [vmem:[%s2 + $0x3d8] sm:$0xff]
    %v180 = vld [vmem:[%s2 + $0x3e0] sm:$0xff]
    %v181 = vld [vmem:[%s2 + $0x3e8] sm:$0xff]
    %v182 = vld [vmem:[%s2 + $0x3f0] sm:$0xff]
    %v183 = vld [vmem:[%s2 + $0x3f8] sm:$0xff]
    %v184 = vld [vmem:[%s2 + $0x400] sm:$0xff]
    %v185 = vld [vmem:[%s2 + $0x408] sm:$0xff]
    %v186 = vld [vmem:[%s2 + $0x410] sm:$0xff]
    %v187 = vld [vmem:[%s2 + $0x418] sm:$0xff]
    %v188 = vld [vmem:[%s2 + $0x420] sm:$0xff]
    %v189 = vld [vmem:[%s2 + $0x428] sm:$0xff]
    %v190 = vld [vmem:[%s2 + $0x430] sm:$0xff]
    %v191 = vld [vmem:[%s2 + $0x438] sm:$0xff]
    %v192 = vld [vmem:[%s2 + $0x440] sm:$0xff]
    %v193 = vld [vmem:[%s2 + $0x448] sm:$0xff]
    %v194 = vld [vmem:[%s2 + $0x450] sm:$0xff]
    %v195 = vld [vmem:[%s2 + $0x458] sm:$0xff]
    %v196 = vld [vmem:[%s2 + $0x460] sm:$0xff]
    %v197 = vld [vmem:[%s2 + $0x468] sm:$0xff]
    %v198 = vld [vmem:[%s2 + $0x470] sm:$0xff]
    %v199 = vld [vmem:[%s2 + $0x478] sm:$0xff]
    %v200 = vld [vmem:[%s2 + $0x480] sm:$0xff]
    %v201 = vld [vmem:[%s2 + $0x488] sm:$0xff]
    %v202 = vld [vmem:[%s2 + $0x490] sm:$0xff]
    %v203 = vld [vmem:[%s2 + $0x498] sm:$0xff]
    %v204 = vld [vmem:[%s2 + $0x4a0] sm:$0xff]
    %v205 = vld [vmem:[%s2 + $0x4a8] sm:$0xff]
    %v206 = vld [vmem:[%s2 + $0x4b0] sm:$0xff]
    %v207 = vld [vmem:[%s2 + $0x4b8] sm:$0xff]
    %v208 = vld [vmem:[%s2 + $0x4c0] sm:$0xff]
    %v209 = vld [vmem:[%s2 + $0x4c8] sm:$0xff]
    %v210 = vld [vmem:[%s2 + $0x4d0] sm:$0xff]
    %v211 = vld [vmem:[%s2 + $0x4d8] sm:$0xff]
    %v212 = vld [vmem:[%s2 + $0x4e0] sm:$0xff]
    %v213 = vld [vmem:[%s2 + $0x4e8] sm:$0xff]
    %v214 = vld [vmem:[%s2 + $0x4f0] sm:$0xff]
    %v215 = vld [vmem:[%s2 + $0x4f8] sm:$0xff]
    %v216 = vld [vmem:[%s2 + $0x500] sm:$0xff]
    %v217 = vld [vmem:[%s2 + $0x508] sm:$0xff]
    %v218 = vld [vmem:[%s2 + $0x510] sm:$0xff]
    %v219 = vld [vmem:[%s2 + $0x518] sm:$0xff]
    %v220 = vld [vmem:[%s2 + $0x520] sm:$0xff]
    %v221 = vld [vmem:[%s2 + $0x528] sm:$0xff]
    %v222 = vld [vmem:[%s2 + $0x530] sm:$0xff]
    %v223 = vld [vmem:[%s2 + $0x538] sm:$0xff]
    %v224 = vld [vmem:[%s2 + $0x540] sm:$0xff]
    %v225 = vld [vmem:[%s2 + $0x548] sm:$0xff]
    %v226 = vld [vmem:[%s2 + $0x550] sm:$0xff]
    %v227 = vld [vmem:[%s2 + $0x558] sm:$0xff]
    %v228 = vld [vmem:[%s2 + $0x560] sm:$0xff]
    %v229 = vld [vmem:[%s2 + $0x568] sm:$0xff]
    %v230 = vld [vmem:[%s2 + $0x570] sm:$0xff]
    %v231 = vld [vmem:[%s2 + $0x578] sm:$0xff]
    %v232 = vld [vmem:[%s2 + $0x580] sm:$0xff]
    %v233 = vld [vmem:[%s2 + $0x588] sm:$0xff]
    %v234 = vld [vmem:[%s2 + $0x590] sm:$0xff]
    %v235 = vld [vmem:[%s2 + $0x598] sm:$0xff]
    %v236 = vld [vmem:[%s2 + $0x5a0] sm:$0xff]
    %v237 = vld [vmem:[%s2 + $0x5a8] sm:$0xff]
    %v238 = vld [vmem:[%s2 + $0x5b0] sm:$0xff]
    %v239 = vld [vmem:[%s2 + $0x5b8] sm:$0xff]
    %v240 = vld [vmem:[%s2 + $0x5c0] sm:$0xff]
    %v241 = vld [vmem:[%s2 + $0x5c8] sm:$0xff]
    %v242 = vld [vmem:[%s2 + $0x5d0] sm:$0xff]
    %v243 = vld [vmem:[%s2 + $0x5d8] sm:$0xff]
    %v244 = vld [vmem:[%s2 + $0x5e0] sm:$0xff]
    %v245 = vld [vmem:[%s2 + $0x5e8] sm:$0xff]
    %v246 = vld [vmem:[%s2 + $0x5f0] sm:$0xff]
    %v247 = vld [vmem:[%s2 + $0x5f8] sm:$0xff]
    %v248 = vld [vmem:[%s2 + $0x600] sm:$0xff]
    %v249 = vld [vmem:[%s2 + $0x608] sm:$0xff]
    %v250 = vld [vmem:[%s2 + $0x610] sm:$0xff]
    %v251 = vld [vmem:[%s2 + $0x618] sm:$0xff]
    %v252 = vld [vmem:[%s2 + $0x620] sm:$0xff]
    %v253 = vld [vmem:[%s2 + $0x628] sm:$0xff]
    %v254 = vld [vmem:[%s2 + $0x630] sm:$0xff]
    %v255 = vld [vmem:[%s2 + $0x638] sm:$0xff]
    %v256 = vld [vmem:[%s2 + $0x640] sm:$0xff]
    %v257 = vld [vmem:[%s2 + $0x648] sm:$0xff]
    %v258 = vld [vmem:[%s2 + $0x650] sm:$0xff]
    %v259 = vld [vmem:[%s2 + $0x658] sm:$0xff]
    %v260 = vld [vmem:[%s2 + $0x660] sm:$0xff]
    %v261 = vld [vmem:[%s2 + $0x668] sm:$0xff]
    %v262 = vld [vmem:[%s2 + $0x670] sm:$0xff]
    %v263 = vld [vmem:[%s2 + $0x678] sm:$0xff]
    %v264 = vld [vmem:[%s2 + $0x680] sm:$0xff]
    %v265 = vld [vmem:[%s2 + $0x688] sm:$0xff]
    %v266 = vld [vmem:[%s2 + $0x690] sm:$0xff]
    %v267 = vld [vmem:[%s2 + $0x698] sm:$0xff]
    %v268 = vld [vmem:[%s2 + $0x6a0] sm:$0xff]
    %v269 = vld [vmem:[%s2 + $0x6a8] sm:$0xff]
    %v270 = vld [vmem:[%s2 + $0x6b0] sm:$0xff]
    %v271 = vld [vmem:[%s2 + $0x6b8] sm:$0xff]
    %v272 = vld [vmem:[%s2 + $0x6c0] sm:$0xff]
    %v273 = vld [vmem:[%s2 + $0x6c8] sm:$0xff]
    %v274 = vld [vmem:[%s2 + $0x6d0] sm:$0xff]
    %v275 = vld [vmem:[%s2 + $0x6d8] sm:$0xff]
    %v276 = vld [vmem:[%s2 + $0x6e0] sm:$0xff]
    %v277 = vld [vmem:[%s2 + $0x6e8] sm:$0xff]
    %v278 = vld [vmem:[%s2 + $0x6f0] sm:$0xff]
    %v279 = vld [vmem:[%s2 + $0x6f8] sm:$0xff]
    %v280 = vld [vmem:[%s3] sm:$0xf]
    %v282 = vperm.slane %v280, 0
    %v283 = vperm.slane %v280, 1
    %v284 = vperm.slane %v280, 2
    %v285 = vperm.slane %v280, 3
    %v306 = vunpack.c.l.b16 %v40
    %v307 = vunpack.c.h.b16 %v40
    %v308 = vunpack.c.l.b16 %v41
    %v309 = vunpack.c.h.b16 %v41
    %v310 = vunpack.c.l.b16 %v42
    %v311 = vunpack.c.h.b16 %v42
    %v312 = vunpack.c.l.b16 %v43
    %v313 = vunpack.c.l.b16 %v44
    %v314 = vunpack.c.h.b16 %v44
    %v315 = vunpack.c.l.b16 %v45
    %v316 = vunpack.c.h.b16 %v45
    %v317 = vunpack.c.l.b16 %v46
    %v318 = vunpack.c.h.b16 %v46
    %v319 = vunpack.c.l.b16 %v47
    %v320 = vunpack.c.l.b16 %v48
    %v321 = vunpack.c.h.b16 %v48
    %v322 = vunpack.c.l.b16 %v49
    %v323 = vunpack.c.h.b16 %v49
    %v324 = vunpack.c.l.b16 %v50
    %v325 = vunpack.c.h.b16 %v50
    %v326 = vunpack.c.l.b16 %v51
    %v327 = vunpack.c.l.b16 %v52
    %v328 = vunpack.c.h.b16 %v52
    %v329 = vunpack.c.l.b16 %v53
    %v330 = vunpack.c.h.b16 %v53
    %v331 = vunpack.c.l.b16 %v54
    %v332 = vunpack.c.h.b16 %v54
    %v333 = vunpack.c.l.b16 %v55
    %v334 = vpack.c.b16 %v313, %v306
    %v335 = vpack.c.b16 %v314, %v307
    %v336 = vpack.c.b16 %v315, %v308
    %v337 = vpack.c.b16 %v316, %v309
    %v338 = vpack.c.b16 %v317, %v310
    %v339 = vpack.c.b16 %v318, %v311
    %v340 = vpack.c.b16 %v319, %v312
    %v341 = vpack.c.b16 %v327, %v320
    %v342 = vpack.c.b16 %v328, %v321
    %v343 = vpack.c.b16 %v329, %v322
    %v344 = vpack.c.b16 %v330, %v323
    %v345 = vpack.c.b16 %v331, %v324
    %v346 = vpack.c.b16 %v332, %v325
    %v347 = vpack.c.b16 %v333, %v326
    %v586 = vunpack.c.l.b16 %v56
    %v587 = vunpack.c.h.b16 %v56
    %v588 = vunpack.c.l.b16 %v57
    %v589 = vunpack.c.h.b16 %v57
    %v590 = vunpack.c.l.b16 %v58
    %v591 = vunpack.c.h.b16 %v58
    %v592 = vunpack.c.l.b16 %v59
    %v593 = vunpack.c.h.b16 %v59
    %v594 = vunpack.c.l.b16 %v60
    %v595 = vunpack.c.h.b16 %v60
    %v596 = vunpack.c.l.b16 %v61
    %v597 = vunpack.c.h.b16 %v61
    %v598 = vunpack.c.l.b16 %v62
    %v599 = vunpack.c.h.b16 %v62
    %v600 = vunpack.c.l.b16 %v63
    %v601 = vunpack.c.h.b16 %v63
    %v602 = vunpack.c.l.b16 %v64
    %v603 = vunpack.c.h.b16 %v64
    %v604 = vunpack.c.l.b16 %v65
    %v605 = vunpack.c.h.b16 %v65
    %v606 = vunpack.c.l.b16 %v66
    %v607 = vunpack.c.h.b16 %v66
    %v608 = vunpack.c.l.b16 %v67
    %v609 = vunpack.c.h.b16 %v67
    %v610 = vunpack.c.l.b16 %v68
    %v611 = vunpack.c.h.b16 %v68
    %v612 = vunpack.c.l.b16 %v69
    %v613 = vunpack.c.h.b16 %v69
    %v614 = vunpack.c.l.b16 %v70
    %v615 = vunpack.c.h.b16 %v70
    %v616 = vunpack.c.l.b16 %v71
    %v617 = vunpack.c.h.b16 %v71
    %v618 = vunpack.c.l.b16 %v72
    %v619 = vunpack.c.h.b16 %v72
    %v620 = vunpack.c.l.b16 %v73
    %v621 = vunpack.c.h.b16 %v73
    %v622 = vunpack.c.l.b16 %v74
    %v623 = vunpack.c.h.b16 %v74
    %v624 = vunpack.c.l.b16 %v75
    %v625 = vunpack.c.h.b16 %v75
    %v626 = vunpack.c.l.b16 %v76
    %v627 = vunpack.c.h.b16 %v76
    %v628 = vunpack.c.l.b16 %v77
    %v629 = vunpack.c.h.b16 %v77
    %v630 = vunpack.c.l.b16 %v78
    %v631 = vunpack.c.h.b16 %v78
    %v632 = vunpack.c.l.b16 %v79
    %v633 = vunpack.c.h.b16 %v79
    %v634 = vunpack.c.l.b16 %v80
    %v635 = vunpack.c.h.b16 %v80
    %v636 = vunpack.c.l.b16 %v81
    %v637 = vunpack.c.h.b16 %v81
    %v638 = vunpack.c.l.b16 %v82
    %v639 = vunpack.c.h.b16 %v82
    %v640 = vunpack.c.l.b16 %v83
    %v641 = vunpack.c.h.b16 %v83
    %v642 = vunpack.c.l.b16 %v84
    %v643 = vunpack.c.h.b16 %v84
    %v644 = vunpack.c.l.b16 %v85
    %v645 = vunpack.c.h.b16 %v85
    %v646 = vunpack.c.l.b16 %v86
    %v647 = vunpack.c.h.b16 %v86
    %v648 = vunpack.c.l.b16 %v87
    %v649 = vunpack.c.h.b16 %v87
    %v650 = vunpack.c.l.b16 %v88
    %v651 = vunpack.c.h.b16 %v88
    %v652 = vunpack.c.l.b16 %v89
    %v653 = vunpack.c.h.b16 %v89
    %v654 = vunpack.c.l.b16 %v90
    %v655 = vunpack.c.h.b16 %v90
    %v656 = vunpack.c.l.b16 %v91
    %v657 = vunpack.c.h.b16 %v91
    %v658 = vunpack.c.l.b16 %v92
    %v659 = vunpack.c.h.b16 %v92
    %v660 = vunpack.c.l.b16 %v93
    %v661 = vunpack.c.h.b16 %v93
    %v662 = vunpack.c.l.b16 %v94
    %v663 = vunpack.c.h.b16 %v94
    %v664 = vunpack.c.l.b16 %v95
    %v665 = vunpack.c.h.b16 %v95
    %v666 = vunpack.c.l.b16 %v96
    %v667 = vunpack.c.h.b16 %v96
    %v668 = vunpack.c.l.b16 %v97
    %v669 = vunpack.c.h.b16 %v97
    %v670 = vunpack.c.l.b16 %v98
    %v671 = vunpack.c.h.b16 %v98
    %v672 = vunpack.c.l.b16 %v99
    %v673 = vunpack.c.h.b16 %v99
    %v674 = vunpack.c.l.b16 %v100
    %v675 = vunpack.c.h.b16 %v100
    %v676 = vunpack.c.l.b16 %v101
    %v677 = vunpack.c.h.b16 %v101
    %v678 = vunpack.c.l.b16 %v102
    %v679 = vunpack.c.h.b16 %v102
    %v680 = vunpack.c.l.b16 %v103
    %v681 = vunpack.c.h.b16 %v103
    %v682 = vunpack.c.l.b16 %v104
    %v683 = vunpack.c.h.b16 %v104
    %v684 = vunpack.c.l.b16 %v105
    %v685 = vunpack.c.h.b16 %v105
    %v686 = vunpack.c.l.b16 %v106
    %v687 = vunpack.c.h.b16 %v106
    %v688 = vunpack.c.l.b16 %v107
    %v689 = vunpack.c.h.b16 %v107
    %v690 = vunpack.c.l.b16 %v108
    %v691 = vunpack.c.h.b16 %v108
    %v692 = vunpack.c.l.b16 %v109
    %v693 = vunpack.c.h.b16 %v109
    %v694 = vunpack.c.l.b16 %v110
    %v695 = vunpack.c.h.b16 %v110
    %v696 = vunpack.c.l.b16 %v111
    %v697 = vunpack.c.h.b16 %v111
    %v698 = vunpack.c.l.b16 %v112
    %v699 = vunpack.c.h.b16 %v112
    %v700 = vunpack.c.l.b16 %v113
    %v701 = vunpack.c.h.b16 %v113
    %v702 = vunpack.c.l.b16 %v114
    %v703 = vunpack.c.h.b16 %v114
    %v704 = vunpack.c.l.b16 %v115
    %v705 = vunpack.c.h.b16 %v115
    %v706 = vunpack.c.l.b16 %v116
    %v707 = vunpack.c.h.b16 %v116
    %v708 = vunpack.c.l.b16 %v117
    %v709 = vunpack.c.h.b16 %v117
    %v710 = vunpack.c.l.b16 %v118
    %v711 = vunpack.c.h.b16 %v118
    %v712 = vunpack.c.l.b16 %v119
    %v713 = vunpack.c.h.b16 %v119
    %v714 = vunpack.c.l.b16 %v120
    %v715 = vunpack.c.h.b16 %v120
    %v716 = vunpack.c.l.b16 %v121
    %v717 = vunpack.c.h.b16 %v121
    %v718 = vunpack.c.l.b16 %v122
    %v719 = vunpack.c.h.b16 %v122
    %v720 = vunpack.c.l.b16 %v123
    %v721 = vunpack.c.h.b16 %v123
    %v722 = vunpack.c.l.b16 %v124
    %v723 = vunpack.c.h.b16 %v124
    %v724 = vunpack.c.l.b16 %v125
    %v725 = vunpack.c.h.b16 %v125
    %v726 = vunpack.c.l.b16 %v126
    %v727 = vunpack.c.h.b16 %v126
    %v728 = vunpack.c.l.b16 %v127
    %v729 = vunpack.c.h.b16 %v127
    %v730 = vunpack.c.l.b16 %v128
    %v731 = vunpack.c.h.b16 %v128
    %v732 = vunpack.c.l.b16 %v129
    %v733 = vunpack.c.h.b16 %v129
    %v734 = vunpack.c.l.b16 %v130
    %v735 = vunpack.c.h.b16 %v130
    %v736 = vunpack.c.l.b16 %v131
    %v737 = vunpack.c.h.b16 %v131
    %v738 = vunpack.c.l.b16 %v132
    %v739 = vunpack.c.h.b16 %v132
    %v740 = vunpack.c.l.b16 %v133
    %v741 = vunpack.c.h.b16 %v133
    %v742 = vunpack.c.l.b16 %v134
    %v743 = vunpack.c.h.b16 %v134
    %v744 = vunpack.c.l.b16 %v135
    %v745 = vunpack.c.h.b16 %v135
    %v746 = vunpack.c.l.b16 %v136
    %v747 = vunpack.c.h.b16 %v136
    %v748 = vunpack.c.l.b16 %v137
    %v749 = vunpack.c.h.b16 %v137
    %v750 = vunpack.c.l.b16 %v138
    %v751 = vunpack.c.h.b16 %v138
    %v752 = vunpack.c.l.b16 %v139
    %v753 = vunpack.c.h.b16 %v139
    %v754 = vunpack.c.l.b16 %v140
    %v755 = vunpack.c.h.b16 %v140
    %v756 = vunpack.c.l.b16 %v141
    %v757 = vunpack.c.h.b16 %v141
    %v758 = vunpack.c.l.b16 %v142
    %v759 = vunpack.c.h.b16 %v142
    %v760 = vunpack.c.l.b16 %v143
    %v761 = vunpack.c.h.b16 %v143
    %v762 = vunpack.c.l.b16 %v144
    %v763 = vunpack.c.h.b16 %v144
    %v764 = vunpack.c.l.b16 %v145
    %v765 = vunpack.c.h.b16 %v145
    %v766 = vunpack.c.l.b16 %v146
    %v767 = vunpack.c.h.b16 %v146
    %v768 = vunpack.c.l.b16 %v147
    %v769 = vunpack.c.h.b16 %v147
    %v770 = vunpack.c.l.b16 %v148
    %v771 = vunpack.c.h.b16 %v148
    %v772 = vunpack.c.l.b16 %v149
    %v773 = vunpack.c.h.b16 %v149
    %v774 = vunpack.c.l.b16 %v150
    %v775 = vunpack.c.h.b16 %v150
    %v776 = vunpack.c.l.b16 %v151
    %v777 = vunpack.c.h.b16 %v151
    %v778 = vunpack.c.l.b16 %v152
    %v779 = vunpack.c.h.b16 %v152
    %v780 = vunpack.c.l.b16 %v153
    %v781 = vunpack.c.h.b16 %v153
    %v782 = vunpack.c.l.b16 %v154
    %v783 = vunpack.c.h.b16 %v154
    %v784 = vunpack.c.l.b16 %v155
    %v785 = vunpack.c.h.b16 %v155
    %v786 = vunpack.c.l.b16 %v156
    %v787 = vunpack.c.h.b16 %v156
    %v788 = vunpack.c.l.b16 %v157
    %v789 = vunpack.c.h.b16 %v157
    %v790 = vunpack.c.l.b16 %v158
    %v791 = vunpack.c.h.b16 %v158
    %v792 = vunpack.c.l.b16 %v159
    %v793 = vunpack.c.h.b16 %v159
    %v794 = vunpack.c.l.b16 %v160
    %v795 = vunpack.c.h.b16 %v160
    %v796 = vunpack.c.l.b16 %v161
    %v797 = vunpack.c.h.b16 %v161
    %v798 = vunpack.c.l.b16 %v162
    %v799 = vunpack.c.h.b16 %v162
    %v800 = vunpack.c.l.b16 %v163
    %v801 = vunpack.c.h.b16 %v163
    %v802 = vunpack.c.l.b16 %v164
    %v803 = vunpack.c.h.b16 %v164
    %v804 = vunpack.c.l.b16 %v165
    %v805 = vunpack.c.h.b16 %v165
    %v806 = vunpack.c.l.b16 %v166
    %v807 = vunpack.c.h.b16 %v166
    %v808 = vunpack.c.l.b16 %v167
    %v809 = vunpack.c.h.b16 %v167
    %v810 = vunpack.c.l.b16 %v168
    %v811 = vunpack.c.h.b16 %v168
    %v812 = vunpack.c.l.b16 %v169
    %v813 = vunpack.c.h.b16 %v169
    %v814 = vunpack.c.l.b16 %v170
    %v815 = vunpack.c.h.b16 %v170
    %v816 = vunpack.c.l.b16 %v171
    %v817 = vunpack.c.h.b16 %v171
    %v818 = vunpack.c.l.b16 %v172
    %v819 = vunpack.c.h.b16 %v172
    %v820 = vunpack.c.l.b16 %v173
    %v821 = vunpack.c.h.b16 %v173
    %v822 = vunpack.c.l.b16 %v174
    %v823 = vunpack.c.h.b16 %v174
    %v824 = vunpack.c.l.b16 %v175
    %v825 = vunpack.c.h.b16 %v175
    %v826 = vunpack.c.l.b16 %v176
    %v827 = vunpack.c.h.b16 %v176
    %v828 = vunpack.c.l.b16 %v177
    %v829 = vunpack.c.h.b16 %v177
    %v830 = vunpack.c.l.b16 %v178
    %v831 = vunpack.c.h.b16 %v178
    %v832 = vunpack.c.l.b16 %v179
    %v833 = vunpack.c.h.b16 %v179
    %v834 = vunpack.c.l.b16 %v180
    %v835 = vunpack.c.h.b16 %v180
    %v836 = vunpack.c.l.b16 %v181
    %v837 = vunpack.c.h.b16 %v181
    %v838 = vunpack.c.l.b16 %v182
    %v839 = vunpack.c.h.b16 %v182
    %v840 = vunpack.c.l.b16 %v183
    %v841 = vunpack.c.h.b16 %v183
    %v842 = vunpack.c.l.b16 %v184
    %v843 = vunpack.c.h.b16 %v184
    %v844 = vunpack.c.l.b16 %v185
    %v845 = vunpack.c.h.b16 %v185
    %v846 = vunpack.c.l.b16 %v186
    %v847 = vunpack.c.h.b16 %v186
    %v848 = vunpack.c.l.b16 %v187
    %v849 = vunpack.c.h.b16 %v187
    %v850 = vunpack.c.l.b16 %v188
    %v851 = vunpack.c.h.b16 %v188
    %v852 = vunpack.c.l.b16 %v189
    %v853 = vunpack.c.h.b16 %v189
    %v854 = vunpack.c.l.b16 %v190
    %v855 = vunpack.c.h.b16 %v190
    %v856 = vunpack.c.l.b16 %v191
    %v857 = vunpack.c.h.b16 %v191
    %v858 = vunpack.c.l.b16 %v192
    %v859 = vunpack.c.h.b16 %v192
    %v860 = vunpack.c.l.b16 %v193
    %v861 = vunpack.c.h.b16 %v193
    %v862 = vunpack.c.l.b16 %v194
    %v863 = vunpack.c.h.b16 %v194
    %v864 = vunpack.c.l.b16 %v195
    %v865 = vunpack.c.h.b16 %v195
    %v866 = vunpack.c.l.b16 %v196
    %v867 = vunpack.c.h.b16 %v196
    %v868 = vunpack.c.l.b16 %v197
    %v869 = vunpack.c.h.b16 %v197
    %v870 = vunpack.c.l.b16 %v198
    %v871 = vunpack.c.h.b16 %v198
    %v872 = vunpack.c.l.b16 %v199
    %v873 = vunpack.c.h.b16 %v199
    %v874 = vunpack.c.l.b16 %v200
    %v875 = vunpack.c.h.b16 %v200
    %v876 = vunpack.c.l.b16 %v201
    %v877 = vunpack.c.h.b16 %v201
    %v878 = vunpack.c.l.b16 %v202
    %v879 = vunpack.c.h.b16 %v202
    %v880 = vunpack.c.l.b16 %v203
    %v881 = vunpack.c.h.b16 %v203
    %v882 = vunpack.c.l.b16 %v204
    %v883 = vunpack.c.h.b16 %v204
    %v884 = vunpack.c.l.b16 %v205
    %v885 = vunpack.c.h.b16 %v205
    %v886 = vunpack.c.l.b16 %v206
    %v887 = vunpack.c.h.b16 %v206
    %v888 = vunpack.c.l.b16 %v207
    %v889 = vunpack.c.h.b16 %v207
    %v890 = vunpack.c.l.b16 %v208
    %v891 = vunpack.c.h.b16 %v208
    %v892 = vunpack.c.l.b16 %v209
    %v893 = vunpack.c.h.b16 %v209
    %v894 = vunpack.c.l.b16 %v210
    %v895 = vunpack.c.h.b16 %v210
    %v896 = vunpack.c.l.b16 %v211
    %v897 = vunpack.c.h.b16 %v211
    %v898 = vunpack.c.l.b16 %v212
    %v899 = vunpack.c.h.b16 %v212
    %v900 = vunpack.c.l.b16 %v213
    %v901 = vunpack.c.h.b16 %v213
    %v902 = vunpack.c.l.b16 %v214
    %v903 = vunpack.c.h.b16 %v214
    %v904 = vunpack.c.l.b16 %v215
    %v905 = vunpack.c.h.b16 %v215
    %v906 = vunpack.c.l.b16 %v216
    %v907 = vunpack.c.h.b16 %v216
    %v908 = vunpack.c.l.b16 %v217
    %v909 = vunpack.c.h.b16 %v217
    %v910 = vunpack.c.l.b16 %v218
    %v911 = vunpack.c.h.b16 %v218
    %v912 = vunpack.c.l.b16 %v219
    %v913 = vunpack.c.h.b16 %v219
    %v914 = vunpack.c.l.b16 %v220
    %v915 = vunpack.c.h.b16 %v220
    %v916 = vunpack.c.l.b16 %v221
    %v917 = vunpack.c.h.b16 %v221
    %v918 = vunpack.c.l.b16 %v222
    %v919 = vunpack.c.h.b16 %v222
    %v920 = vunpack.c.l.b16 %v223
    %v921 = vunpack.c.h.b16 %v223
    %v922 = vunpack.c.l.b16 %v224
    %v923 = vunpack.c.h.b16 %v224
    %v924 = vunpack.c.l.b16 %v225
    %v925 = vunpack.c.h.b16 %v225
    %v926 = vunpack.c.l.b16 %v226
    %v927 = vunpack.c.h.b16 %v226
    %v928 = vunpack.c.l.b16 %v227
    %v929 = vunpack.c.h.b16 %v227
    %v930 = vunpack.c.l.b16 %v228
    %v931 = vunpack.c.h.b16 %v228
    %v932 = vunpack.c.l.b16 %v229
    %v933 = vunpack.c.h.b16 %v229
    %v934 = vunpack.c.l.b16 %v230
    %v935 = vunpack.c.h.b16 %v230
    %v936 = vunpack.c.l.b16 %v231
    %v937 = vunpack.c.h.b16 %v231
    %v938 = vunpack.c.l.b16 %v232
    %v939 = vunpack.c.h.b16 %v232
    %v940 = vunpack.c.l.b16 %v233
    %v941 = vunpack.c.h.b16 %v233
    %v942 = vunpack.c.l.b16 %v234
    %v943 = vunpack.c.h.b16 %v234
    %v944 = vunpack.c.l.b16 %v235
    %v945 = vunpack.c.h.b16 %v235
    %v946 = vunpack.c.l.b16 %v236
    %v947 = vunpack.c.h.b16 %v236
    %v948 = vunpack.c.l.b16 %v237
    %v949 = vunpack.c.h.b16 %v237
    %v950 = vunpack.c.l.b16 %v238
    %v951 = vunpack.c.h.b16 %v238
    %v952 = vunpack.c.l.b16 %v239
    %v953 = vunpack.c.h.b16 %v239
    %v954 = vunpack.c.l.b16 %v240
    %v955 = vunpack.c.h.b16 %v240
    %v956 = vunpack.c.l.b16 %v241
    %v957 = vunpack.c.h.b16 %v241
    %v958 = vunpack.c.l.b16 %v242
    %v959 = vunpack.c.h.b16 %v242
    %v960 = vunpack.c.l.b16 %v243
    %v961 = vunpack.c.h.b16 %v243
    %v962 = vunpack.c.l.b16 %v244
    %v963 = vunpack.c.h.b16 %v244
    %v964 = vunpack.c.l.b16 %v245
    %v965 = vunpack.c.h.b16 %v245
    %v966 = vunpack.c.l.b16 %v246
    %v967 = vunpack.c.h.b16 %v246
    %v968 = vunpack.c.l.b16 %v247
    %v969 = vunpack.c.h.b16 %v247
    %v970 = vunpack.c.l.b16 %v248
    %v971 = vunpack.c.h.b16 %v248
    %v972 = vunpack.c.l.b16 %v249
    %v973 = vunpack.c.h.b16 %v249
    %v974 = vunpack.c.l.b16 %v250
    %v975 = vunpack.c.h.b16 %v250
    %v976 = vunpack.c.l.b16 %v251
    %v977 = vunpack.c.h.b16 %v251
    %v978 = vunpack.c.l.b16 %v252
    %v979 = vunpack.c.h.b16 %v252
    %v980 = vunpack.c.l.b16 %v253
    %v981 = vunpack.c.h.b16 %v253
    %v982 = vunpack.c.l.b16 %v254
    %v983 = vunpack.c.h.b16 %v254
    %v984 = vunpack.c.l.b16 %v255
    %v985 = vunpack.c.h.b16 %v255
    %v986 = vunpack.c.l.b16 %v256
    %v987 = vunpack.c.h.b16 %v256
    %v988 = vunpack.c.l.b16 %v257
    %v989 = vunpack.c.h.b16 %v257
    %v990 = vunpack.c.l.b16 %v258
    %v991 = vunpack.c.h.b16 %v258
    %v992 = vunpack.c.l.b16 %v259
    %v993 = vunpack.c.h.b16 %v259
    %v994 = vunpack.c.l.b16 %v260
    %v995 = vunpack.c.h.b16 %v260
    %v996 = vunpack.c.l.b16 %v261
    %v997 = vunpack.c.h.b16 %v261
    %v998 = vunpack.c.l.b16 %v262
    %v999 = vunpack.c.h.b16 %v262
    %v1000 = vunpack.c.l.b16 %v263
    %v1001 = vunpack.c.h.b16 %v263
    %v1002 = vunpack.c.l.b16 %v264
    %v1003 = vunpack.c.h.b16 %v264
    %v1004 = vunpack.c.l.b16 %v265
    %v1005 = vunpack.c.h.b16 %v265
    %v1006 = vunpack.c.l.b16 %v266
    %v1007 = vunpack.c.h.b16 %v266
    %v1008 = vunpack.c.l.b16 %v267
    %v1009 = vunpack.c.h.b16 %v267
    %v1010 = vunpack.c.l.b16 %v268
    %v1011 = vunpack.c.h.b16 %v268
    %v1012 = vunpack.c.l.b16 %v269
    %v1013 = vunpack.c.h.b16 %v269
    %v1014 = vunpack.c.l.b16 %v270
    %v1015 = vunpack.c.h.b16 %v270
    %v1016 = vunpack.c.l.b16 %v271
    %v1017 = vunpack.c.h.b16 %v271
    %v1018 = vunpack.c.l.b16 %v272
    %v1019 = vunpack.c.h.b16 %v272
    %v1020 = vunpack.c.l.b16 %v273
    %v1021 = vunpack.c.h.b16 %v273
    %v1022 = vunpack.c.l.b16 %v274
    %v1023 = vunpack.c.h.b16 %v274
    %v1024 = vunpack.c.l.b16 %v275
    %v1025 = vunpack.c.h.b16 %v275
    %v1026 = vunpack.c.l.b16 %v276
    %v1027 = vunpack.c.h.b16 %v276
    %v1028 = vunpack.c.l.b16 %v277
    %v1029 = vunpack.c.h.b16 %v277
    %v1030 = vunpack.c.l.b16 %v278
    %v1031 = vunpack.c.h.b16 %v278
    %v1032 = vunpack.c.l.b16 %v279
    %v1033 = vunpack.c.h.b16 %v279
    %v1034 = vpack.c.b16 %v590, %v586
    %v1035 = vpack.c.b16 %v591, %v587
    %v1036 = vpack.c.b16 %v592, %v588
    %v1037 = vpack.c.b16 %v593, %v589
    %v1038 = vpack.c.b16 %v598, %v594
    %v1039 = vpack.c.b16 %v599, %v595
    %v1040 = vpack.c.b16 %v600, %v596
    %v1041 = vpack.c.b16 %v601, %v597
    %v1042 = vpack.c.b16 %v606, %v602
    %v1043 = vpack.c.b16 %v607, %v603
    %v1044 = vpack.c.b16 %v608, %v604
    %v1045 = vpack.c.b16 %v609, %v605
    %v1046 = vpack.c.b16 %v614, %v610
    %v1047 = vpack.c.b16 %v615, %v611
    %v1048 = vpack.c.b16 %v616, %v612
    %v1049 = vpack.c.b16 %v617, %v613
    %v1050 = vpack.c.b16 %v622, %v618
    %v1051 = vpack.c.b16 %v623, %v619
    %v1052 = vpack.c.b16 %v624, %v620
    %v1053 = vpack.c.b16 %v625, %v621
    %v1054 = vpack.c.b16 %v630, %v626
    %v1055 = vpack.c.b16 %v631, %v627
    %v1056 = vpack.c.b16 %v632, %v628
    %v1057 = vpack.c.b16 %v633, %v629
    %v1058 = vpack.c.b16 %v638, %v634
    %v1059 = vpack.c.b16 %v639, %v635
    %v1060 = vpack.c.b16 %v640, %v636
    %v1061 = vpack.c.b16 %v641, %v637
    %v1062 = vpack.c.b16 %v646, %v642
    %v1063 = vpack.c.b16 %v647, %v643
    %v1064 = vpack.c.b16 %v648, %v644
    %v1065 = vpack.c.b16 %v649, %v645
    %v1066 = vpack.c.b16 %v654, %v650
    %v1067 = vpack.c.b16 %v655, %v651
    %v1068 = vpack.c.b16 %v656, %v652
    %v1069 = vpack.c.b16 %v657, %v653
    %v1070 = vpack.c.b16 %v662, %v658
    %v1071 = vpack.c.b16 %v663, %v659
    %v1072 = vpack.c.b16 %v664, %v660
    %v1073 = vpack.c.b16 %v665, %v661
    %v1074 = vpack.c.b16 %v670, %v666
    %v1075 = vpack.c.b16 %v671, %v667
    %v1076 = vpack.c.b16 %v672, %v668
    %v1077 = vpack.c.b16 %v673, %v669
    %v1078 = vpack.c.b16 %v678, %v674
    %v1079 = vpack.c.b16 %v679, %v675
    %v1080 = vpack.c.b16 %v680, %v676
    %v1081 = vpack.c.b16 %v681, %v677
    %v1082 = vpack.c.b16 %v686, %v682
    %v1083 = vpack.c.b16 %v687, %v683
    %v1084 = vpack.c.b16 %v688, %v684
    %v1085 = vpack.c.b16 %v689, %v685
    %v1086 = vpack.c.b16 %v694, %v690
    %v1087 = vpack.c.b16 %v695, %v691
    %v1088 = vpack.c.b16 %v696, %v692
    %v1089 = vpack.c.b16 %v697, %v693
    %v1090 = vpack.c.b16 %v702, %v698
    %v1091 = vpack.c.b16 %v703, %v699
    %v1092 = vpack.c.b16 %v704, %v700
    %v1093 = vpack.c.b16 %v705, %v701
    %v1094 = vpack.c.b16 %v710, %v706
    %v1095 = vpack.c.b16 %v711, %v707
    %v1096 = vpack.c.b16 %v712, %v708
    %v1097 = vpack.c.b16 %v713, %v709
    %v1098 = vpack.c.b16 %v718, %v714
    %v1099 = vpack.c.b16 %v719, %v715
    %v1100 = vpack.c.b16 %v720, %v716
    %v1101 = vpack.c.b16 %v721, %v717
    %v1102 = vpack.c.b16 %v726, %v722
    %v1103 = vpack.c.b16 %v727, %v723
    %v1104 = vpack.c.b16 %v728, %v724
    %v1105 = vpack.c.b16 %v729, %v725
    %v1106 = vpack.c.b16 %v734, %v730
    %v1107 = vpack.c.b16 %v735, %v731
    %v1108 = vpack.c.b16 %v736, %v732
    %v1109 = vpack.c.b16 %v737, %v733
    %v1110 = vpack.c.b16 %v742, %v738
    %v1111 = vpack.c.b16 %v743, %v739
    %v1112 = vpack.c.b16 %v744, %v740
    %v1113 = vpack.c.b16 %v745, %v741
    %v1114 = vpack.c.b16 %v750, %v746
    %v1115 = vpack.c.b16 %v751, %v747
    %v1116 = vpack.c.b16 %v752, %v748
    %v1117 = vpack.c.b16 %v753, %v749
    %v1118 = vpack.c.b16 %v758, %v754
    %v1119 = vpack.c.b16 %v759, %v755
    %v1120 = vpack.c.b16 %v760, %v756
    %v1121 = vpack.c.b16 %v761, %v757
    %v1122 = vpack.c.b16 %v766, %v762
    %v1123 = vpack.c.b16 %v767, %v763
    %v1124 = vpack.c.b16 %v768, %v764
    %v1125 = vpack.c.b16 %v769, %v765
    %v1126 = vpack.c.b16 %v774, %v770
    %v1127 = vpack.c.b16 %v775, %v771
    %v1128 = vpack.c.b16 %v776, %v772
    %v1129 = vpack.c.b16 %v777, %v773
    %v1130 = vpack.c.b16 %v782, %v778
    %v1131 = vpack.c.b16 %v783, %v779
    %v1132 = vpack.c.b16 %v784, %v780
    %v1133 = vpack.c.b16 %v785, %v781
    %v1134 = vpack.c.b16 %v790, %v786
    %v1135 = vpack.c.b16 %v791, %v787
    %v1136 = vpack.c.b16 %v792, %v788
    %v1137 = vpack.c.b16 %v793, %v789
    %v1138 = vpack.c.b16 %v798, %v794
    %v1139 = vpack.c.b16 %v799, %v795
    %v1140 = vpack.c.b16 %v800, %v796
    %v1141 = vpack.c.b16 %v801, %v797
    %v1142 = vpack.c.b16 %v806, %v802
    %v1143 = vpack.c.b16 %v807, %v803
    %v1144 = vpack.c.b16 %v808, %v804
    %v1145 = vpack.c.b16 %v809, %v805
    %v1146 = vpack.c.b16 %v814, %v810
    %v1147 = vpack.c.b16 %v815, %v811
    %v1148 = vpack.c.b16 %v816, %v812
    %v1149 = vpack.c.b16 %v817, %v813
    %v1150 = vpack.c.b16 %v822, %v818
    %v1151 = vpack.c.b16 %v823, %v819
    %v1152 = vpack.c.b16 %v824, %v820
    %v1153 = vpack.c.b16 %v825, %v821
    %v1154 = vpack.c.b16 %v830, %v826
    %v1155 = vpack.c.b16 %v831, %v827
    %v1156 = vpack.c.b16 %v832, %v828
    %v1157 = vpack.c.b16 %v833, %v829
    %v1158 = vpack.c.b16 %v838, %v834
    %v1159 = vpack.c.b16 %v839, %v835
    %v1160 = vpack.c.b16 %v840, %v836
    %v1161 = vpack.c.b16 %v841, %v837
    %v1162 = vpack.c.b16 %v846, %v842
    %v1163 = vpack.c.b16 %v847, %v843
    %v1164 = vpack.c.b16 %v848, %v844
    %v1165 = vpack.c.b16 %v849, %v845
    %v1166 = vpack.c.b16 %v854, %v850
    %v1167 = vpack.c.b16 %v855, %v851
    %v1168 = vpack.c.b16 %v856, %v852
    %v1169 = vpack.c.b16 %v857, %v853
    %v1170 = vpack.c.b16 %v862, %v858
    %v1171 = vpack.c.b16 %v863, %v859
    %v1172 = vpack.c.b16 %v864, %v860
    %v1173 = vpack.c.b16 %v865, %v861
    %v1174 = vpack.c.b16 %v870, %v866
    %v1175 = vpack.c.b16 %v871, %v867
    %v1176 = vpack.c.b16 %v872, %v868
    %v1177 = vpack.c.b16 %v873, %v869
    %v1178 = vpack.c.b16 %v878, %v874
    %v1179 = vpack.c.b16 %v879, %v875
    %v1180 = vpack.c.b16 %v880, %v876
    %v1181 = vpack.c.b16 %v881, %v877
    %v1182 = vpack.c.b16 %v886, %v882
    %v1183 = vpack.c.b16 %v887, %v883
    %v1184 = vpack.c.b16 %v888, %v884
    %v1185 = vpack.c.b16 %v889, %v885
    %v1186 = vpack.c.b16 %v894, %v890
    %v1187 = vpack.c.b16 %v895, %v891
    %v1188 = vpack.c.b16 %v896, %v892
    %v1189 = vpack.c.b16 %v897, %v893
    %v1190 = vpack.c.b16 %v902, %v898
    %v1191 = vpack.c.b16 %v903, %v899
    %v1192 = vpack.c.b16 %v904, %v900
    %v1193 = vpack.c.b16 %v905, %v901
    %v1194 = vpack.c.b16 %v910, %v906
    %v1195 = vpack.c.b16 %v911, %v907
    %v1196 = vpack.c.b16 %v912, %v908
    %v1197 = vpack.c.b16 %v913, %v909
    %v1198 = vpack.c.b16 %v918, %v914
    %v1199 = vpack.c.b16 %v919, %v915
    %v1200 = vpack.c.b16 %v920, %v916
    %v1201 = vpack.c.b16 %v921, %v917
    %v1202 = vpack.c.b16 %v926, %v922
    %v1203 = vpack.c.b16 %v927, %v923
    %v1204 = vpack.c.b16 %v928, %v924
    %v1205 = vpack.c.b16 %v929, %v925
    %v1206 = vpack.c.b16 %v934, %v930
    %v1207 = vpack.c.b16 %v935, %v931
    %v1208 = vpack.c.b16 %v936, %v932
    %v1209 = vpack.c.b16 %v937, %v933
    %v1210 = vpack.c.b16 %v942, %v938
    %v1211 = vpack.c.b16 %v943, %v939
    %v1212 = vpack.c.b16 %v944, %v940
    %v1213 = vpack.c.b16 %v945, %v941
    %v1214 = vpack.c.b16 %v950, %v946
    %v1215 = vpack.c.b16 %v951, %v947
    %v1216 = vpack.c.b16 %v952, %v948
    %v1217 = vpack.c.b16 %v953, %v949
    %v1218 = vpack.c.b16 %v958, %v954
    %v1219 = vpack.c.b16 %v959, %v955
    %v1220 = vpack.c.b16 %v960, %v956
    %v1221 = vpack.c.b16 %v961, %v957
    %v1222 = vpack.c.b16 %v966, %v962
    %v1223 = vpack.c.b16 %v967, %v963
    %v1224 = vpack.c.b16 %v968, %v964
    %v1225 = vpack.c.b16 %v969, %v965
    %v1226 = vpack.c.b16 %v974, %v970
    %v1227 = vpack.c.b16 %v975, %v971
    %v1228 = vpack.c.b16 %v976, %v972
    %v1229 = vpack.c.b16 %v977, %v973
    %v1230 = vpack.c.b16 %v982, %v978
    %v1231 = vpack.c.b16 %v983, %v979
    %v1232 = vpack.c.b16 %v984, %v980
    %v1233 = vpack.c.b16 %v985, %v981
    %v1234 = vpack.c.b16 %v990, %v986
    %v1235 = vpack.c.b16 %v991, %v987
    %v1236 = vpack.c.b16 %v992, %v988
    %v1237 = vpack.c.b16 %v993, %v989
    %v1238 = vpack.c.b16 %v998, %v994
    %v1239 = vpack.c.b16 %v999, %v995
    %v1240 = vpack.c.b16 %v1000, %v996
    %v1241 = vpack.c.b16 %v1001, %v997
    %v1242 = vpack.c.b16 %v1006, %v1002
    %v1243 = vpack.c.b16 %v1007, %v1003
    %v1244 = vpack.c.b16 %v1008, %v1004
    %v1245 = vpack.c.b16 %v1009, %v1005
    %v1246 = vpack.c.b16 %v1014, %v1010
    %v1247 = vpack.c.b16 %v1015, %v1011
    %v1248 = vpack.c.b16 %v1016, %v1012
    %v1249 = vpack.c.b16 %v1017, %v1013
    %v1250 = vpack.c.b16 %v1022, %v1018
    %v1251 = vpack.c.b16 %v1023, %v1019
    %v1252 = vpack.c.b16 %v1024, %v1020
    %v1253 = vpack.c.b16 %v1025, %v1021
    %v1254 = vpack.c.b16 %v1030, %v1026
    %v1255 = vpack.c.b16 %v1031, %v1027
    %v1256 = vpack.c.b16 %v1032, %v1028
    %v1257 = vpack.c.b16 %v1033, %v1029
    %1482 = vmatpush.bf16.msra.mxu0 %v1062
    %1483 = vmatpush.bf16.msra.mxu0 %v1058
    %1484 = vmatpush.bf16.msra.mxu0 %v1054
    %1485 = vmatpush.bf16.msra.mxu0 %v1050
    %1486 = vmatpush.bf16.msra.mxu0 %v1046
    %1487 = vmatpush.bf16.msra.mxu0 %v1042
    %1488 = vmatpush.bf16.msra.mxu0 %v1038
    %1489 = vmatpush.bf16.msra.mxu0 %v1034
    %1490 = vmatmul.bf16.gmra.mxu0 %v334
    %v1491 = vpop.f32.mrf.mxu0
    %v1492 = vadd.f32 %v282, %v1491
    %v1493 = vpop.f32.mrf.mxu0
    %v1494 = vadd.f32 %v282, %v1493
    %1495 = vmatmul.bf16.gmra.mxu0 %v341
    %v1496 = vpop.f32.mrf.mxu0
    %v1497 = vadd.f32 %v282, %v1496
    %v1498 = vpop.f32.mrf.mxu0
    %v1499 = vadd.f32 %v282, %v1498
    %1500 = vdwg.mxu0
    %1501 = vmatpush.bf16.msra.mxu0 %v1094
    %1502 = vmatpush.bf16.msra.mxu0 %v1090
    %1503 = vmatpush.bf16.msra.mxu0 %v1086
    %1504 = vmatpush.bf16.msra.mxu0 %v1082
    %1505 = vmatpush.bf16.msra.mxu0 %v1078
    %1506 = vmatpush.bf16.msra.mxu0 %v1074
    %1507 = vmatpush.bf16.msra.mxu0 %v1070
    %1508 = vmatpush.bf16.msra.mxu0 %v1066
    %1509 = vmatmul.bf16.gmra.mxu0 %v335
    %v1510 = vpop.f32.mrf.mxu0
    %v1511 = vadd.f32 %v1492, %v1510
    %v1512 = vpop.f32.mrf.mxu0
    %v1513 = vadd.f32 %v1494, %v1512
    %1514 = vmatmul.bf16.gmra.mxu0 %v342
    %v1515 = vpop.f32.mrf.mxu0
    %v1516 = vadd.f32 %v1497, %v1515
    %v1517 = vpop.f32.mrf.mxu0
    %v1518 = vadd.f32 %v1499, %v1517
    %1519 = vdwg.mxu0
    %1520 = vmatpush.bf16.msra.mxu0 %v1126
    %1521 = vmatpush.bf16.msra.mxu0 %v1122
    %1522 = vmatpush.bf16.msra.mxu0 %v1118
    %1523 = vmatpush.bf16.msra.mxu0 %v1114
    %1524 = vmatpush.bf16.msra.mxu0 %v1110
    %1525 = vmatpush.bf16.msra.mxu0 %v1106
    %1526 = vmatpush.bf16.msra.mxu0 %v1102
    %1527 = vmatpush.bf16.msra.mxu0 %v1098
    %1528 = vmatmul.bf16.gmra.mxu0 %v336
    %v1529 = vpop.f32.mrf.mxu0
    %v1530 = vadd.f32 %v1511, %v1529
    %v1531 = vpop.f32.mrf.mxu0
    %v1532 = vadd.f32 %v1513, %v1531
    %1533 = vmatmul.bf16.gmra.mxu0 %v343
    %v1534 = vpop.f32.mrf.mxu0
    %v1535 = vadd.f32 %v1516, %v1534
    %v1536 = vpop.f32.mrf.mxu0
    %v1537 = vadd.f32 %v1518, %v1536
    %1538 = vdwg.mxu0
    %1539 = vmatpush.bf16.msra.mxu0 %v1158
    %1540 = vmatpush.bf16.msra.mxu0 %v1154
    %1541 = vmatpush.bf16.msra.mxu0 %v1150
    %1542 = vmatpush.bf16.msra.mxu0 %v1146
    %1543 = vmatpush.bf16.msra.mxu0 %v1142
    %1544 = vmatpush.bf16.msra.mxu0 %v1138
    %1545 = vmatpush.bf16.msra.mxu0 %v1134
    %1546 = vmatpush.bf16.msra.mxu0 %v1130
    %1547 = vmatmul.bf16.gmra.mxu0 %v337
    %v1548 = vpop.f32.mrf.mxu0
    %v1549 = vadd.f32 %v1530, %v1548
    %v1550 = vpop.f32.mrf.mxu0
    %v1551 = vadd.f32 %v1532, %v1550
    %1552 = vmatmul.bf16.gmra.mxu0 %v344
    %v1553 = vpop.f32.mrf.mxu0
    %v1554 = vadd.f32 %v1535, %v1553
    %v1555 = vpop.f32.mrf.mxu0
    %v1556 = vadd.f32 %v1537, %v1555
    %1557 = vdwg.mxu0
    %1558 = vmatpush.bf16.msra.mxu0 %v1190
    %1559 = vmatpush.bf16.msra.mxu0 %v1186
    %1560 = vmatpush.bf16.msra.mxu0 %v1182
    %1561 = vmatpush.bf16.msra.mxu0 %v1178
    %1562 = vmatpush.bf16.msra.mxu0 %v1174
    %1563 = vmatpush.bf16.msra.mxu0 %v1170
    %1564 = vmatpush.bf16.msra.mxu0 %v1166
    %1565 = vmatpush.bf16.msra.mxu0 %v1162
    %1566 = vmatmul.bf16.gmra.mxu0 %v338
    %v1567 = vpop.f32.mrf.mxu0
    %v1568 = vadd.f32 %v1549, %v1567
    %v1569 = vpop.f32.mrf.mxu0
    %v1570 = vadd.f32 %v1551, %v1569
    %1571 = vmatmul.bf16.gmra.mxu0 %v345
    %v1572 = vpop.f32.mrf.mxu0
    %v1573 = vadd.f32 %v1554, %v1572
    %v1574 = vpop.f32.mrf.mxu0
    %v1575 = vadd.f32 %v1556, %v1574
    %1576 = vdwg.mxu0
    %1577 = vmatpush.bf16.msra.mxu0 %v1222
    %1578 = vmatpush.bf16.msra.mxu0 %v1218
    %1579 = vmatpush.bf16.msra.mxu0 %v1214
    %1580 = vmatpush.bf16.msra.mxu0 %v1210
    %1581 = vmatpush.bf16.msra.mxu0 %v1206
    %1582 = vmatpush.bf16.msra.mxu0 %v1202
    %1583 = vmatpush.bf16.msra.mxu0 %v1198
    %1584 = vmatpush.bf16.msra.mxu0 %v1194
    %1585 = vmatmul.bf16.gmra.mxu0 %v339
    %v1586 = vpop.f32.mrf.mxu0
    %v1587 = vadd.f32 %v1568, %v1586
    %v1588 = vpop.f32.mrf.mxu0
    %v1589 = vadd.f32 %v1570, %v1588
    %1590 = vmatmul.bf16.gmra.mxu0 %v346
    %v1591 = vpop.f32.mrf.mxu0
    %v1592 = vadd.f32 %v1573, %v1591
    %v1593 = vpop.f32.mrf.mxu0
    %v1594 = vadd.f32 %v1575, %v1593
    %1595 = vdwg.mxu0
    %1596 = vmatpush.bf16.msra.mxu0 %v1254
    %1597 = vmatpush.bf16.msra.mxu0 %v1250
    %1598 = vmatpush.bf16.msra.mxu0 %v1246
    %1599 = vmatpush.bf16.msra.mxu0 %v1242
    %1600 = vmatpush.bf16.msra.mxu0 %v1238
    %1601 = vmatpush.bf16.msra.mxu0 %v1234
    %1602 = vmatpush.bf16.msra.mxu0 %v1230
    %1603 = vmatpush.bf16.msra.mxu0 %v1226
    %1604 = vmatmul.bf16.gmra.mxu0 %v340
    %v1605 = vpop.f32.mrf.mxu0
    %v1606 = vadd.f32 %v1587, %v1605
    %v1607 = vpop.f32.mrf.mxu0
    %v1608 = vadd.f32 %v1589, %v1607
    %1609 = vmatmul.bf16.gmra.mxu0 %v347
    %v1610 = vpop.f32.mrf.mxu0
    %v1611 = vadd.f32 %v1592, %v1610
    %v1612 = vpop.f32.mrf.mxu0
    %v1613 = vadd.f32 %v1594, %v1612
    %1614 = vdwg.mxu0
    %1615 = vmatpush.bf16.msra.mxu0 %v1063
    %1616 = vmatpush.bf16.msra.mxu0 %v1059
    %1617 = vmatpush.bf16.msra.mxu0 %v1055
    %1618 = vmatpush.bf16.msra.mxu0 %v1051
    %1619 = vmatpush.bf16.msra.mxu0 %v1047
    %1620 = vmatpush.bf16.msra.mxu0 %v1043
    %1621 = vmatpush.bf16.msra.mxu0 %v1039
    %1622 = vmatpush.bf16.msra.mxu0 %v1035
    %1623 = vmatmul.bf16.gmra.mxu0 %v334
    %v1624 = vpop.f32.mrf.mxu0
    %v1625 = vadd.f32 %v283, %v1624
    %v1626 = vpop.f32.mrf.mxu0
    %v1627 = vadd.f32 %v283, %v1626
    %1628 = vmatmul.bf16.gmra.mxu0 %v341
    %v1629 = vpop.f32.mrf.mxu0
    %v1630 = vadd.f32 %v283, %v1629
    %v1631 = vpop.f32.mrf.mxu0
    %v1632 = vadd.f32 %v283, %v1631
    %1633 = vdwg.mxu0
    %1634 = vmatpush.bf16.msra.mxu0 %v1095
    %1635 = vmatpush.bf16.msra.mxu0 %v1091
    %1636 = vmatpush.bf16.msra.mxu0 %v1087
    %1637 = vmatpush.bf16.msra.mxu0 %v1083
    %1638 = vmatpush.bf16.msra.mxu0 %v1079
    %1639 = vmatpush.bf16.msra.mxu0 %v1075
    %1640 = vmatpush.bf16.msra.mxu0 %v1071
    %1641 = vmatpush.bf16.msra.mxu0 %v1067
    %1642 = vmatmul.bf16.gmra.mxu0 %v335
    %v1643 = vpop.f32.mrf.mxu0
    %v1644 = vadd.f32 %v1625, %v1643
    %v1645 = vpop.f32.mrf.mxu0
    %v1646 = vadd.f32 %v1627, %v1645
    %1647 = vmatmul.bf16.gmra.mxu0 %v342
    %v1648 = vpop.f32.mrf.mxu0
    %v1649 = vadd.f32 %v1630, %v1648
    %v1650 = vpop.f32.mrf.mxu0
    %v1651 = vadd.f32 %v1632, %v1650
    %1652 = vdwg.mxu0
    %1653 = vmatpush.bf16.msra.mxu0 %v1127
    %1654 = vmatpush.bf16.msra.mxu0 %v1123
    %1655 = vmatpush.bf16.msra.mxu0 %v1119
    %1656 = vmatpush.bf16.msra.mxu0 %v1115
    %1657 = vmatpush.bf16.msra.mxu0 %v1111
    %1658 = vmatpush.bf16.msra.mxu0 %v1107
    %1659 = vmatpush.bf16.msra.mxu0 %v1103
    %1660 = vmatpush.bf16.msra.mxu0 %v1099
    %1661 = vmatmul.bf16.gmra.mxu0 %v336
    %v1662 = vpop.f32.mrf.mxu0
    %v1663 = vadd.f32 %v1644, %v1662
    %v1664 = vpop.f32.mrf.mxu0
    %v1665 = vadd.f32 %v1646, %v1664
    %1666 = vmatmul.bf16.gmra.mxu0 %v343
    %v1667 = vpop.f32.mrf.mxu0
    %v1668 = vadd.f32 %v1649, %v1667
    %v1669 = vpop.f32.mrf.mxu0
    %v1670 = vadd.f32 %v1651, %v1669
    %1671 = vdwg.mxu0
    %1672 = vmatpush.bf16.msra.mxu0 %v1159
    %1673 = vmatpush.bf16.msra.mxu0 %v1155
    %1674 = vmatpush.bf16.msra.mxu0 %v1151
    %1675 = vmatpush.bf16.msra.mxu0 %v1147
    %1676 = vmatpush.bf16.msra.mxu0 %v1143
    %1677 = vmatpush.bf16.msra.mxu0 %v1139
    %1678 = vmatpush.bf16.msra.mxu0 %v1135
    %1679 = vmatpush.bf16.msra.mxu0 %v1131
    %1680 = vmatmul.bf16.gmra.mxu0 %v337
    %v1681 = vpop.f32.mrf.mxu0
    %v1682 = vadd.f32 %v1663, %v1681
    %v1683 = vpop.f32.mrf.mxu0
    %v1684 = vadd.f32 %v1665, %v1683
    %1685 = vmatmul.bf16.gmra.mxu0 %v344
    %v1686 = vpop.f32.mrf.mxu0
    %v1687 = vadd.f32 %v1668, %v1686
    %v1688 = vpop.f32.mrf.mxu0
    %v1689 = vadd.f32 %v1670, %v1688
    %1690 = vdwg.mxu0
    %1691 = vmatpush.bf16.msra.mxu0 %v1191
    %1692 = vmatpush.bf16.msra.mxu0 %v1187
    %1693 = vmatpush.bf16.msra.mxu0 %v1183
    %1694 = vmatpush.bf16.msra.mxu0 %v1179
    %1695 = vmatpush.bf16.msra.mxu0 %v1175
    %1696 = vmatpush.bf16.msra.mxu0 %v1171
    %1697 = vmatpush.bf16.msra.mxu0 %v1167
    %1698 = vmatpush.bf16.msra.mxu0 %v1163
    %1699 = vmatmul.bf16.gmra.mxu0 %v338
    %v1700 = vpop.f32.mrf.mxu0
    %v1701 = vadd.f32 %v1682, %v1700
    %v1702 = vpop.f32.mrf.mxu0
    %v1703 = vadd.f32 %v1684, %v1702
    %1704 = vmatmul.bf16.gmra.mxu0 %v345
    %v1705 = vpop.f32.mrf.mxu0
    %v1706 = vadd.f32 %v1687, %v1705
    %v1707 = vpop.f32.mrf.mxu0
    %v1708 = vadd.f32 %v1689, %v1707
    %1709 = vdwg.mxu0
    %1710 = vmatpush.bf16.msra.mxu0 %v1223
    %1711 = vmatpush.bf16.msra.mxu0 %v1219
    %1712 = vmatpush.bf16.msra.mxu0 %v1215
    %1713 = vmatpush.bf16.msra.mxu0 %v1211
    %1714 = vmatpush.bf16.msra.mxu0 %v1207
    %1715 = vmatpush.bf16.msra.mxu0 %v1203
    %1716 = vmatpush.bf16.msra.mxu0 %v1199
    %1717 = vmatpush.bf16.msra.mxu0 %v1195
    %1718 = vmatmul.bf16.gmra.mxu0 %v339
    %v1719 = vpop.f32.mrf.mxu0
    %v1720 = vadd.f32 %v1701, %v1719
    %v1721 = vpop.f32.mrf.mxu0
    %v1722 = vadd.f32 %v1703, %v1721
    %1723 = vmatmul.bf16.gmra.mxu0 %v346
    %v1724 = vpop.f32.mrf.mxu0
    %v1725 = vadd.f32 %v1706, %v1724
    %v1726 = vpop.f32.mrf.mxu0
    %v1727 = vadd.f32 %v1708, %v1726
    %1728 = vdwg.mxu0
    %1729 = vmatpush.bf16.msra.mxu0 %v1255
    %1730 = vmatpush.bf16.msra.mxu0 %v1251
    %1731 = vmatpush.bf16.msra.mxu0 %v1247
    %1732 = vmatpush.bf16.msra.mxu0 %v1243
    %1733 = vmatpush.bf16.msra.mxu0 %v1239
    %1734 = vmatpush.bf16.msra.mxu0 %v1235
    %1735 = vmatpush.bf16.msra.mxu0 %v1231
    %1736 = vmatpush.bf16.msra.mxu0 %v1227
    %1737 = vmatmul.bf16.gmra.mxu0 %v340
    %v1738 = vpop.f32.mrf.mxu0
    %v1739 = vadd.f32 %v1720, %v1738
    %v1740 = vpop.f32.mrf.mxu0
    %v1741 = vadd.f32 %v1722, %v1740
    %1742 = vmatmul.bf16.gmra.mxu0 %v347
    %v1743 = vpop.f32.mrf.mxu0
    %v1744 = vadd.f32 %v1725, %v1743
    %v1745 = vpop.f32.mrf.mxu0
    %v1746 = vadd.f32 %v1727, %v1745
    %1747 = vdwg.mxu0
    %1748 = vmatpush.bf16.msra.mxu0 %v1064
    %1749 = vmatpush.bf16.msra.mxu0 %v1060
    %1750 = vmatpush.bf16.msra.mxu0 %v1056
    %1751 = vmatpush.bf16.msra.mxu0 %v1052
    %1752 = vmatpush.bf16.msra.mxu0 %v1048
    %1753 = vmatpush.bf16.msra.mxu0 %v1044
    %1754 = vmatpush.bf16.msra.mxu0 %v1040
    %1755 = vmatpush.bf16.msra.mxu0 %v1036
    %1756 = vmatmul.bf16.gmra.mxu0 %v334
    %v1757 = vpop.f32.mrf.mxu0
    %v1758 = vadd.f32 %v284, %v1757
    %v1759 = vpop.f32.mrf.mxu0
    %v1760 = vadd.f32 %v284, %v1759
    %1761 = vmatmul.bf16.gmra.mxu0 %v341
    %v1762 = vpop.f32.mrf.mxu0
    %v1763 = vadd.f32 %v284, %v1762
    %v1764 = vpop.f32.mrf.mxu0
    %v1765 = vadd.f32 %v284, %v1764
    %1766 = vdwg.mxu0
    %1767 = vmatpush.bf16.msra.mxu0 %v1096
    %1768 = vmatpush.bf16.msra.mxu0 %v1092
    %1769 = vmatpush.bf16.msra.mxu0 %v1088
    %1770 = vmatpush.bf16.msra.mxu0 %v1084
    %1771 = vmatpush.bf16.msra.mxu0 %v1080
    %1772 = vmatpush.bf16.msra.mxu0 %v1076
    %1773 = vmatpush.bf16.msra.mxu0 %v1072
    %1774 = vmatpush.bf16.msra.mxu0 %v1068
    %1775 = vmatmul.bf16.gmra.mxu0 %v335
    %v1776 = vpop.f32.mrf.mxu0
    %v1777 = vadd.f32 %v1758, %v1776
    %v1778 = vpop.f32.mrf.mxu0
    %v1779 = vadd.f32 %v1760, %v1778
    %1780 = vmatmul.bf16.gmra.mxu0 %v342
    %v1781 = vpop.f32.mrf.mxu0
    %v1782 = vadd.f32 %v1763, %v1781
    %v1783 = vpop.f32.mrf.mxu0
    %v1784 = vadd.f32 %v1765, %v1783
    %1785 = vdwg.mxu0
    %1786 = vmatpush.bf16.msra.mxu0 %v1128
    %1787 = vmatpush.bf16.msra.mxu0 %v1124
    %1788 = vmatpush.bf16.msra.mxu0 %v1120
    %1789 = vmatpush.bf16.msra.mxu0 %v1116
    %1790 = vmatpush.bf16.msra.mxu0 %v1112
    %1791 = vmatpush.bf16.msra.mxu0 %v1108
    %1792 = vmatpush.bf16.msra.mxu0 %v1104
    %1793 = vmatpush.bf16.msra.mxu0 %v1100
    %1794 = vmatmul.bf16.gmra.mxu0 %v336
    %v1795 = vpop.f32.mrf.mxu0
    %v1796 = vadd.f32 %v1777, %v1795
    %v1797 = vpop.f32.mrf.mxu0
    %v1798 = vadd.f32 %v1779, %v1797
    %1799 = vmatmul.bf16.gmra.mxu0 %v343
    %v1800 = vpop.f32.mrf.mxu0
    %v1801 = vadd.f32 %v1782, %v1800
    %v1802 = vpop.f32.mrf.mxu0
    %v1803 = vadd.f32 %v1784, %v1802
    %1804 = vdwg.mxu0
    %1805 = vmatpush.bf16.msra.mxu0 %v1160
    %1806 = vmatpush.bf16.msra.mxu0 %v1156
    %1807 = vmatpush.bf16.msra.mxu0 %v1152
    %1808 = vmatpush.bf16.msra.mxu0 %v1148
    %1809 = vmatpush.bf16.msra.mxu0 %v1144
    %1810 = vmatpush.bf16.msra.mxu0 %v1140
    %1811 = vmatpush.bf16.msra.mxu0 %v1136
    %1812 = vmatpush.bf16.msra.mxu0 %v1132
    %1813 = vmatmul.bf16.gmra.mxu0 %v337
    %v1814 = vpop.f32.mrf.mxu0
    %v1815 = vadd.f32 %v1796, %v1814
    %v1816 = vpop.f32.mrf.mxu0
    %v1817 = vadd.f32 %v1798, %v1816
    %1818 = vmatmul.bf16.gmra.mxu0 %v344
    %v1819 = vpop.f32.mrf.mxu0
    %v1820 = vadd.f32 %v1801, %v1819
    %v1821 = vpop.f32.mrf.mxu0
    %v1822 = vadd.f32 %v1803, %v1821
    %1823 = vdwg.mxu0
    %1824 = vmatpush.bf16.msra.mxu0 %v1192
    %1825 = vmatpush.bf16.msra.mxu0 %v1188
    %1826 = vmatpush.bf16.msra.mxu0 %v1184
    %1827 = vmatpush.bf16.msra.mxu0 %v1180
    %1828 = vmatpush.bf16.msra.mxu0 %v1176
    %1829 = vmatpush.bf16.msra.mxu0 %v1172
    %1830 = vmatpush.bf16.msra.mxu0 %v1168
    %1831 = vmatpush.bf16.msra.mxu0 %v1164
    %1832 = vmatmul.bf16.gmra.mxu0 %v338
    %v1833 = vpop.f32.mrf.mxu0
    %v1834 = vadd.f32 %v1815, %v1833
    %v1835 = vpop.f32.mrf.mxu0
    %v1836 = vadd.f32 %v1817, %v1835
    %1837 = vmatmul.bf16.gmra.mxu0 %v345
    %v1838 = vpop.f32.mrf.mxu0
    %v1839 = vadd.f32 %v1820, %v1838
    %v1840 = vpop.f32.mrf.mxu0
    %v1841 = vadd.f32 %v1822, %v1840
    %1842 = vdwg.mxu0
    %1843 = vmatpush.bf16.msra.mxu0 %v1224
    %1844 = vmatpush.bf16.msra.mxu0 %v1220
    %1845 = vmatpush.bf16.msra.mxu0 %v1216
    %1846 = vmatpush.bf16.msra.mxu0 %v1212
    %1847 = vmatpush.bf16.msra.mxu0 %v1208
    %1848 = vmatpush.bf16.msra.mxu0 %v1204
    %1849 = vmatpush.bf16.msra.mxu0 %v1200
    %1850 = vmatpush.bf16.msra.mxu0 %v1196
    %1851 = vmatmul.bf16.gmra.mxu0 %v339
    %v1852 = vpop.f32.mrf.mxu0
    %v1853 = vadd.f32 %v1834, %v1852
    %v1854 = vpop.f32.mrf.mxu0
    %v1855 = vadd.f32 %v1836, %v1854
    %1856 = vmatmul.bf16.gmra.mxu0 %v346
    %v1857 = vpop.f32.mrf.mxu0
    %v1858 = vadd.f32 %v1839, %v1857
    %v1859 = vpop.f32.mrf.mxu0
    %v1860 = vadd.f32 %v1841, %v1859
    %1861 = vdwg.mxu0
    %1862 = vmatpush.bf16.msra.mxu0 %v1256
    %1863 = vmatpush.bf16.msra.mxu0 %v1252
    %1864 = vmatpush.bf16.msra.mxu0 %v1248
    %1865 = vmatpush.bf16.msra.mxu0 %v1244
    %1866 = vmatpush.bf16.msra.mxu0 %v1240
    %1867 = vmatpush.bf16.msra.mxu0 %v1236
    %1868 = vmatpush.bf16.msra.mxu0 %v1232
    %1869 = vmatpush.bf16.msra.mxu0 %v1228
    %1870 = vmatmul.bf16.gmra.mxu0 %v340
    %v1871 = vpop.f32.mrf.mxu0
    %v1872 = vadd.f32 %v1853, %v1871
    %v1873 = vpop.f32.mrf.mxu0
    %v1874 = vadd.f32 %v1855, %v1873
    %1875 = vmatmul.bf16.gmra.mxu0 %v347
    %v1876 = vpop.f32.mrf.mxu0
    %v1877 = vadd.f32 %v1858, %v1876
    %v1878 = vpop.f32.mrf.mxu0
    %v1879 = vadd.f32 %v1860, %v1878
    %1880 = vdwg.mxu0
    %1881 = vmatpush.bf16.msra.mxu0 %v1065
    %1882 = vmatpush.bf16.msra.mxu0 %v1061
    %1883 = vmatpush.bf16.msra.mxu0 %v1057
    %1884 = vmatpush.bf16.msra.mxu0 %v1053
    %1885 = vmatpush.bf16.msra.mxu0 %v1049
    %1886 = vmatpush.bf16.msra.mxu0 %v1045
    %1887 = vmatpush.bf16.msra.mxu0 %v1041
    %1888 = vmatpush.bf16.msra.mxu0 %v1037
    %1889 = vmatmul.bf16.gmra.mxu0 %v334
    %v1890 = vpop.f32.mrf.mxu0
    %v1891 = vadd.f32 %v285, %v1890
    %v1892 = vpop.f32.mrf.mxu0
    %v1893 = vadd.f32 %v285, %v1892
    %1894 = vmatmul.bf16.gmra.mxu0 %v341
    %v1895 = vpop.f32.mrf.mxu0
    %v1896 = vadd.f32 %v285, %v1895
    %v1897 = vpop.f32.mrf.mxu0
    %v1898 = vadd.f32 %v285, %v1897
    %1899 = vdwg.mxu0
    %1900 = vmatpush.bf16.msra.mxu0 %v1097
    %1901 = vmatpush.bf16.msra.mxu0 %v1093
    %1902 = vmatpush.bf16.msra.mxu0 %v1089
    %1903 = vmatpush.bf16.msra.mxu0 %v1085
    %1904 = vmatpush.bf16.msra.mxu0 %v1081
    %1905 = vmatpush.bf16.msra.mxu0 %v1077
    %1906 = vmatpush.bf16.msra.mxu0 %v1073
    %1907 = vmatpush.bf16.msra.mxu0 %v1069
    %1908 = vmatmul.bf16.gmra.mxu0 %v335
    %v1909 = vpop.f32.mrf.mxu0
    %v1910 = vadd.f32 %v1891, %v1909
    %v1911 = vpop.f32.mrf.mxu0
    %v1912 = vadd.f32 %v1893, %v1911
    %1913 = vmatmul.bf16.gmra.mxu0 %v342
    %v1914 = vpop.f32.mrf.mxu0
    %v1915 = vadd.f32 %v1896, %v1914
    %v1916 = vpop.f32.mrf.mxu0
    %v1917 = vadd.f32 %v1898, %v1916
    %1918 = vdwg.mxu0
    %1919 = vmatpush.bf16.msra.mxu0 %v1129
    %1920 = vmatpush.bf16.msra.mxu0 %v1125
    %1921 = vmatpush.bf16.msra.mxu0 %v1121
    %1922 = vmatpush.bf16.msra.mxu0 %v1117
    %1923 = vmatpush.bf16.msra.mxu0 %v1113
    %1924 = vmatpush.bf16.msra.mxu0 %v1109
    %1925 = vmatpush.bf16.msra.mxu0 %v1105
    %1926 = vmatpush.bf16.msra.mxu0 %v1101
    %1927 = vmatmul.bf16.gmra.mxu0 %v336
    %v1928 = vpop.f32.mrf.mxu0
    %v1929 = vadd.f32 %v1910, %v1928
    %v1930 = vpop.f32.mrf.mxu0
    %v1931 = vadd.f32 %v1912, %v1930
    %1932 = vmatmul.bf16.gmra.mxu0 %v343
    %v1933 = vpop.f32.mrf.mxu0
    %v1934 = vadd.f32 %v1915, %v1933
    %v1935 = vpop.f32.mrf.mxu0
    %v1936 = vadd.f32 %v1917, %v1935
    %1937 = vdwg.mxu0
    %1938 = vmatpush.bf16.msra.mxu0 %v1161
    %1939 = vmatpush.bf16.msra.mxu0 %v1157
    %1940 = vmatpush.bf16.msra.mxu0 %v1153
    %1941 = vmatpush.bf16.msra.mxu0 %v1149
    %1942 = vmatpush.bf16.msra.mxu0 %v1145
    %1943 = vmatpush.bf16.msra.mxu0 %v1141
    %1944 = vmatpush.bf16.msra.mxu0 %v1137
    %1945 = vmatpush.bf16.msra.mxu0 %v1133
    %1946 = vmatmul.bf16.gmra.mxu0 %v337
    %v1947 = vpop.f32.mrf.mxu0
    %v1948 = vadd.f32 %v1929, %v1947
    %v1949 = vpop.f32.mrf.mxu0
    %v1950 = vadd.f32 %v1931, %v1949
    %1951 = vmatmul.bf16.gmra.mxu0 %v344
    %v1952 = vpop.f32.mrf.mxu0
    %v1953 = vadd.f32 %v1934, %v1952
    %v1954 = vpop.f32.mrf.mxu0
    %v1955 = vadd.f32 %v1936, %v1954
    %1956 = vdwg.mxu0
    %1957 = vmatpush.bf16.msra.mxu0 %v1193
    %1958 = vmatpush.bf16.msra.mxu0 %v1189
    %1959 = vmatpush.bf16.msra.mxu0 %v1185
    %1960 = vmatpush.bf16.msra.mxu0 %v1181
    %1961 = vmatpush.bf16.msra.mxu0 %v1177
    %1962 = vmatpush.bf16.msra.mxu0 %v1173
    %1963 = vmatpush.bf16.msra.mxu0 %v1169
    %1964 = vmatpush.bf16.msra.mxu0 %v1165
    %1965 = vmatmul.bf16.gmra.mxu0 %v338
    %v1966 = vpop.f32.mrf.mxu0
    %v1967 = vadd.f32 %v1948, %v1966
    %v1968 = vpop.f32.mrf.mxu0
    %v1969 = vadd.f32 %v1950, %v1968
    %1970 = vmatmul.bf16.gmra.mxu0 %v345
    %v1971 = vpop.f32.mrf.mxu0
    %v1972 = vadd.f32 %v1953, %v1971
    %v1973 = vpop.f32.mrf.mxu0
    %v1974 = vadd.f32 %v1955, %v1973
    %1975 = vdwg.mxu0
    %1976 = vmatpush.bf16.msra.mxu0 %v1225
    %1977 = vmatpush.bf16.msra.mxu0 %v1221
    %1978 = vmatpush.bf16.msra.mxu0 %v1217
    %1979 = vmatpush.bf16.msra.mxu0 %v1213
    %1980 = vmatpush.bf16.msra.mxu0 %v1209
    %1981 = vmatpush.bf16.msra.mxu0 %v1205
    %1982 = vmatpush.bf16.msra.mxu0 %v1201
    %1983 = vmatpush.bf16.msra.mxu0 %v1197
    %1984 = vmatmul.bf16.gmra.mxu0 %v339
    %v1985 = vpop.f32.mrf.mxu0
    %v1986 = vadd.f32 %v1967, %v1985
    %v1987 = vpop.f32.mrf.mxu0
    %v1988 = vadd.f32 %v1969, %v1987
    %1989 = vmatmul.bf16.gmra.mxu0 %v346
    %v1990 = vpop.f32.mrf.mxu0
    %v1991 = vadd.f32 %v1972, %v1990
    %v1992 = vpop.f32.mrf.mxu0
    %v1993 = vadd.f32 %v1974, %v1992
    %1994 = vdwg.mxu0
    %1995 = vmatpush.bf16.msra.mxu0 %v1257
    %1996 = vmatpush.bf16.msra.mxu0 %v1253
    %1997 = vmatpush.bf16.msra.mxu0 %v1249
    %1998 = vmatpush.bf16.msra.mxu0 %v1245
    %1999 = vmatpush.bf16.msra.mxu0 %v1241
    %2000 = vmatpush.bf16.msra.mxu0 %v1237
    %2001 = vmatpush.bf16.msra.mxu0 %v1233
    %2002 = vmatpush.bf16.msra.mxu0 %v1229
    %2003 = vmatmul.bf16.gmra.mxu0 %v340
    %v2004 = vpop.f32.mrf.mxu0
    %v2005 = vadd.f32 %v1986, %v2004
    %v2006 = vpop.f32.mrf.mxu0
    %v2007 = vadd.f32 %v1988, %v2006
    %2008 = vmatmul.bf16.gmra.mxu0 %v347
    %v2009 = vpop.f32.mrf.mxu0
    %v2010 = vadd.f32 %v1991, %v2009
    %v2011 = vpop.f32.mrf.mxu0
    %v2012 = vadd.f32 %v1993, %v2011
    %2013 = vdwg.mxu0
    %v2014 = vmax.f32 %v1606, 0.0
    %v2015 = vmax.f32 %v1739, 0.0
    %v2016 = vmax.f32 %v1872, 0.0
    %v2017 = vmax.f32 %v2005, 0.0
    %v2018 = vmax.f32 %v1608, 0.0
    %v2019 = vmax.f32 %v1741, 0.0
    %v2020 = vmax.f32 %v1874, 0.0
    %v2021 = vmax.f32 %v2007, 0.0
    %v2022 = vmax.f32 %v1611, 0.0
    %v2023 = vmax.f32 %v1744, 0.0
    %v2024 = vmax.f32 %v1877, 0.0
    %v2025 = vmax.f32 %v2010, 0.0
    %v2026 = vmax.f32 %v1613, 0.0
    %v2027 = vmax.f32 %v1746, 0.0
    %v2028 = vmax.f32 %v1879, 0.0
    %v2029 = vmax.f32 %v2012, 0.0
    %v2030 = vpack.c.bf16 %v2018, %v2014
    %v2031 = vpack.c.bf16 %v2019, %v2015
    %v2032 = vpack.c.bf16 %v2020, %v2016
    %v2033 = vpack.c.bf16 %v2021, %v2017
    %v2034 = vpack.c.bf16 %v2026, %v2022
    %v2035 = vpack.c.bf16 %v2027, %v2023
    %v2036 = vpack.c.bf16 %v2028, %v2024
    %v2037 = vpack.c.bf16 %v2029, %v2025
    %v2038 = vld [vmem:[%s4] sm:$0xff]
    %v2039 = vld [vmem:[%s4 + $0x8] sm:$0xff]
    %v2040 = vld [vmem:[%s4 + $0x10] sm:$0xff]
    %v2041 = vld [vmem:[%s4 + $0x18] sm:$0xff]
    %v2042 = vld [vmem:[%s4 + $0x20] sm:$0xff]
    %v2043 = vld [vmem:[%s4 + $0x28] sm:$0xff]
    %v2044 = vld [vmem:[%s4 + $0x30] sm:$0xff]
    %v2045 = vld [vmem:[%s4 + $0x38] sm:$0xff]
    %v2046 = vld [vmem:[%s4 + $0x40] sm:$0xff]
    %v2047 = vld [vmem:[%s4 + $0x48] sm:$0xff]
    %v2048 = vld [vmem:[%s4 + $0x50] sm:$0xff]
    %v2049 = vld [vmem:[%s4 + $0x58] sm:$0xff]
    %v2050 = vld [vmem:[%s4 + $0x60] sm:$0xff]
    %v2051 = vld [vmem:[%s4 + $0x68] sm:$0xff]
    %v2052 = vld [vmem:[%s4 + $0x70] sm:$0xff]
    %v2053 = vld [vmem:[%s4 + $0x78] sm:$0xff]
    %v2054 = vld [vmem:[%s4 + $0x80] sm:$0xff]
    %v2055 = vld [vmem:[%s4 + $0x88] sm:$0xff]
    %v2056 = vld [vmem:[%s4 + $0x90] sm:$0xff]
    %v2057 = vld [vmem:[%s4 + $0x98] sm:$0xff]
    %v2058 = vld [vmem:[%s4 + $0xa0] sm:$0xff]
    %v2059 = vld [vmem:[%s4 + $0xa8] sm:$0xff]
    %v2060 = vld [vmem:[%s4 + $0xb0] sm:$0xff]
    %v2061 = vld [vmem:[%s4 + $0xb8] sm:$0xff]
    %v2062 = vld [vmem:[%s4 + $0xc0] sm:$0xff]
    %v2063 = vld [vmem:[%s4 + $0xc8] sm:$0xff]
    %v2064 = vld [vmem:[%s4 + $0xd0] sm:$0xff]
    %v2065 = vld [vmem:[%s4 + $0xd8] sm:$0xff]
    %v2066 = vld [vmem:[%s4 + $0xe0] sm:$0xff]
    %v2067 = vld [vmem:[%s4 + $0xe8] sm:$0xff]
    %v2068 = vld [vmem:[%s4 + $0xf0] sm:$0xff]
    %v2069 = vld [vmem:[%s4 + $0xf8] sm:$0xff]
    %v2070 = vld [vmem:[%s4 + $0x100] sm:$0xff]
    %v2071 = vld [vmem:[%s4 + $0x108] sm:$0xff]
    %v2072 = vld [vmem:[%s4 + $0x110] sm:$0xff]
    %v2073 = vld [vmem:[%s4 + $0x118] sm:$0xff]
    %v2074 = vld [vmem:[%s4 + $0x120] sm:$0xff]
    %v2075 = vld [vmem:[%s4 + $0x128] sm:$0xff]
    %v2076 = vld [vmem:[%s4 + $0x130] sm:$0xff]
    %v2077 = vld [vmem:[%s4 + $0x138] sm:$0xff]
    %v2078 = vld [vmem:[%s4 + $0x140] sm:$0xff]
    %v2079 = vld [vmem:[%s4 + $0x148] sm:$0xff]
    %v2080 = vld [vmem:[%s4 + $0x150] sm:$0xff]
    %v2081 = vld [vmem:[%s4 + $0x158] sm:$0xff]
    %v2082 = vld [vmem:[%s4 + $0x160] sm:$0xff]
    %v2083 = vld [vmem:[%s4 + $0x168] sm:$0xff]
    %v2084 = vld [vmem:[%s4 + $0x170] sm:$0xff]
    %v2085 = vld [vmem:[%s4 + $0x178] sm:$0xff]
    %v2086 = vld [vmem:[%s4 + $0x180] sm:$0xff]
    %v2087 = vld [vmem:[%s4 + $0x188] sm:$0xff]
    %v2088 = vld [vmem:[%s4 + $0x190] sm:$0xff]
    %v2089 = vld [vmem:[%s4 + $0x198] sm:$0xff]
    %v2090 = vld [vmem:[%s4 + $0x1a0] sm:$0xff]
    %v2091 = vld [vmem:[%s4 + $0x1a8] sm:$0xff]
    %v2092 = vld [vmem:[%s4 + $0x1b0] sm:$0xff]
    %v2093 = vld [vmem:[%s4 + $0x1b8] sm:$0xff]
    %v2094 = vld [vmem:[%s4 + $0x1c0] sm:$0xff]
    %v2095 = vld [vmem:[%s4 + $0x1c8] sm:$0xff]
    %v2096 = vld [vmem:[%s4 + $0x1d0] sm:$0xff]
    %v2097 = vld [vmem:[%s4 + $0x1d8] sm:$0xff]
    %v2098 = vld [vmem:[%s4 + $0x1e0] sm:$0xff]
    %v2099 = vld [vmem:[%s4 + $0x1e8] sm:$0xff]
    %v2100 = vld [vmem:[%s4 + $0x1f0] sm:$0xff]
    %v2101 = vld [vmem:[%s4 + $0x1f8] sm:$0xff]
    %v2102 = vld [vmem:[%s4 + $0x200] sm:$0xff]
    %v2103 = vld [vmem:[%s4 + $0x208] sm:$0xff]
    %v2104 = vld [vmem:[%s4 + $0x210] sm:$0xff]
    %v2105 = vld [vmem:[%s4 + $0x218] sm:$0xff]
    %v2106 = vld [vmem:[%s4 + $0x220] sm:$0xff]
    %v2107 = vld [vmem:[%s4 + $0x228] sm:$0xff]
    %v2108 = vld [vmem:[%s4 + $0x230] sm:$0xff]
    %v2109 = vld [vmem:[%s4 + $0x238] sm:$0xff]
    %v2110 = vld [vmem:[%s4 + $0x240] sm:$0xff]
    %v2111 = vld [vmem:[%s4 + $0x248] sm:$0xff]
    %v2112 = vld [vmem:[%s4 + $0x250] sm:$0xff]
    %v2113 = vld [vmem:[%s4 + $0x258] sm:$0xff]
    %v2114 = vld [vmem:[%s4 + $0x260] sm:$0xff]
    %v2115 = vld [vmem:[%s4 + $0x268] sm:$0xff]
    %v2116 = vld [vmem:[%s4 + $0x270] sm:$0xff]
    %v2117 = vld [vmem:[%s4 + $0x278] sm:$0xff]
    %v2118 = vld [vmem:[%s4 + $0x280] sm:$0xff]
    %v2119 = vld [vmem:[%s4 + $0x288] sm:$0xff]
    %v2120 = vld [vmem:[%s4 + $0x290] sm:$0xff]
    %v2121 = vld [vmem:[%s4 + $0x298] sm:$0xff]
    %v2122 = vld [vmem:[%s4 + $0x2a0] sm:$0xff]
    %v2123 = vld [vmem:[%s4 + $0x2a8] sm:$0xff]
    %v2124 = vld [vmem:[%s4 + $0x2b0] sm:$0xff]
    %v2125 = vld [vmem:[%s4 + $0x2b8] sm:$0xff]
    %v2126 = vld [vmem:[%s4 + $0x2c0] sm:$0xff]
    %v2127 = vld [vmem:[%s4 + $0x2c8] sm:$0xff]
    %v2128 = vld [vmem:[%s4 + $0x2d0] sm:$0xff]
    %v2129 = vld [vmem:[%s4 + $0x2d8] sm:$0xff]
    %v2130 = vld [vmem:[%s4 + $0x2e0] sm:$0xff]
    %v2131 = vld [vmem:[%s4 + $0x2e8] sm:$0xff]
    %v2132 = vld [vmem:[%s4 + $0x2f0] sm:$0xff]
    %v2133 = vld [vmem:[%s4 + $0x2f8] sm:$0xff]
    %v2134 = vld [vmem:[%s4 + $0x300] sm:$0xff]
    %v2135 = vld [vmem:[%s4 + $0x308] sm:$0xff]
    %v2136 = vld [vmem:[%s4 + $0x310] sm:$0xff]
    %v2137 = vld [vmem:[%s4 + $0x318] sm:$0xff]
    %v2138 = vld [vmem:[%s4 + $0x320] sm:$0xff]
    %v2139 = vld [vmem:[%s4 + $0x328] sm:$0xff]
    %v2140 = vld [vmem:[%s4 + $0x330] sm:$0xff]
    %v2141 = vld [vmem:[%s4 + $0x338] sm:$0xff]
    %v2142 = vld [vmem:[%s4 + $0x340] sm:$0xff]
    %v2143 = vld [vmem:[%s4 + $0x348] sm:$0xff]
    %v2144 = vld [vmem:[%s4 + $0x350] sm:$0xff]
    %v2145 = vld [vmem:[%s4 + $0x358] sm:$0xff]
    %v2146 = vld [vmem:[%s4 + $0x360] sm:$0xff]
    %v2147 = vld [vmem:[%s4 + $0x368] sm:$0xff]
    %v2148 = vld [vmem:[%s4 + $0x370] sm:$0xff]
    %v2149 = vld [vmem:[%s4 + $0x378] sm:$0xff]
    %v2150 = vld [vmem:[%s4 + $0x380] sm:$0xff]
    %v2151 = vld [vmem:[%s4 + $0x388] sm:$0xff]
    %v2152 = vld [vmem:[%s4 + $0x390] sm:$0xff]
    %v2153 = vld [vmem:[%s4 + $0x398] sm:$0xff]
    %v2154 = vld [vmem:[%s4 + $0x3a0] sm:$0xff]
    %v2155 = vld [vmem:[%s4 + $0x3a8] sm:$0xff]
    %v2156 = vld [vmem:[%s4 + $0x3b0] sm:$0xff]
    %v2157 = vld [vmem:[%s4 + $0x3b8] sm:$0xff]
    %v2158 = vld [vmem:[%s4 + $0x3c0] sm:$0xff]
    %v2159 = vld [vmem:[%s4 + $0x3c8] sm:$0xff]
    %v2160 = vld [vmem:[%s4 + $0x3d0] sm:$0xff]
    %v2161 = vld [vmem:[%s4 + $0x3d8] sm:$0xff]
    %v2162 = vld [vmem:[%s4 + $0x3e0] sm:$0xff]
    %v2163 = vld [vmem:[%s4 + $0x3e8] sm:$0xff]
    %v2164 = vld [vmem:[%s4 + $0x3f0] sm:$0xff]
    %v2165 = vld [vmem:[%s4 + $0x3f8] sm:$0xff]
    %v2166 = vld [vmem:[%s4 + $0x400] sm:$0xff]
    %v2167 = vld [vmem:[%s4 + $0x408] sm:$0xff]
    %v2168 = vld [vmem:[%s4 + $0x410] sm:$0xff]
    %v2169 = vld [vmem:[%s4 + $0x418] sm:$0xff]
    %v2170 = vld [vmem:[%s4 + $0x420] sm:$0xff]
    %v2171 = vld [vmem:[%s4 + $0x428] sm:$0xff]
    %v2172 = vld [vmem:[%s4 + $0x430] sm:$0xff]
    %v2173 = vld [vmem:[%s4 + $0x438] sm:$0xff]
    %v2174 = vld [vmem:[%s4 + $0x440] sm:$0xff]
    %v2175 = vld [vmem:[%s4 + $0x448] sm:$0xff]
    %v2176 = vld [vmem:[%s4 + $0x450] sm:$0xff]
    %v2177 = vld [vmem:[%s4 + $0x458] sm:$0xff]
    %v2178 = vld [vmem:[%s4 + $0x460] sm:$0xff]
    %v2179 = vld [vmem:[%s4 + $0x468] sm:$0xff]
    %v2180 = vld [vmem:[%s4 + $0x470] sm:$0xff]
    %v2181 = vld [vmem:[%s4 + $0x478] sm:$0xff]
    %v2182 = vld [vmem:[%s4 + $0x480] sm:$0xff]
    %v2183 = vld [vmem:[%s4 + $0x488] sm:$0xff]
    %v2184 = vld [vmem:[%s4 + $0x490] sm:$0xff]
    %v2185 = vld [vmem:[%s4 + $0x498] sm:$0xff]
    %v2186 = vld [vmem:[%s4 + $0x4a0] sm:$0xff]
    %v2187 = vld [vmem:[%s4 + $0x4a8] sm:$0xff]
    %v2188 = vld [vmem:[%s4 + $0x4b0] sm:$0xff]
    %v2189 = vld [vmem:[%s4 + $0x4b8] sm:$0xff]
    %v2190 = vld [vmem:[%s4 + $0x4c0] sm:$0xff]
    %v2191 = vld [vmem:[%s4 + $0x4c8] sm:$0xff]
    %v2192 = vld [vmem:[%s4 + $0x4d0] sm:$0xff]
    %v2193 = vld [vmem:[%s4 + $0x4d8] sm:$0xff]
    %v2194 = vld [vmem:[%s4 + $0x4e0] sm:$0xff]
    %v2195 = vld [vmem:[%s4 + $0x4e8] sm:$0xff]
    %v2196 = vld [vmem:[%s4 + $0x4f0] sm:$0xff]
    %v2197 = vld [vmem:[%s4 + $0x4f8] sm:$0xff]
    %v2198 = vld [vmem:[%s4 + $0x500] sm:$0xff]
    %v2199 = vld [vmem:[%s4 + $0x508] sm:$0xff]
    %v2200 = vld [vmem:[%s4 + $0x510] sm:$0xff]
    %v2201 = vld [vmem:[%s4 + $0x518] sm:$0xff]
    %v2202 = vld [vmem:[%s4 + $0x520] sm:$0xff]
    %v2203 = vld [vmem:[%s4 + $0x528] sm:$0xff]
    %v2204 = vld [vmem:[%s4 + $0x530] sm:$0xff]
    %v2205 = vld [vmem:[%s4 + $0x538] sm:$0xff]
    %v2206 = vld [vmem:[%s4 + $0x540] sm:$0xff]
    %v2207 = vld [vmem:[%s4 + $0x548] sm:$0xff]
    %v2208 = vld [vmem:[%s4 + $0x550] sm:$0xff]
    %v2209 = vld [vmem:[%s4 + $0x558] sm:$0xff]
    %v2210 = vld [vmem:[%s4 + $0x560] sm:$0xff]
    %v2211 = vld [vmem:[%s4 + $0x568] sm:$0xff]
    %v2212 = vld [vmem:[%s4 + $0x570] sm:$0xff]
    %v2213 = vld [vmem:[%s4 + $0x578] sm:$0xff]
    %v2214 = vld [vmem:[%s4 + $0x580] sm:$0xff]
    %v2215 = vld [vmem:[%s4 + $0x588] sm:$0xff]
    %v2216 = vld [vmem:[%s4 + $0x590] sm:$0xff]
    %v2217 = vld [vmem:[%s4 + $0x598] sm:$0xff]
    %v2218 = vld [vmem:[%s4 + $0x5a0] sm:$0xff]
    %v2219 = vld [vmem:[%s4 + $0x5a8] sm:$0xff]
    %v2220 = vld [vmem:[%s4 + $0x5b0] sm:$0xff]
    %v2221 = vld [vmem:[%s4 + $0x5b8] sm:$0xff]
    %v2222 = vld [vmem:[%s4 + $0x5c0] sm:$0xff]
    %v2223 = vld [vmem:[%s4 + $0x5c8] sm:$0xff]
    %v2224 = vld [vmem:[%s4 + $0x5d0] sm:$0xff]
    %v2225 = vld [vmem:[%s4 + $0x5d8] sm:$0xff]
    %v2226 = vld [vmem:[%s4 + $0x5e0] sm:$0xff]
    %v2227 = vld [vmem:[%s4 + $0x5e8] sm:$0xff]
    %v2228 = vld [vmem:[%s4 + $0x5f0] sm:$0xff]
    %v2229 = vld [vmem:[%s4 + $0x5f8] sm:$0xff]
    %v2230 = vld [vmem:[%s5] sm:$0x3f]
    %v2232 = vperm.slane %v2230, 0
    %v2233 = vperm.slane %v2230, 1
    %v2234 = vperm.slane %v2230, 2
    %v2235 = vperm.slane %v2230, 3
    %v2236 = vperm.slane %v2230, 4
    %v2237 = vperm.slane %v2230, 5
    %v2436 = vunpack.c.l.b16 %v2038
    %v2437 = vunpack.c.h.b16 %v2038
    %v2438 = vunpack.c.l.b16 %v2039
    %v2439 = vunpack.c.h.b16 %v2039
    %v2440 = vunpack.c.l.b16 %v2040
    %v2441 = vunpack.c.h.b16 %v2040
    %v2442 = vunpack.c.l.b16 %v2041
    %v2443 = vunpack.c.h.b16 %v2041
    %v2444 = vunpack.c.l.b16 %v2042
    %v2445 = vunpack.c.h.b16 %v2042
    %v2446 = vunpack.c.l.b16 %v2043
    %v2447 = vunpack.c.h.b16 %v2043
    %v2448 = vunpack.c.l.b16 %v2044
    %v2449 = vunpack.c.h.b16 %v2044
    %v2450 = vunpack.c.l.b16 %v2045
    %v2451 = vunpack.c.h.b16 %v2045
    %v2452 = vunpack.c.l.b16 %v2046
    %v2453 = vunpack.c.h.b16 %v2046
    %v2454 = vunpack.c.l.b16 %v2047
    %v2455 = vunpack.c.h.b16 %v2047
    %v2456 = vunpack.c.l.b16 %v2048
    %v2457 = vunpack.c.h.b16 %v2048
    %v2458 = vunpack.c.l.b16 %v2049
    %v2459 = vunpack.c.h.b16 %v2049
    %v2460 = vunpack.c.l.b16 %v2050
    %v2461 = vunpack.c.h.b16 %v2050
    %v2462 = vunpack.c.l.b16 %v2051
    %v2463 = vunpack.c.h.b16 %v2051
    %v2464 = vunpack.c.l.b16 %v2052
    %v2465 = vunpack.c.h.b16 %v2052
    %v2466 = vunpack.c.l.b16 %v2053
    %v2467 = vunpack.c.h.b16 %v2053
    %v2468 = vunpack.c.l.b16 %v2054
    %v2469 = vunpack.c.h.b16 %v2054
    %v2470 = vunpack.c.l.b16 %v2055
    %v2471 = vunpack.c.h.b16 %v2055
    %v2472 = vunpack.c.l.b16 %v2056
    %v2473 = vunpack.c.h.b16 %v2056
    %v2474 = vunpack.c.l.b16 %v2057
    %v2475 = vunpack.c.h.b16 %v2057
    %v2476 = vunpack.c.l.b16 %v2058
    %v2477 = vunpack.c.h.b16 %v2058
    %v2478 = vunpack.c.l.b16 %v2059
    %v2479 = vunpack.c.h.b16 %v2059
    %v2480 = vunpack.c.l.b16 %v2060
    %v2481 = vunpack.c.h.b16 %v2060
    %v2482 = vunpack.c.l.b16 %v2061
    %v2483 = vunpack.c.h.b16 %v2061
    %v2484 = vunpack.c.l.b16 %v2062
    %v2485 = vunpack.c.h.b16 %v2062
    %v2486 = vunpack.c.l.b16 %v2063
    %v2487 = vunpack.c.h.b16 %v2063
    %v2488 = vunpack.c.l.b16 %v2064
    %v2489 = vunpack.c.h.b16 %v2064
    %v2490 = vunpack.c.l.b16 %v2065
    %v2491 = vunpack.c.h.b16 %v2065
    %v2492 = vunpack.c.l.b16 %v2066
    %v2493 = vunpack.c.h.b16 %v2066
    %v2494 = vunpack.c.l.b16 %v2067
    %v2495 = vunpack.c.h.b16 %v2067
    %v2496 = vunpack.c.l.b16 %v2068
    %v2497 = vunpack.c.h.b16 %v2068
    %v2498 = vunpack.c.l.b16 %v2069
    %v2499 = vunpack.c.h.b16 %v2069
    %v2500 = vunpack.c.l.b16 %v2070
    %v2501 = vunpack.c.h.b16 %v2070
    %v2502 = vunpack.c.l.b16 %v2071
    %v2503 = vunpack.c.h.b16 %v2071
    %v2504 = vunpack.c.l.b16 %v2072
    %v2505 = vunpack.c.h.b16 %v2072
    %v2506 = vunpack.c.l.b16 %v2073
    %v2507 = vunpack.c.h.b16 %v2073
    %v2508 = vunpack.c.l.b16 %v2074
    %v2509 = vunpack.c.h.b16 %v2074
    %v2510 = vunpack.c.l.b16 %v2075
    %v2511 = vunpack.c.h.b16 %v2075
    %v2512 = vunpack.c.l.b16 %v2076
    %v2513 = vunpack.c.h.b16 %v2076
    %v2514 = vunpack.c.l.b16 %v2077
    %v2515 = vunpack.c.h.b16 %v2077
    %v2516 = vunpack.c.l.b16 %v2078
    %v2517 = vunpack.c.h.b16 %v2078
    %v2518 = vunpack.c.l.b16 %v2079
    %v2519 = vunpack.c.h.b16 %v2079
    %v2520 = vunpack.c.l.b16 %v2080
    %v2521 = vunpack.c.h.b16 %v2080
    %v2522 = vunpack.c.l.b16 %v2081
    %v2523 = vunpack.c.h.b16 %v2081
    %v2524 = vunpack.c.l.b16 %v2082
    %v2525 = vunpack.c.h.b16 %v2082
    %v2526 = vunpack.c.l.b16 %v2083
    %v2527 = vunpack.c.h.b16 %v2083
    %v2528 = vunpack.c.l.b16 %v2084
    %v2529 = vunpack.c.h.b16 %v2084
    %v2530 = vunpack.c.l.b16 %v2085
    %v2531 = vunpack.c.h.b16 %v2085
    %v2532 = vunpack.c.l.b16 %v2086
    %v2533 = vunpack.c.h.b16 %v2086
    %v2534 = vunpack.c.l.b16 %v2087
    %v2535 = vunpack.c.h.b16 %v2087
    %v2536 = vunpack.c.l.b16 %v2088
    %v2537 = vunpack.c.h.b16 %v2088
    %v2538 = vunpack.c.l.b16 %v2089
    %v2539 = vunpack.c.h.b16 %v2089
    %v2540 = vunpack.c.l.b16 %v2090
    %v2541 = vunpack.c.h.b16 %v2090
    %v2542 = vunpack.c.l.b16 %v2091
    %v2543 = vunpack.c.h.b16 %v2091
    %v2544 = vunpack.c.l.b16 %v2092
    %v2545 = vunpack.c.h.b16 %v2092
    %v2546 = vunpack.c.l.b16 %v2093
    %v2547 = vunpack.c.h.b16 %v2093
    %v2548 = vunpack.c.l.b16 %v2094
    %v2549 = vunpack.c.h.b16 %v2094
    %v2550 = vunpack.c.l.b16 %v2095
    %v2551 = vunpack.c.h.b16 %v2095
    %v2552 = vunpack.c.l.b16 %v2096
    %v2553 = vunpack.c.h.b16 %v2096
    %v2554 = vunpack.c.l.b16 %v2097
    %v2555 = vunpack.c.h.b16 %v2097
    %v2556 = vunpack.c.l.b16 %v2098
    %v2557 = vunpack.c.h.b16 %v2098
    %v2558 = vunpack.c.l.b16 %v2099
    %v2559 = vunpack.c.h.b16 %v2099
    %v2560 = vunpack.c.l.b16 %v2100
    %v2561 = vunpack.c.h.b16 %v2100
    %v2562 = vunpack.c.l.b16 %v2101
    %v2563 = vunpack.c.h.b16 %v2101
    %v2564 = vunpack.c.l.b16 %v2102
    %v2565 = vunpack.c.h.b16 %v2102
    %v2566 = vunpack.c.l.b16 %v2103
    %v2567 = vunpack.c.h.b16 %v2103
    %v2568 = vunpack.c.l.b16 %v2104
    %v2569 = vunpack.c.h.b16 %v2104
    %v2570 = vunpack.c.l.b16 %v2105
    %v2571 = vunpack.c.h.b16 %v2105
    %v2572 = vunpack.c.l.b16 %v2106
    %v2573 = vunpack.c.h.b16 %v2106
    %v2574 = vunpack.c.l.b16 %v2107
    %v2575 = vunpack.c.h.b16 %v2107
    %v2576 = vunpack.c.l.b16 %v2108
    %v2577 = vunpack.c.h.b16 %v2108
    %v2578 = vunpack.c.l.b16 %v2109
    %v2579 = vunpack.c.h.b16 %v2109
    %v2580 = vunpack.c.l.b16 %v2110
    %v2581 = vunpack.c.h.b16 %v2110
    %v2582 = vunpack.c.l.b16 %v2111
    %v2583 = vunpack.c.h.b16 %v2111
    %v2584 = vunpack.c.l.b16 %v2112
    %v2585 = vunpack.c.h.b16 %v2112
    %v2586 = vunpack.c.l.b16 %v2113
    %v2587 = vunpack.c.h.b16 %v2113
    %v2588 = vunpack.c.l.b16 %v2114
    %v2589 = vunpack.c.h.b16 %v2114
    %v2590 = vunpack.c.l.b16 %v2115
    %v2591 = vunpack.c.h.b16 %v2115
    %v2592 = vunpack.c.l.b16 %v2116
    %v2593 = vunpack.c.h.b16 %v2116
    %v2594 = vunpack.c.l.b16 %v2117
    %v2595 = vunpack.c.h.b16 %v2117
    %v2596 = vunpack.c.l.b16 %v2118
    %v2597 = vunpack.c.h.b16 %v2118
    %v2598 = vunpack.c.l.b16 %v2119
    %v2599 = vunpack.c.h.b16 %v2119
    %v2600 = vunpack.c.l.b16 %v2120
    %v2601 = vunpack.c.h.b16 %v2120
    %v2602 = vunpack.c.l.b16 %v2121
    %v2603 = vunpack.c.h.b16 %v2121
    %v2604 = vunpack.c.l.b16 %v2122
    %v2605 = vunpack.c.h.b16 %v2122
    %v2606 = vunpack.c.l.b16 %v2123
    %v2607 = vunpack.c.h.b16 %v2123
    %v2608 = vunpack.c.l.b16 %v2124
    %v2609 = vunpack.c.h.b16 %v2124
    %v2610 = vunpack.c.l.b16 %v2125
    %v2611 = vunpack.c.h.b16 %v2125
    %v2612 = vunpack.c.l.b16 %v2126
    %v2613 = vunpack.c.h.b16 %v2126
    %v2614 = vunpack.c.l.b16 %v2127
    %v2615 = vunpack.c.h.b16 %v2127
    %v2616 = vunpack.c.l.b16 %v2128
    %v2617 = vunpack.c.h.b16 %v2128
    %v2618 = vunpack.c.l.b16 %v2129
    %v2619 = vunpack.c.h.b16 %v2129
    %v2620 = vunpack.c.l.b16 %v2130
    %v2621 = vunpack.c.h.b16 %v2130
    %v2622 = vunpack.c.l.b16 %v2131
    %v2623 = vunpack.c.h.b16 %v2131
    %v2624 = vunpack.c.l.b16 %v2132
    %v2625 = vunpack.c.h.b16 %v2132
    %v2626 = vunpack.c.l.b16 %v2133
    %v2627 = vunpack.c.h.b16 %v2133
    %v2628 = vunpack.c.l.b16 %v2134
    %v2629 = vunpack.c.h.b16 %v2134
    %v2630 = vunpack.c.l.b16 %v2135
    %v2631 = vunpack.c.h.b16 %v2135
    %v2632 = vunpack.c.l.b16 %v2136
    %v2633 = vunpack.c.h.b16 %v2136
    %v2634 = vunpack.c.l.b16 %v2137
    %v2635 = vunpack.c.h.b16 %v2137
    %v2636 = vunpack.c.l.b16 %v2138
    %v2637 = vunpack.c.h.b16 %v2138
    %v2638 = vunpack.c.l.b16 %v2139
    %v2639 = vunpack.c.h.b16 %v2139
    %v2640 = vunpack.c.l.b16 %v2140
    %v2641 = vunpack.c.h.b16 %v2140
    %v2642 = vunpack.c.l.b16 %v2141
    %v2643 = vunpack.c.h.b16 %v2141
    %v2644 = vunpack.c.l.b16 %v2142
    %v2645 = vunpack.c.h.b16 %v2142
    %v2646 = vunpack.c.l.b16 %v2143
    %v2647 = vunpack.c.h.b16 %v2143
    %v2648 = vunpack.c.l.b16 %v2144
    %v2649 = vunpack.c.h.b16 %v2144
    %v2650 = vunpack.c.l.b16 %v2145
    %v2651 = vunpack.c.h.b16 %v2145
    %v2652 = vunpack.c.l.b16 %v2146
    %v2653 = vunpack.c.h.b16 %v2146
    %v2654 = vunpack.c.l.b16 %v2147
    %v2655 = vunpack.c.h.b16 %v2147
    %v2656 = vunpack.c.l.b16 %v2148
    %v2657 = vunpack.c.h.b16 %v2148
    %v2658 = vunpack.c.l.b16 %v2149
    %v2659 = vunpack.c.h.b16 %v2149
    %v2660 = vunpack.c.l.b16 %v2150
    %v2661 = vunpack.c.h.b16 %v2150
    %v2662 = vunpack.c.l.b16 %v2151
    %v2663 = vunpack.c.h.b16 %v2151
    %v2664 = vunpack.c.l.b16 %v2152
    %v2665 = vunpack.c.h.b16 %v2152
    %v2666 = vunpack.c.l.b16 %v2153
    %v2667 = vunpack.c.h.b16 %v2153
    %v2668 = vunpack.c.l.b16 %v2154
    %v2669 = vunpack.c.h.b16 %v2154
    %v2670 = vunpack.c.l.b16 %v2155
    %v2671 = vunpack.c.h.b16 %v2155
    %v2672 = vunpack.c.l.b16 %v2156
    %v2673 = vunpack.c.h.b16 %v2156
    %v2674 = vunpack.c.l.b16 %v2157
    %v2675 = vunpack.c.h.b16 %v2157
    %v2676 = vunpack.c.l.b16 %v2158
    %v2677 = vunpack.c.h.b16 %v2158
    %v2678 = vunpack.c.l.b16 %v2159
    %v2679 = vunpack.c.h.b16 %v2159
    %v2680 = vunpack.c.l.b16 %v2160
    %v2681 = vunpack.c.h.b16 %v2160
    %v2682 = vunpack.c.l.b16 %v2161
    %v2683 = vunpack.c.h.b16 %v2161
    %v2684 = vunpack.c.l.b16 %v2162
    %v2685 = vunpack.c.h.b16 %v2162
    %v2686 = vunpack.c.l.b16 %v2163
    %v2687 = vunpack.c.h.b16 %v2163
    %v2688 = vunpack.c.l.b16 %v2164
    %v2689 = vunpack.c.h.b16 %v2164
    %v2690 = vunpack.c.l.b16 %v2165
    %v2691 = vunpack.c.h.b16 %v2165
    %v2692 = vunpack.c.l.b16 %v2166
    %v2693 = vunpack.c.h.b16 %v2166
    %v2694 = vunpack.c.l.b16 %v2167
    %v2695 = vunpack.c.h.b16 %v2167
    %v2696 = vunpack.c.l.b16 %v2168
    %v2697 = vunpack.c.h.b16 %v2168
    %v2698 = vunpack.c.l.b16 %v2169
    %v2699 = vunpack.c.h.b16 %v2169
    %v2700 = vunpack.c.l.b16 %v2170
    %v2701 = vunpack.c.h.b16 %v2170
    %v2702 = vunpack.c.l.b16 %v2171
    %v2703 = vunpack.c.h.b16 %v2171
    %v2704 = vunpack.c.l.b16 %v2172
    %v2705 = vunpack.c.h.b16 %v2172
    %v2706 = vunpack.c.l.b16 %v2173
    %v2707 = vunpack.c.h.b16 %v2173
    %v2708 = vunpack.c.l.b16 %v2174
    %v2709 = vunpack.c.h.b16 %v2174
    %v2710 = vunpack.c.l.b16 %v2175
    %v2711 = vunpack.c.h.b16 %v2175
    %v2712 = vunpack.c.l.b16 %v2176
    %v2713 = vunpack.c.h.b16 %v2176
    %v2714 = vunpack.c.l.b16 %v2177
    %v2715 = vunpack.c.h.b16 %v2177
    %v2716 = vunpack.c.l.b16 %v2178
    %v2717 = vunpack.c.h.b16 %v2178
    %v2718 = vunpack.c.l.b16 %v2179
    %v2719 = vunpack.c.h.b16 %v2179
    %v2720 = vunpack.c.l.b16 %v2180
    %v2721 = vunpack.c.h.b16 %v2180
    %v2722 = vunpack.c.l.b16 %v2181
    %v2723 = vunpack.c.h.b16 %v2181
    %v2724 = vunpack.c.l.b16 %v2182
    %v2725 = vunpack.c.h.b16 %v2182
    %v2726 = vunpack.c.l.b16 %v2183
    %v2727 = vunpack.c.h.b16 %v2183
    %v2728 = vunpack.c.l.b16 %v2184
    %v2729 = vunpack.c.h.b16 %v2184
    %v2730 = vunpack.c.l.b16 %v2185
    %v2731 = vunpack.c.h.b16 %v2185
    %v2732 = vunpack.c.l.b16 %v2186
    %v2733 = vunpack.c.h.b16 %v2186
    %v2734 = vunpack.c.l.b16 %v2187
    %v2735 = vunpack.c.h.b16 %v2187
    %v2736 = vunpack.c.l.b16 %v2188
    %v2737 = vunpack.c.h.b16 %v2188
    %v2738 = vunpack.c.l.b16 %v2189
    %v2739 = vunpack.c.h.b16 %v2189
    %v2740 = vunpack.c.l.b16 %v2190
    %v2741 = vunpack.c.h.b16 %v2190
    %v2742 = vunpack.c.l.b16 %v2191
    %v2743 = vunpack.c.h.b16 %v2191
    %v2744 = vunpack.c.l.b16 %v2192
    %v2745 = vunpack.c.h.b16 %v2192
    %v2746 = vunpack.c.l.b16 %v2193
    %v2747 = vunpack.c.h.b16 %v2193
    %v2748 = vunpack.c.l.b16 %v2194
    %v2749 = vunpack.c.h.b16 %v2194
    %v2750 = vunpack.c.l.b16 %v2195
    %v2751 = vunpack.c.h.b16 %v2195
    %v2752 = vunpack.c.l.b16 %v2196
    %v2753 = vunpack.c.h.b16 %v2196
    %v2754 = vunpack.c.l.b16 %v2197
    %v2755 = vunpack.c.h.b16 %v2197
    %v2756 = vunpack.c.l.b16 %v2198
    %v2757 = vunpack.c.h.b16 %v2198
    %v2758 = vunpack.c.l.b16 %v2199
    %v2759 = vunpack.c.h.b16 %v2199
    %v2760 = vunpack.c.l.b16 %v2200
    %v2761 = vunpack.c.h.b16 %v2200
    %v2762 = vunpack.c.l.b16 %v2201
    %v2763 = vunpack.c.h.b16 %v2201
    %v2764 = vunpack.c.l.b16 %v2202
    %v2765 = vunpack.c.h.b16 %v2202
    %v2766 = vunpack.c.l.b16 %v2203
    %v2767 = vunpack.c.h.b16 %v2203
    %v2768 = vunpack.c.l.b16 %v2204
    %v2769 = vunpack.c.h.b16 %v2204
    %v2770 = vunpack.c.l.b16 %v2205
    %v2771 = vunpack.c.h.b16 %v2205
    %v2772 = vunpack.c.l.b16 %v2206
    %v2773 = vunpack.c.h.b16 %v2206
    %v2774 = vunpack.c.l.b16 %v2207
    %v2775 = vunpack.c.h.b16 %v2207
    %v2776 = vunpack.c.l.b16 %v2208
    %v2777 = vunpack.c.h.b16 %v2208
    %v2778 = vunpack.c.l.b16 %v2209
    %v2779 = vunpack.c.h.b16 %v2209
    %v2780 = vunpack.c.l.b16 %v2210
    %v2781 = vunpack.c.h.b16 %v2210
    %v2782 = vunpack.c.l.b16 %v2211
    %v2783 = vunpack.c.h.b16 %v2211
    %v2784 = vunpack.c.l.b16 %v2212
    %v2785 = vunpack.c.h.b16 %v2212
    %v2786 = vunpack.c.l.b16 %v2213
    %v2787 = vunpack.c.h.b16 %v2213
    %v2788 = vunpack.c.l.b16 %v2214
    %v2789 = vunpack.c.h.b16 %v2214
    %v2790 = vunpack.c.l.b16 %v2215
    %v2791 = vunpack.c.h.b16 %v2215
    %v2792 = vunpack.c.l.b16 %v2216
    %v2793 = vunpack.c.h.b16 %v2216
    %v2794 = vunpack.c.l.b16 %v2217
    %v2795 = vunpack.c.h.b16 %v2217
    %v2796 = vunpack.c.l.b16 %v2218
    %v2797 = vunpack.c.h.b16 %v2218
    %v2798 = vunpack.c.l.b16 %v2219
    %v2799 = vunpack.c.h.b16 %v2219
    %v2800 = vunpack.c.l.b16 %v2220
    %v2801 = vunpack.c.h.b16 %v2220
    %v2802 = vunpack.c.l.b16 %v2221
    %v2803 = vunpack.c.h.b16 %v2221
    %v2804 = vunpack.c.l.b16 %v2222
    %v2805 = vunpack.c.h.b16 %v2222
    %v2806 = vunpack.c.l.b16 %v2223
    %v2807 = vunpack.c.h.b16 %v2223
    %v2808 = vunpack.c.l.b16 %v2224
    %v2809 = vunpack.c.h.b16 %v2224
    %v2810 = vunpack.c.l.b16 %v2225
    %v2811 = vunpack.c.h.b16 %v2225
    %v2812 = vunpack.c.l.b16 %v2226
    %v2813 = vunpack.c.h.b16 %v2226
    %v2814 = vunpack.c.l.b16 %v2227
    %v2815 = vunpack.c.h.b16 %v2227
    %v2816 = vunpack.c.l.b16 %v2228
    %v2817 = vunpack.c.h.b16 %v2228
    %v2818 = vunpack.c.l.b16 %v2229
    %v2819 = vunpack.c.h.b16 %v2229
    %v2820 = vpack.c.b16 %v2442, %v2436
    %v2821 = vpack.c.b16 %v2443, %v2437
    %v2822 = vpack.c.b16 %v2444, %v2438
    %v2823 = vpack.c.b16 %v2445, %v2439
    %v2824 = vpack.c.b16 %v2446, %v2440
    %v2825 = vpack.c.b16 %v2447, %v2441
    %v2826 = vpack.c.b16 %v2454, %v2448
    %v2827 = vpack.c.b16 %v2455, %v2449
    %v2828 = vpack.c.b16 %v2456, %v2450
    %v2829 = vpack.c.b16 %v2457, %v2451
    %v2830 = vpack.c.b16 %v2458, %v2452
    %v2831 = vpack.c.b16 %v2459, %v2453
    %v2832 = vpack.c.b16 %v2466, %v2460
    %v2833 = vpack.c.b16 %v2467, %v2461
    %v2834 = vpack.c.b16 %v2468, %v2462
    %v2835 = vpack.c.b16 %v2469, %v2463
    %v2836 = vpack.c.b16 %v2470, %v2464
    %v2837 = vpack.c.b16 %v2471, %v2465
    %v2838 = vpack.c.b16 %v2478, %v2472
    %v2839 = vpack.c.b16 %v2479, %v2473
    %v2840 = vpack.c.b16 %v2480, %v2474
    %v2841 = vpack.c.b16 %v2481, %v2475
    %v2842 = vpack.c.b16 %v2482, %v2476
    %v2843 = vpack.c.b16 %v2483, %v2477
    %v2844 = vpack.c.b16 %v2490, %v2484
    %v2845 = vpack.c.b16 %v2491, %v2485
    %v2846 = vpack.c.b16 %v2492, %v2486
    %v2847 = vpack.c.b16 %v2493, %v2487
    %v2848 = vpack.c.b16 %v2494, %v2488
    %v2849 = vpack.c.b16 %v2495, %v2489
    %v2850 = vpack.c.b16 %v2502, %v2496
    %v2851 = vpack.c.b16 %v2503, %v2497
    %v2852 = vpack.c.b16 %v2504, %v2498
    %v2853 = vpack.c.b16 %v2505, %v2499
    %v2854 = vpack.c.b16 %v2506, %v2500
    %v2855 = vpack.c.b16 %v2507, %v2501
    %v2856 = vpack.c.b16 %v2514, %v2508
    %v2857 = vpack.c.b16 %v2515, %v2509
    %v2858 = vpack.c.b16 %v2516, %v2510
    %v2859 = vpack.c.b16 %v2517, %v2511
    %v2860 = vpack.c.b16 %v2518, %v2512
    %v2861 = vpack.c.b16 %v2519, %v2513
    %v2862 = vpack.c.b16 %v2526, %v2520
    %v2863 = vpack.c.b16 %v2527, %v2521
    %v2864 = vpack.c.b16 %v2528, %v2522
    %v2865 = vpack.c.b16 %v2529, %v2523
    %v2866 = vpack.c.b16 %v2530, %v2524
    %v2867 = vpack.c.b16 %v2531, %v2525
    %v2868 = vpack.c.b16 %v2538, %v2532
    %v2869 = vpack.c.b16 %v2539, %v2533
    %v2870 = vpack.c.b16 %v2540, %v2534
    %v2871 = vpack.c.b16 %v2541, %v2535
    %v2872 = vpack.c.b16 %v2542, %v2536
    %v2873 = vpack.c.b16 %v2543, %v2537
    %v2874 = vpack.c.b16 %v2550, %v2544
    %v2875 = vpack.c.b16 %v2551, %v2545
    %v2876 = vpack.c.b16 %v2552, %v2546
    %v2877 = vpack.c.b16 %v2553, %v2547
    %v2878 = vpack.c.b16 %v2554, %v2548
    %v2879 = vpack.c.b16 %v2555, %v2549
    %v2880 = vpack.c.b16 %v2562, %v2556
    %v2881 = vpack.c.b16 %v2563, %v2557
    %v2882 = vpack.c.b16 %v2564, %v2558
    %v2883 = vpack.c.b16 %v2565, %v2559
    %v2884 = vpack.c.b16 %v2566, %v2560
    %v2885 = vpack.c.b16 %v2567, %v2561
    %v2886 = vpack.c.b16 %v2574, %v2568
    %v2887 = vpack.c.b16 %v2575, %v2569
    %v2888 = vpack.c.b16 %v2576, %v2570
    %v2889 = vpack.c.b16 %v2577, %v2571
    %v2890 = vpack.c.b16 %v2578, %v2572
    %v2891 = vpack.c.b16 %v2579, %v2573
    %v2892 = vpack.c.b16 %v2586, %v2580
    %v2893 = vpack.c.b16 %v2587, %v2581
    %v2894 = vpack.c.b16 %v2588, %v2582
    %v2895 = vpack.c.b16 %v2589, %v2583
    %v2896 = vpack.c.b16 %v2590, %v2584
    %v2897 = vpack.c.b16 %v2591, %v2585
    %v2898 = vpack.c.b16 %v2598, %v2592
    %v2899 = vpack.c.b16 %v2599, %v2593
    %v2900 = vpack.c.b16 %v2600, %v2594
    %v2901 = vpack.c.b16 %v2601, %v2595
    %v2902 = vpack.c.b16 %v2602, %v2596
    %v2903 = vpack.c.b16 %v2603, %v2597
    %v2904 = vpack.c.b16 %v2610, %v2604
    %v2905 = vpack.c.b16 %v2611, %v2605
    %v2906 = vpack.c.b16 %v2612, %v2606
    %v2907 = vpack.c.b16 %v2613, %v2607
    %v2908 = vpack.c.b16 %v2614, %v2608
    %v2909 = vpack.c.b16 %v2615, %v2609
    %v2910 = vpack.c.b16 %v2622, %v2616
    %v2911 = vpack.c.b16 %v2623, %v2617
    %v2912 = vpack.c.b16 %v2624, %v2618
    %v2913 = vpack.c.b16 %v2625, %v2619
    %v2914 = vpack.c.b16 %v2626, %v2620
    %v2915 = vpack.c.b16 %v2627, %v2621
    %v2916 = vpack.c.b16 %v2634, %v2628
    %v2917 = vpack.c.b16 %v2635, %v2629
    %v2918 = vpack.c.b16 %v2636, %v2630
    %v2919 = vpack.c.b16 %v2637, %v2631
    %v2920 = vpack.c.b16 %v2638, %v2632
    %v2921 = vpack.c.b16 %v2639, %v2633
    %v2922 = vpack.c.b16 %v2646, %v2640
    %v2923 = vpack.c.b16 %v2647, %v2641
    %v2924 = vpack.c.b16 %v2648, %v2642
    %v2925 = vpack.c.b16 %v2649, %v2643
    %v2926 = vpack.c.b16 %v2650, %v2644
    %v2927 = vpack.c.b16 %v2651, %v2645
    %v2928 = vpack.c.b16 %v2658, %v2652
    %v2929 = vpack.c.b16 %v2659, %v2653
    %v2930 = vpack.c.b16 %v2660, %v2654
    %v2931 = vpack.c.b16 %v2661, %v2655
    %v2932 = vpack.c.b16 %v2662, %v2656
    %v2933 = vpack.c.b16 %v2663, %v2657
    %v2934 = vpack.c.b16 %v2670, %v2664
    %v2935 = vpack.c.b16 %v2671, %v2665
    %v2936 = vpack.c.b16 %v2672, %v2666
    %v2937 = vpack.c.b16 %v2673, %v2667
    %v2938 = vpack.c.b16 %v2674, %v2668
    %v2939 = vpack.c.b16 %v2675, %v2669
    %v2940 = vpack.c.b16 %v2682, %v2676
    %v2941 = vpack.c.b16 %v2683, %v2677
    %v2942 = vpack.c.b16 %v2684, %v2678
    %v2943 = vpack.c.b16 %v2685, %v2679
    %v2944 = vpack.c.b16 %v2686, %v2680
    %v2945 = vpack.c.b16 %v2687, %v2681
    %v2946 = vpack.c.b16 %v2694, %v2688
    %v2947 = vpack.c.b16 %v2695, %v2689
    %v2948 = vpack.c.b16 %v2696, %v2690
    %v2949 = vpack.c.b16 %v2697, %v2691
    %v2950 = vpack.c.b16 %v2698, %v2692
    %v2951 = vpack.c.b16 %v2699, %v2693
    %v2952 = vpack.c.b16 %v2706, %v2700
    %v2953 = vpack.c.b16 %v2707, %v2701
    %v2954 = vpack.c.b16 %v2708, %v2702
    %v2955 = vpack.c.b16 %v2709, %v2703
    %v2956 = vpack.c.b16 %v2710, %v2704
    %v2957 = vpack.c.b16 %v2711, %v2705
    %v2958 = vpack.c.b16 %v2718, %v2712
    %v2959 = vpack.c.b16 %v2719, %v2713
    %v2960 = vpack.c.b16 %v2720, %v2714
    %v2961 = vpack.c.b16 %v2721, %v2715
    %v2962 = vpack.c.b16 %v2722, %v2716
    %v2963 = vpack.c.b16 %v2723, %v2717
    %v2964 = vpack.c.b16 %v2730, %v2724
    %v2965 = vpack.c.b16 %v2731, %v2725
    %v2966 = vpack.c.b16 %v2732, %v2726
    %v2967 = vpack.c.b16 %v2733, %v2727
    %v2968 = vpack.c.b16 %v2734, %v2728
    %v2969 = vpack.c.b16 %v2735, %v2729
    %v2970 = vpack.c.b16 %v2742, %v2736
    %v2971 = vpack.c.b16 %v2743, %v2737
    %v2972 = vpack.c.b16 %v2744, %v2738
    %v2973 = vpack.c.b16 %v2745, %v2739
    %v2974 = vpack.c.b16 %v2746, %v2740
    %v2975 = vpack.c.b16 %v2747, %v2741
    %v2976 = vpack.c.b16 %v2754, %v2748
    %v2977 = vpack.c.b16 %v2755, %v2749
    %v2978 = vpack.c.b16 %v2756, %v2750
    %v2979 = vpack.c.b16 %v2757, %v2751
    %v2980 = vpack.c.b16 %v2758, %v2752
    %v2981 = vpack.c.b16 %v2759, %v2753
    %v2982 = vpack.c.b16 %v2766, %v2760
    %v2983 = vpack.c.b16 %v2767, %v2761
    %v2984 = vpack.c.b16 %v2768, %v2762
    %v2985 = vpack.c.b16 %v2769, %v2763
    %v2986 = vpack.c.b16 %v2770, %v2764
    %v2987 = vpack.c.b16 %v2771, %v2765
    %v2988 = vpack.c.b16 %v2778, %v2772
    %v2989 = vpack.c.b16 %v2779, %v2773
    %v2990 = vpack.c.b16 %v2780, %v2774
    %v2991 = vpack.c.b16 %v2781, %v2775
    %v2992 = vpack.c.b16 %v2782, %v2776
    %v2993 = vpack.c.b16 %v2783, %v2777
    %v2994 = vpack.c.b16 %v2790, %v2784
    %v2995 = vpack.c.b16 %v2791, %v2785
    %v2996 = vpack.c.b16 %v2792, %v2786
    %v2997 = vpack.c.b16 %v2793, %v2787
    %v2998 = vpack.c.b16 %v2794, %v2788
    %v2999 = vpack.c.b16 %v2795, %v2789
    %v3000 = vpack.c.b16 %v2802, %v2796
    %v3001 = vpack.c.b16 %v2803, %v2797
    %v3002 = vpack.c.b16 %v2804, %v2798
    %v3003 = vpack.c.b16 %v2805, %v2799
    %v3004 = vpack.c.b16 %v2806, %v2800
    %v3005 = vpack.c.b16 %v2807, %v2801
    %v3006 = vpack.c.b16 %v2814, %v2808
    %v3007 = vpack.c.b16 %v2815, %v2809
    %v3008 = vpack.c.b16 %v2816, %v2810
    %v3009 = vpack.c.b16 %v2817, %v2811
    %v3010 = vpack.c.b16 %v2818, %v2812
    %v3011 = vpack.c.b16 %v2819, %v2813
    %3204 = vmatpush.bf16.msra.mxu0 %v2862
    %3205 = vmatpush.bf16.msra.mxu0 %v2856
    %3206 = vmatpush.bf16.msra.mxu0 %v2850
    %3207 = vmatpush.bf16.msra.mxu0 %v2844
    %3208 = vmatpush.bf16.msra.mxu0 %v2838
    %3209 = vmatpush.bf16.msra.mxu0 %v2832
    %3210 = vmatpush.bf16.msra.mxu0 %v2826
    %3211 = vmatpush.bf16.msra.mxu0 %v2820
    %3212 = vmatmul.bf16.gmra.mxu0 %v2030
    %v3213 = vpop.f32.mrf.mxu0
    %v3214 = vadd.f32 %v2232, %v3213
    %v3215 = vpop.f32.mrf.mxu0
    %v3216 = vadd.f32 %v2232, %v3215
    %3217 = vmatmul.bf16.gmra.mxu0 %v2034
    %v3218 = vpop.f32.mrf.mxu0
    %v3219 = vadd.f32 %v2232, %v3218
    %v3220 = vpop.f32.mrf.mxu0
    %v3221 = vadd.f32 %v2232, %v3220
    %3222 = vdwg.mxu0
    %3223 = vmatpush.bf16.msra.mxu0 %v2910
    %3224 = vmatpush.bf16.msra.mxu0 %v2904
    %3225 = vmatpush.bf16.msra.mxu0 %v2898
    %3226 = vmatpush.bf16.msra.mxu0 %v2892
    %3227 = vmatpush.bf16.msra.mxu0 %v2886
    %3228 = vmatpush.bf16.msra.mxu0 %v2880
    %3229 = vmatpush.bf16.msra.mxu0 %v2874
    %3230 = vmatpush.bf16.msra.mxu0 %v2868
    %3231 = vmatmul.bf16.gmra.mxu0 %v2031
    %v3232 = vpop.f32.mrf.mxu0
    %v3233 = vadd.f32 %v3214, %v3232
    %v3234 = vpop.f32.mrf.mxu0
    %v3235 = vadd.f32 %v3216, %v3234
    %3236 = vmatmul.bf16.gmra.mxu0 %v2035
    %v3237 = vpop.f32.mrf.mxu0
    %v3238 = vadd.f32 %v3219, %v3237
    %v3239 = vpop.f32.mrf.mxu0
    %v3240 = vadd.f32 %v3221, %v3239
    %3241 = vdwg.mxu0
    %3242 = vmatpush.bf16.msra.mxu0 %v2958
    %3243 = vmatpush.bf16.msra.mxu0 %v2952
    %3244 = vmatpush.bf16.msra.mxu0 %v2946
    %3245 = vmatpush.bf16.msra.mxu0 %v2940
    %3246 = vmatpush.bf16.msra.mxu0 %v2934
    %3247 = vmatpush.bf16.msra.mxu0 %v2928
    %3248 = vmatpush.bf16.msra.mxu0 %v2922
    %3249 = vmatpush.bf16.msra.mxu0 %v2916
    %3250 = vmatmul.bf16.gmra.mxu0 %v2032
    %v3251 = vpop.f32.mrf.mxu0
    %v3252 = vadd.f32 %v3233, %v3251
    %v3253 = vpop.f32.mrf.mxu0
    %v3254 = vadd.f32 %v3235, %v3253
    %3255 = vmatmul.bf16.gmra.mxu0 %v2036
    %v3256 = vpop.f32.mrf.mxu0
    %v3257 = vadd.f32 %v3238, %v3256
    %v3258 = vpop.f32.mrf.mxu0
    %v3259 = vadd.f32 %v3240, %v3258
    %3260 = vdwg.mxu0
    %3261 = vmatpush.bf16.msra.mxu0 %v3006
    %3262 = vmatpush.bf16.msra.mxu0 %v3000
    %3263 = vmatpush.bf16.msra.mxu0 %v2994
    %3264 = vmatpush.bf16.msra.mxu0 %v2988
    %3265 = vmatpush.bf16.msra.mxu0 %v2982
    %3266 = vmatpush.bf16.msra.mxu0 %v2976
    %3267 = vmatpush.bf16.msra.mxu0 %v2970
    %3268 = vmatpush.bf16.msra.mxu0 %v2964
    %3269 = vmatmul.bf16.gmra.mxu0 %v2033
    %v3270 = vpop.f32.mrf.mxu0
    %v3271 = vadd.f32 %v3252, %v3270
    %v3272 = vpop.f32.mrf.mxu0
    %v3273 = vadd.f32 %v3254, %v3272
    %3274 = vmatmul.bf16.gmra.mxu0 %v2037
    %v3275 = vpop.f32.mrf.mxu0
    %v3276 = vadd.f32 %v3257, %v3275
    %v3277 = vpop.f32.mrf.mxu0
    %v3278 = vadd.f32 %v3259, %v3277
    %3279 = vdwg.mxu0
    %3280 = vmatpush.bf16.msra.mxu0 %v2863
    %3281 = vmatpush.bf16.msra.mxu0 %v2857
    %3282 = vmatpush.bf16.msra.mxu0 %v2851
    %3283 = vmatpush.bf16.msra.mxu0 %v2845
    %3284 = vmatpush.bf16.msra.mxu0 %v2839
    %3285 = vmatpush.bf16.msra.mxu0 %v2833
    %3286 = vmatpush.bf16.msra.mxu0 %v2827
    %3287 = vmatpush.bf16.msra.mxu0 %v2821
    %3288 = vmatmul.bf16.gmra.mxu0 %v2030
    %v3289 = vpop.f32.mrf.mxu0
    %v3290 = vadd.f32 %v2233, %v3289
    %v3291 = vpop.f32.mrf.mxu0
    %v3292 = vadd.f32 %v2233, %v3291
    %3293 = vmatmul.bf16.gmra.mxu0 %v2034
    %v3294 = vpop.f32.mrf.mxu0
    %v3295 = vadd.f32 %v2233, %v3294
    %v3296 = vpop.f32.mrf.mxu0
    %v3297 = vadd.f32 %v2233, %v3296
    %3298 = vdwg.mxu0
    %3299 = vmatpush.bf16.msra.mxu0 %v2911
    %3300 = vmatpush.bf16.msra.mxu0 %v2905
    %3301 = vmatpush.bf16.msra.mxu0 %v2899
    %3302 = vmatpush.bf16.msra.mxu0 %v2893
    %3303 = vmatpush.bf16.msra.mxu0 %v2887
    %3304 = vmatpush.bf16.msra.mxu0 %v2881
    %3305 = vmatpush.bf16.msra.mxu0 %v2875
    %3306 = vmatpush.bf16.msra.mxu0 %v2869
    %3307 = vmatmul.bf16.gmra.mxu0 %v2031
    %v3308 = vpop.f32.mrf.mxu0
    %v3309 = vadd.f32 %v3290, %v3308
    %v3310 = vpop.f32.mrf.mxu0
    %v3311 = vadd.f32 %v3292, %v3310
    %3312 = vmatmul.bf16.gmra.mxu0 %v2035
    %v3313 = vpop.f32.mrf.mxu0
    %v3314 = vadd.f32 %v3295, %v3313
    %v3315 = vpop.f32.mrf.mxu0
    %v3316 = vadd.f32 %v3297, %v3315
    %3317 = vdwg.mxu0
    %3318 = vmatpush.bf16.msra.mxu0 %v2959
    %3319 = vmatpush.bf16.msra.mxu0 %v2953
    %3320 = vmatpush.bf16.msra.mxu0 %v2947
    %3321 = vmatpush.bf16.msra.mxu0 %v2941
    %3322 = vmatpush.bf16.msra.mxu0 %v2935
    %3323 = vmatpush.bf16.msra.mxu0 %v2929
    %3324 = vmatpush.bf16.msra.mxu0 %v2923
    %3325 = vmatpush.bf16.msra.mxu0 %v2917
    %3326 = vmatmul.bf16.gmra.mxu0 %v2032
    %v3327 = vpop.f32.mrf.mxu0
    %v3328 = vadd.f32 %v3309, %v3327
    %v3329 = vpop.f32.mrf.mxu0
    %v3330 = vadd.f32 %v3311, %v3329
    %3331 = vmatmul.bf16.gmra.mxu0 %v2036
    %v3332 = vpop.f32.mrf.mxu0
    %v3333 = vadd.f32 %v3314, %v3332
    %v3334 = vpop.f32.mrf.mxu0
    %v3335 = vadd.f32 %v3316, %v3334
    %3336 = vdwg.mxu0
    %3337 = vmatpush.bf16.msra.mxu0 %v3007
    %3338 = vmatpush.bf16.msra.mxu0 %v3001
    %3339 = vmatpush.bf16.msra.mxu0 %v2995
    %3340 = vmatpush.bf16.msra.mxu0 %v2989
    %3341 = vmatpush.bf16.msra.mxu0 %v2983
    %3342 = vmatpush.bf16.msra.mxu0 %v2977
    %3343 = vmatpush.bf16.msra.mxu0 %v2971
    %3344 = vmatpush.bf16.msra.mxu0 %v2965
    %3345 = vmatmul.bf16.gmra.mxu0 %v2033
    %v3346 = vpop.f32.mrf.mxu0
    %v3347 = vadd.f32 %v3328, %v3346
    %v3348 = vpop.f32.mrf.mxu0
    %v3349 = vadd.f32 %v3330, %v3348
    %3350 = vmatmul.bf16.gmra.mxu0 %v2037
    %v3351 = vpop.f32.mrf.mxu0
    %v3352 = vadd.f32 %v3333, %v3351
    %v3353 = vpop.f32.mrf.mxu0
    %v3354 = vadd.f32 %v3335, %v3353
    %3355 = vdwg.mxu0
    %3356 = vmatpush.bf16.msra.mxu0 %v2864
    %3357 = vmatpush.bf16.msra.mxu0 %v2858
    %3358 = vmatpush.bf16.msra.mxu0 %v2852
    %3359 = vmatpush.bf16.msra.mxu0 %v2846
    %3360 = vmatpush.bf16.msra.mxu0 %v2840
    %3361 = vmatpush.bf16.msra.mxu0 %v2834
    %3362 = vmatpush.bf16.msra.mxu0 %v2828
    %3363 = vmatpush.bf16.msra.mxu0 %v2822
    %3364 = vmatmul.bf16.gmra.mxu0 %v2030
    %v3365 = vpop.f32.mrf.mxu0
    %v3366 = vadd.f32 %v2234, %v3365
    %v3367 = vpop.f32.mrf.mxu0
    %v3368 = vadd.f32 %v2234, %v3367
    %3369 = vmatmul.bf16.gmra.mxu0 %v2034
    %v3370 = vpop.f32.mrf.mxu0
    %v3371 = vadd.f32 %v2234, %v3370
    %v3372 = vpop.f32.mrf.mxu0
    %v3373 = vadd.f32 %v2234, %v3372
    %3374 = vdwg.mxu0
    %3375 = vmatpush.bf16.msra.mxu0 %v2912
    %3376 = vmatpush.bf16.msra.mxu0 %v2906
    %3377 = vmatpush.bf16.msra.mxu0 %v2900
    %3378 = vmatpush.bf16.msra.mxu0 %v2894
    %3379 = vmatpush.bf16.msra.mxu0 %v2888
    %3380 = vmatpush.bf16.msra.mxu0 %v2882
    %3381 = vmatpush.bf16.msra.mxu0 %v2876
    %3382 = vmatpush.bf16.msra.mxu0 %v2870
    %3383 = vmatmul.bf16.gmra.mxu0 %v2031
    %v3384 = vpop.f32.mrf.mxu0
    %v3385 = vadd.f32 %v3366, %v3384
    %v3386 = vpop.f32.mrf.mxu0
    %v3387 = vadd.f32 %v3368, %v3386
    %3388 = vmatmul.bf16.gmra.mxu0 %v2035
    %v3389 = vpop.f32.mrf.mxu0
    %v3390 = vadd.f32 %v3371, %v3389
    %v3391 = vpop.f32.mrf.mxu0
    %v3392 = vadd.f32 %v3373, %v3391
    %3393 = vdwg.mxu0
    %3394 = vmatpush.bf16.msra.mxu0 %v2960
    %3395 = vmatpush.bf16.msra.mxu0 %v2954
    %3396 = vmatpush.bf16.msra.mxu0 %v2948
    %3397 = vmatpush.bf16.msra.mxu0 %v2942
    %3398 = vmatpush.bf16.msra.mxu0 %v2936
    %3399 = vmatpush.bf16.msra.mxu0 %v2930
    %3400 = vmatpush.bf16.msra.mxu0 %v2924
    %3401 = vmatpush.bf16.msra.mxu0 %v2918
    %3402 = vmatmul.bf16.gmra.mxu0 %v2032
    %v3403 = vpop.f32.mrf.mxu0
    %v3404 = vadd.f32 %v3385, %v3403
    %v3405 = vpop.f32.mrf.mxu0
    %v3406 = vadd.f32 %v3387, %v3405
    %3407 = vmatmul.bf16.gmra.mxu0 %v2036
    %v3408 = vpop.f32.mrf.mxu0
    %v3409 = vadd.f32 %v3390, %v3408
    %v3410 = vpop.f32.mrf.mxu0
    %v3411 = vadd.f32 %v3392, %v3410
    %3412 = vdwg.mxu0
    %3413 = vmatpush.bf16.msra.mxu0 %v3008
    %3414 = vmatpush.bf16.msra.mxu0 %v3002
    %3415 = vmatpush.bf16.msra.mxu0 %v2996
    %3416 = vmatpush.bf16.msra.mxu0 %v2990
    %3417 = vmatpush.bf16.msra.mxu0 %v2984
    %3418 = vmatpush.bf16.msra.mxu0 %v2978
    %3419 = vmatpush.bf16.msra.mxu0 %v2972
    %3420 = vmatpush.bf16.msra.mxu0 %v2966
    %3421 = vmatmul.bf16.gmra.mxu0 %v2033
    %v3422 = vpop.f32.mrf.mxu0
    %v3423 = vadd.f32 %v3404, %v3422
    %v3424 = vpop.f32.mrf.mxu0
    %v3425 = vadd.f32 %v3406, %v3424
    %3426 = vmatmul.bf16.gmra.mxu0 %v2037
    %v3427 = vpop.f32.mrf.mxu0
    %v3428 = vadd.f32 %v3409, %v3427
    %v3429 = vpop.f32.mrf.mxu0
    %v3430 = vadd.f32 %v3411, %v3429
    %3431 = vdwg.mxu0
    %3432 = vmatpush.bf16.msra.mxu0 %v2865
    %3433 = vmatpush.bf16.msra.mxu0 %v2859
    %3434 = vmatpush.bf16.msra.mxu0 %v2853
    %3435 = vmatpush.bf16.msra.mxu0 %v2847
    %3436 = vmatpush.bf16.msra.mxu0 %v2841
    %3437 = vmatpush.bf16.msra.mxu0 %v2835
    %3438 = vmatpush.bf16.msra.mxu0 %v2829
    %3439 = vmatpush.bf16.msra.mxu0 %v2823
    %3440 = vmatmul.bf16.gmra.mxu0 %v2030
    %v3441 = vpop.f32.mrf.mxu0
    %v3442 = vadd.f32 %v2235, %v3441
    %v3443 = vpop.f32.mrf.mxu0
    %v3444 = vadd.f32 %v2235, %v3443
    %3445 = vmatmul.bf16.gmra.mxu0 %v2034
    %v3446 = vpop.f32.mrf.mxu0
    %v3447 = vadd.f32 %v2235, %v3446
    %v3448 = vpop.f32.mrf.mxu0
    %v3449 = vadd.f32 %v2235, %v3448
    %3450 = vdwg.mxu0
    %3451 = vmatpush.bf16.msra.mxu0 %v2913
    %3452 = vmatpush.bf16.msra.mxu0 %v2907
    %3453 = vmatpush.bf16.msra.mxu0 %v2901
    %3454 = vmatpush.bf16.msra.mxu0 %v2895
    %3455 = vmatpush.bf16.msra.mxu0 %v2889
    %3456 = vmatpush.bf16.msra.mxu0 %v2883
    %3457 = vmatpush.bf16.msra.mxu0 %v2877
    %3458 = vmatpush.bf16.msra.mxu0 %v2871
    %3459 = vmatmul.bf16.gmra.mxu0 %v2031
    %v3460 = vpop.f32.mrf.mxu0
    %v3461 = vadd.f32 %v3442, %v3460
    %v3462 = vpop.f32.mrf.mxu0
    %v3463 = vadd.f32 %v3444, %v3462
    %3464 = vmatmul.bf16.gmra.mxu0 %v2035
    %v3465 = vpop.f32.mrf.mxu0
    %v3466 = vadd.f32 %v3447, %v3465
    %v3467 = vpop.f32.mrf.mxu0
    %v3468 = vadd.f32 %v3449, %v3467
    %3469 = vdwg.mxu0
    %3470 = vmatpush.bf16.msra.mxu0 %v2961
    %3471 = vmatpush.bf16.msra.mxu0 %v2955
    %3472 = vmatpush.bf16.msra.mxu0 %v2949
    %3473 = vmatpush.bf16.msra.mxu0 %v2943
    %3474 = vmatpush.bf16.msra.mxu0 %v2937
    %3475 = vmatpush.bf16.msra.mxu0 %v2931
    %3476 = vmatpush.bf16.msra.mxu0 %v2925
    %3477 = vmatpush.bf16.msra.mxu0 %v2919
    %3478 = vmatmul.bf16.gmra.mxu0 %v2032
    %v3479 = vpop.f32.mrf.mxu0
    %v3480 = vadd.f32 %v3461, %v3479
    %v3481 = vpop.f32.mrf.mxu0
    %v3482 = vadd.f32 %v3463, %v3481
    %3483 = vmatmul.bf16.gmra.mxu0 %v2036
    %v3484 = vpop.f32.mrf.mxu0
    %v3485 = vadd.f32 %v3466, %v3484
    %v3486 = vpop.f32.mrf.mxu0
    %v3487 = vadd.f32 %v3468, %v3486
    %3488 = vdwg.mxu0
    %3489 = vmatpush.bf16.msra.mxu0 %v3009
    %3490 = vmatpush.bf16.msra.mxu0 %v3003
    %3491 = vmatpush.bf16.msra.mxu0 %v2997
    %3492 = vmatpush.bf16.msra.mxu0 %v2991
    %3493 = vmatpush.bf16.msra.mxu0 %v2985
    %3494 = vmatpush.bf16.msra.mxu0 %v2979
    %3495 = vmatpush.bf16.msra.mxu0 %v2973
    %3496 = vmatpush.bf16.msra.mxu0 %v2967
    %3497 = vmatmul.bf16.gmra.mxu0 %v2033
    %v3498 = vpop.f32.mrf.mxu0
    %v3499 = vadd.f32 %v3480, %v3498
    %v3500 = vpop.f32.mrf.mxu0
    %v3501 = vadd.f32 %v3482, %v3500
    %3502 = vmatmul.bf16.gmra.mxu0 %v2037
    %v3503 = vpop.f32.mrf.mxu0
    %v3504 = vadd.f32 %v3485, %v3503
    %v3505 = vpop.f32.mrf.mxu0
    %v3506 = vadd.f32 %v3487, %v3505
    %3507 = vdwg.mxu0
    %3508 = vmatpush.bf16.msra.mxu0 %v2866
    %3509 = vmatpush.bf16.msra.mxu0 %v2860
    %3510 = vmatpush.bf16.msra.mxu0 %v2854
    %3511 = vmatpush.bf16.msra.mxu0 %v2848
    %3512 = vmatpush.bf16.msra.mxu0 %v2842
    %3513 = vmatpush.bf16.msra.mxu0 %v2836
    %3514 = vmatpush.bf16.msra.mxu0 %v2830
    %3515 = vmatpush.bf16.msra.mxu0 %v2824
    %3516 = vmatmul.bf16.gmra.mxu0 %v2030
    %v3517 = vpop.f32.mrf.mxu0
    %v3518 = vadd.f32 %v2236, %v3517
    %v3519 = vpop.f32.mrf.mxu0
    %v3520 = vadd.f32 %v2236, %v3519
    %3521 = vmatmul.bf16.gmra.mxu0 %v2034
    %v3522 = vpop.f32.mrf.mxu0
    %v3523 = vadd.f32 %v2236, %v3522
    %v3524 = vpop.f32.mrf.mxu0
    %v3525 = vadd.f32 %v2236, %v3524
    %3526 = vdwg.mxu0
    %3527 = vmatpush.bf16.msra.mxu0 %v2914
    %3528 = vmatpush.bf16.msra.mxu0 %v2908
    %3529 = vmatpush.bf16.msra.mxu0 %v2902
    %3530 = vmatpush.bf16.msra.mxu0 %v2896
    %3531 = vmatpush.bf16.msra.mxu0 %v2890
    %3532 = vmatpush.bf16.msra.mxu0 %v2884
    %3533 = vmatpush.bf16.msra.mxu0 %v2878
    %3534 = vmatpush.bf16.msra.mxu0 %v2872
    %3535 = vmatmul.bf16.gmra.mxu0 %v2031
    %v3536 = vpop.f32.mrf.mxu0
    %v3537 = vadd.f32 %v3518, %v3536
    %v3538 = vpop.f32.mrf.mxu0
    %v3539 = vadd.f32 %v3520, %v3538
    %3540 = vmatmul.bf16.gmra.mxu0 %v2035
    %v3541 = vpop.f32.mrf.mxu0
    %v3542 = vadd.f32 %v3523, %v3541
    %v3543 = vpop.f32.mrf.mxu0
    %v3544 = vadd.f32 %v3525, %v3543
    %3545 = vdwg.mxu0
    %3546 = vmatpush.bf16.msra.mxu0 %v2962
    %3547 = vmatpush.bf16.msra.mxu0 %v2956
    %3548 = vmatpush.bf16.msra.mxu0 %v2950
    %3549 = vmatpush.bf16.msra.mxu0 %v2944
    %3550 = vmatpush.bf16.msra.mxu0 %v2938
    %3551 = vmatpush.bf16.msra.mxu0 %v2932
    %3552 = vmatpush.bf16.msra.mxu0 %v2926
    %3553 = vmatpush.bf16.msra.mxu0 %v2920
    %3554 = vmatmul.bf16.gmra.mxu0 %v2032
    %v3555 = vpop.f32.mrf.mxu0
    %v3556 = vadd.f32 %v3537, %v3555
    %v3557 = vpop.f32.mrf.mxu0
    %v3558 = vadd.f32 %v3539, %v3557
    %3559 = vmatmul.bf16.gmra.mxu0 %v2036
    %v3560 = vpop.f32.mrf.mxu0
    %v3561 = vadd.f32 %v3542, %v3560
    %v3562 = vpop.f32.mrf.mxu0
    %v3563 = vadd.f32 %v3544, %v3562
    %3564 = vdwg.mxu0
    %3565 = vmatpush.bf16.msra.mxu0 %v3010
    %3566 = vmatpush.bf16.msra.mxu0 %v3004
    %3567 = vmatpush.bf16.msra.mxu0 %v2998
    %3568 = vmatpush.bf16.msra.mxu0 %v2992
    %3569 = vmatpush.bf16.msra.mxu0 %v2986
    %3570 = vmatpush.bf16.msra.mxu0 %v2980
    %3571 = vmatpush.bf16.msra.mxu0 %v2974
    %3572 = vmatpush.bf16.msra.mxu0 %v2968
    %3573 = vmatmul.bf16.gmra.mxu0 %v2033
    %v3574 = vpop.f32.mrf.mxu0
    %v3575 = vadd.f32 %v3556, %v3574
    %v3576 = vpop.f32.mrf.mxu0
    %v3577 = vadd.f32 %v3558, %v3576
    %3578 = vmatmul.bf16.gmra.mxu0 %v2037
    %v3579 = vpop.f32.mrf.mxu0
    %v3580 = vadd.f32 %v3561, %v3579
    %v3581 = vpop.f32.mrf.mxu0
    %v3582 = vadd.f32 %v3563, %v3581
    %3583 = vdwg.mxu0
    %3584 = vmatpush.bf16.msra.mxu0 %v2867
    %3585 = vmatpush.bf16.msra.mxu0 %v2861
    %3586 = vmatpush.bf16.msra.mxu0 %v2855
    %3587 = vmatpush.bf16.msra.mxu0 %v2849
    %3588 = vmatpush.bf16.msra.mxu0 %v2843
    %3589 = vmatpush.bf16.msra.mxu0 %v2837
    %3590 = vmatpush.bf16.msra.mxu0 %v2831
    %3591 = vmatpush.bf16.msra.mxu0 %v2825
    %3592 = vmatmul.bf16.gmra.mxu0 %v2030
    %v3593 = vpop.f32.mrf.mxu0
    %v3594 = vadd.f32 %v2237, %v3593
    %v3595 = vpop.f32.mrf.mxu0
    %v3596 = vadd.f32 %v2237, %v3595
    %3597 = vmatmul.bf16.gmra.mxu0 %v2034
    %v3598 = vpop.f32.mrf.mxu0
    %v3599 = vadd.f32 %v2237, %v3598
    %v3600 = vpop.f32.mrf.mxu0
    %v3601 = vadd.f32 %v2237, %v3600
    %3602 = vdwg.mxu0
    %3603 = vmatpush.bf16.msra.mxu0 %v2915
    %3604 = vmatpush.bf16.msra.mxu0 %v2909
    %3605 = vmatpush.bf16.msra.mxu0 %v2903
    %3606 = vmatpush.bf16.msra.mxu0 %v2897
    %3607 = vmatpush.bf16.msra.mxu0 %v2891
    %3608 = vmatpush.bf16.msra.mxu0 %v2885
    %3609 = vmatpush.bf16.msra.mxu0 %v2879
    %3610 = vmatpush.bf16.msra.mxu0 %v2873
    %3611 = vmatmul.bf16.gmra.mxu0 %v2031
    %v3612 = vpop.f32.mrf.mxu0
    %v3613 = vadd.f32 %v3594, %v3612
    %v3614 = vpop.f32.mrf.mxu0
    %v3615 = vadd.f32 %v3596, %v3614
    %3616 = vmatmul.bf16.gmra.mxu0 %v2035
    %v3617 = vpop.f32.mrf.mxu0
    %v3618 = vadd.f32 %v3599, %v3617
    %v3619 = vpop.f32.mrf.mxu0
    %v3620 = vadd.f32 %v3601, %v3619
    %3621 = vdwg.mxu0
    %3622 = vmatpush.bf16.msra.mxu0 %v2963
    %3623 = vmatpush.bf16.msra.mxu0 %v2957
    %3624 = vmatpush.bf16.msra.mxu0 %v2951
    %3625 = vmatpush.bf16.msra.mxu0 %v2945
    %3626 = vmatpush.bf16.msra.mxu0 %v2939
    %3627 = vmatpush.bf16.msra.mxu0 %v2933
    %3628 = vmatpush.bf16.msra.mxu0 %v2927
    %3629 = vmatpush.bf16.msra.mxu0 %v2921
    %3630 = vmatmul.bf16.gmra.mxu0 %v2032
    %v3631 = vpop.f32.mrf.mxu0
    %v3632 = vadd.f32 %v3613, %v3631
    %v3633 = vpop.f32.mrf.mxu0
    %v3634 = vadd.f32 %v3615, %v3633
    %3635 = vmatmul.bf16.gmra.mxu0 %v2036
    %v3636 = vpop.f32.mrf.mxu0
    %v3637 = vadd.f32 %v3618, %v3636
    %v3638 = vpop.f32.mrf.mxu0
    %v3639 = vadd.f32 %v3620, %v3638
    %3640 = vdwg.mxu0
    %3641 = vmatpush.bf16.msra.mxu0 %v3011
    %3642 = vmatpush.bf16.msra.mxu0 %v3005
    %3643 = vmatpush.bf16.msra.mxu0 %v2999
    %3644 = vmatpush.bf16.msra.mxu0 %v2993
    %3645 = vmatpush.bf16.msra.mxu0 %v2987
    %3646 = vmatpush.bf16.msra.mxu0 %v2981
    %3647 = vmatpush.bf16.msra.mxu0 %v2975
    %3648 = vmatpush.bf16.msra.mxu0 %v2969
    %3649 = vmatmul.bf16.gmra.mxu0 %v2033
    %v3650 = vpop.f32.mrf.mxu0
    %v3651 = vadd.f32 %v3632, %v3650
    %v3652 = vpop.f32.mrf.mxu0
    %v3653 = vadd.f32 %v3634, %v3652
    %3654 = vmatmul.bf16.gmra.mxu0 %v2037
    %v3655 = vpop.f32.mrf.mxu0
    %v3656 = vadd.f32 %v3637, %v3655
    %v3657 = vpop.f32.mrf.mxu0
    %v3658 = vadd.f32 %v3639, %v3657
    %3659 = vdwg.mxu0
    %v3660 = vld [vmem:[%s1] sm:$0xff]
    %v3661 = vld [vmem:[%s1 + $0x8] sm:$0xff]
    %v3662 = vld [vmem:[%s1 + $0x10] sm:$0xff]
    %v3663 = vld [vmem:[%s1 + $0x18] sm:$0xff]
    %v3664 = vld [vmem:[%s1 + $0x20] sm:$0xff]
    %v3665 = vld [vmem:[%s1 + $0x28] sm:$0xff]
    %v3666 = vld [vmem:[%s1 + $0x30] sm:$0xff]
    %v3667 = vld [vmem:[%s1 + $0x38] sm:$0xff]
    %v3668 = vld [vmem:[%s1 + $0x40] sm:$0xff]
    %v3669 = vld [vmem:[%s1 + $0x48] sm:$0xff]
    %v3670 = vld [vmem:[%s1 + $0x50] sm:$0xff]
    %v3671 = vld [vmem:[%s1 + $0x58] sm:$0xff]
    %v3672 = vmul.f32 %v3499, 0.5
    %v3673 = vmul.f32 %v3575, 0.5
    %v3674 = vmul.f32 %v3651, 0.5
    %v3675 = vmul.f32 %v3501, 0.5
    %v3676 = vmul.f32 %v3577, 0.5
    %v3677 = vmul.f32 %v3653, 0.5
    %v3678 = vmul.f32 %v3504, 0.5
    %v3679 = vmul.f32 %v3580, 0.5
    %v3680 = vmul.f32 %v3656, 0.5
    %v3681 = vmul.f32 %v3506, 0.5
    %v3682 = vmul.f32 %v3582, 0.5
    %v3683 = vmul.f32 %v3658, 0.5
    %v3684 = vmul.f32 %v3672, 1.442695
    %v3685 = vpow.pop %v3684
    %v3686 = vmul.f32 %v3673, 1.442695
    %v3687 = vpow.pop %v3686
    %v3688 = vmul.f32 %v3674, 1.442695
    %v3689 = vpow.pop %v3688
    %v3690 = vmul.f32 %v3675, 1.442695
    %v3691 = vpow.pop %v3690
    %v3692 = vmul.f32 %v3676, 1.442695
    %v3693 = vpow.pop %v3692
    %v3694 = vmul.f32 %v3677, 1.442695
    %v3695 = vpow.pop %v3694
    %v3696 = vmul.f32 %v3678, 1.442695
    %v3697 = vpow.pop %v3696
    %v3698 = vmul.f32 %v3679, 1.442695
    %v3699 = vpow.pop %v3698
    %v3700 = vmul.f32 %v3680, 1.442695
    %v3701 = vpow.pop %v3700
    %v3702 = vmul.f32 %v3681, 1.442695
    %v3703 = vpow.pop %v3702
    %v3704 = vmul.f32 %v3682, 1.442695
    %v3705 = vpow.pop %v3704
    %v3706 = vmul.f32 %v3683, 1.442695
    %v3707 = vpow.pop %v3706
    %v3708 = vmul.f32 %v3660, %v3685
    %v3709 = vmul.f32 %v3661, %v3687
    %v3710 = vmul.f32 %v3662, %v3689
    %v3711 = vmul.f32 %v3663, %v3691
    %v3712 = vmul.f32 %v3664, %v3693
    %v3713 = vmul.f32 %v3665, %v3695
    %v3714 = vmul.f32 %v3666, %v3697
    %v3715 = vmul.f32 %v3667, %v3699
    %v3716 = vmul.f32 %v3668, %v3701
    %v3717 = vmul.f32 %v3669, %v3703
    %v3718 = vmul.f32 %v3670, %v3705
    %v3719 = vmul.f32 %v3671, %v3707
    %v3720 = vadd.f32 %v3271, %v3708
    %v3721 = vadd.f32 %v3347, %v3709
    %v3722 = vadd.f32 %v3423, %v3710
    %v3723 = vadd.f32 %v3273, %v3711
    %v3724 = vadd.f32 %v3349, %v3712
    %v3725 = vadd.f32 %v3425, %v3713
    %v3726 = vadd.f32 %v3276, %v3714
    %v3727 = vadd.f32 %v3352, %v3715
    %v3728 = vadd.f32 %v3428, %v3716
    %v3729 = vadd.f32 %v3278, %v3717
    %v3730 = vadd.f32 %v3354, %v3718
    %v3731 = vadd.f32 %v3430, %v3719
    %v3732 = vpack.c.bf16 %v3723, %v3720
    %v3733 = vpack.c.bf16 %v3724, %v3721
    %v3734 = vpack.c.bf16 %v3725, %v3722
    %v3735 = vpack.c.bf16 %v3729, %v3726
    %v3736 = vpack.c.bf16 %v3730, %v3727
    %v3737 = vpack.c.bf16 %v3731, %v3728
    %v3738 = vld [vmem:[%s6] sm:$0xff]
    %v3739 = vld [vmem:[%s6 + $0x8] sm:$0xff]
    %v3740 = vld [vmem:[%s6 + $0x10] sm:$0xff]
    %v3741 = vld [vmem:[%s6 + $0x18] sm:$0xff]
    %v3742 = vld [vmem:[%s6 + $0x20] sm:$0xff]
    %v3743 = vld [vmem:[%s6 + $0x28] sm:$0xff]
    %v3744 = vld [vmem:[%s6 + $0x30] sm:$0xff]
    %v3745 = vld [vmem:[%s6 + $0x38] sm:$0xff]
    %v3746 = vld [vmem:[%s6 + $0x40] sm:$0xff]
    %v3747 = vld [vmem:[%s6 + $0x48] sm:$0xff]
    %v3748 = vld [vmem:[%s6 + $0x50] sm:$0xff]
    %v3749 = vld [vmem:[%s6 + $0x58] sm:$0xff]
    %v3750 = vld [vmem:[%s6 + $0x60] sm:$0xff]
    %v3751 = vld [vmem:[%s6 + $0x68] sm:$0xff]
    %v3752 = vld [vmem:[%s6 + $0x70] sm:$0xff]
    %v3753 = vld [vmem:[%s6 + $0x78] sm:$0xff]
    %v3754 = vld [vmem:[%s6 + $0x80] sm:$0xff]
    %v3755 = vld [vmem:[%s6 + $0x88] sm:$0xff]
    %v3756 = vld [vmem:[%s6 + $0x90] sm:$0xff]
    %v3757 = vld [vmem:[%s6 + $0x98] sm:$0xff]
    %v3758 = vld [vmem:[%s6 + $0xa0] sm:$0xff]
    %v3759 = vld [vmem:[%s6 + $0xa8] sm:$0xff]
    %v3760 = vld [vmem:[%s6 + $0xb0] sm:$0xff]
    %v3761 = vld [vmem:[%s6 + $0xb8] sm:$0xff]
    %v3762 = vld [vmem:[%s6 + $0xc0] sm:$0xff]
    %v3763 = vld [vmem:[%s6 + $0xc8] sm:$0xff]
    %v3764 = vld [vmem:[%s6 + $0xd0] sm:$0xff]
    %v3765 = vld [vmem:[%s6 + $0xd8] sm:$0xff]
    %v3766 = vld [vmem:[%s6 + $0xe0] sm:$0xff]
    %v3767 = vld [vmem:[%s6 + $0xe8] sm:$0xff]
    %v3768 = vld [vmem:[%s6 + $0xf0] sm:$0xff]
    %v3769 = vld [vmem:[%s6 + $0xf8] sm:$0xff]
    %v3770 = vld [vmem:[%s6 + $0x100] sm:$0xff]
    %v3771 = vld [vmem:[%s6 + $0x108] sm:$0xff]
    %v3772 = vld [vmem:[%s6 + $0x110] sm:$0xff]
    %v3773 = vld [vmem:[%s6 + $0x118] sm:$0xff]
    %v3774 = vld [vmem:[%s6 + $0x120] sm:$0xff]
    %v3775 = vld [vmem:[%s6 + $0x128] sm:$0xff]
    %v3776 = vld [vmem:[%s6 + $0x130] sm:$0xff]
    %v3777 = vld [vmem:[%s6 + $0x138] sm:$0xff]
    %v3778 = vld [vmem:[%s6 + $0x140] sm:$0xff]
    %v3779 = vld [vmem:[%s6 + $0x148] sm:$0xff]
    %v3780 = vld [vmem:[%s6 + $0x150] sm:$0xff]
    %v3781 = vld [vmem:[%s6 + $0x158] sm:$0xff]
    %v3782 = vld [vmem:[%s6 + $0x160] sm:$0xff]
    %v3783 = vld [vmem:[%s6 + $0x168] sm:$0xff]
    %v3784 = vld [vmem:[%s6 + $0x170] sm:$0xff]
    %v3785 = vld [vmem:[%s6 + $0x178] sm:$0xff]
    %v3786 = vld [vmem:[%s6 + $0x180] sm:$0xff]
    %v3787 = vld [vmem:[%s6 + $0x188] sm:$0xff]
    %v3788 = vld [vmem:[%s6 + $0x190] sm:$0xff]
    %v3789 = vld [vmem:[%s6 + $0x198] sm:$0xff]
    %v3790 = vld [vmem:[%s6 + $0x1a0] sm:$0xff]
    %v3791 = vld [vmem:[%s6 + $0x1a8] sm:$0xff]
    %v3792 = vld [vmem:[%s6 + $0x1b0] sm:$0xff]
    %v3793 = vld [vmem:[%s6 + $0x1b8] sm:$0xff]
    %v3794 = vld [vmem:[%s6 + $0x1c0] sm:$0xff]
    %v3795 = vld [vmem:[%s6 + $0x1c8] sm:$0xff]
    %v3796 = vld [vmem:[%s6 + $0x1d0] sm:$0xff]
    %v3797 = vld [vmem:[%s6 + $0x1d8] sm:$0xff]
    %v3798 = vld [vmem:[%s6 + $0x1e0] sm:$0xff]
    %v3799 = vld [vmem:[%s6 + $0x1e8] sm:$0xff]
    %v3800 = vld [vmem:[%s6 + $0x1f0] sm:$0xff]
    %v3801 = vld [vmem:[%s6 + $0x1f8] sm:$0xff]
    %v3802 = vld [vmem:[%s6 + $0x200] sm:$0xff]
    %v3803 = vld [vmem:[%s6 + $0x208] sm:$0xff]
    %v3804 = vld [vmem:[%s6 + $0x210] sm:$0xff]
    %v3805 = vld [vmem:[%s6 + $0x218] sm:$0xff]
    %v3806 = vld [vmem:[%s6 + $0x220] sm:$0xff]
    %v3807 = vld [vmem:[%s6 + $0x228] sm:$0xff]
    %v3808 = vld [vmem:[%s6 + $0x230] sm:$0xff]
    %v3809 = vld [vmem:[%s6 + $0x238] sm:$0xff]
    %v3810 = vld [vmem:[%s6 + $0x240] sm:$0xff]
    %v3811 = vld [vmem:[%s6 + $0x248] sm:$0xff]
    %v3812 = vld [vmem:[%s6 + $0x250] sm:$0xff]
    %v3813 = vld [vmem:[%s6 + $0x258] sm:$0xff]
    %v3814 = vld [vmem:[%s6 + $0x260] sm:$0xff]
    %v3815 = vld [vmem:[%s6 + $0x268] sm:$0xff]
    %v3816 = vld [vmem:[%s6 + $0x270] sm:$0xff]
    %v3817 = vld [vmem:[%s6 + $0x278] sm:$0xff]
    %v3818 = vld [vmem:[%s6 + $0x280] sm:$0xff]
    %v3819 = vld [vmem:[%s6 + $0x288] sm:$0xff]
    %v3820 = vld [vmem:[%s6 + $0x290] sm:$0xff]
    %v3821 = vld [vmem:[%s6 + $0x298] sm:$0xff]
    %v3822 = vld [vmem:[%s6 + $0x2a0] sm:$0xff]
    %v3823 = vld [vmem:[%s6 + $0x2a8] sm:$0xff]
    %v3824 = vld [vmem:[%s6 + $0x2b0] sm:$0xff]
    %v3825 = vld [vmem:[%s6 + $0x2b8] sm:$0xff]
    %v3826 = vld [vmem:[%s6 + $0x2c0] sm:$0xff]
    %v3827 = vld [vmem:[%s6 + $0x2c8] sm:$0xff]
    %v3828 = vld [vmem:[%s6 + $0x2d0] sm:$0xff]
    %v3829 = vld [vmem:[%s6 + $0x2d8] sm:$0xff]
    %v3830 = vld [vmem:[%s6 + $0x2e0] sm:$0xff]
    %v3831 = vld [vmem:[%s6 + $0x2e8] sm:$0xff]
    %v3832 = vld [vmem:[%s6 + $0x2f0] sm:$0xff]
    %v3833 = vld [vmem:[%s6 + $0x2f8] sm:$0xff]
    %v3834 = vld [vmem:[%s7] sm:$0xf]
    %v3836 = vperm.slane %v3834, 0
    %v3837 = vperm.slane %v3834, 1
    %v3838 = vperm.slane %v3834, 2
    %v3839 = vperm.slane %v3834, 3
    %v3940 = vunpack.c.l.b16 %v3738
    %v3941 = vunpack.c.h.b16 %v3738
    %v3942 = vunpack.c.l.b16 %v3739
    %v3943 = vunpack.c.h.b16 %v3739
    %v3944 = vunpack.c.l.b16 %v3740
    %v3945 = vunpack.c.h.b16 %v3740
    %v3946 = vunpack.c.l.b16 %v3741
    %v3947 = vunpack.c.h.b16 %v3741
    %v3948 = vunpack.c.l.b16 %v3742
    %v3949 = vunpack.c.h.b16 %v3742
    %v3950 = vunpack.c.l.b16 %v3743
    %v3951 = vunpack.c.h.b16 %v3743
    %v3952 = vunpack.c.l.b16 %v3744
    %v3953 = vunpack.c.h.b16 %v3744
    %v3954 = vunpack.c.l.b16 %v3745
    %v3955 = vunpack.c.h.b16 %v3745
    %v3956 = vunpack.c.l.b16 %v3746
    %v3957 = vunpack.c.h.b16 %v3746
    %v3958 = vunpack.c.l.b16 %v3747
    %v3959 = vunpack.c.h.b16 %v3747
    %v3960 = vunpack.c.l.b16 %v3748
    %v3961 = vunpack.c.h.b16 %v3748
    %v3962 = vunpack.c.l.b16 %v3749
    %v3963 = vunpack.c.h.b16 %v3749
    %v3964 = vunpack.c.l.b16 %v3750
    %v3965 = vunpack.c.h.b16 %v3750
    %v3966 = vunpack.c.l.b16 %v3751
    %v3967 = vunpack.c.h.b16 %v3751
    %v3968 = vunpack.c.l.b16 %v3752
    %v3969 = vunpack.c.h.b16 %v3752
    %v3970 = vunpack.c.l.b16 %v3753
    %v3971 = vunpack.c.h.b16 %v3753
    %v3972 = vunpack.c.l.b16 %v3754
    %v3973 = vunpack.c.h.b16 %v3754
    %v3974 = vunpack.c.l.b16 %v3755
    %v3975 = vunpack.c.h.b16 %v3755
    %v3976 = vunpack.c.l.b16 %v3756
    %v3977 = vunpack.c.h.b16 %v3756
    %v3978 = vunpack.c.l.b16 %v3757
    %v3979 = vunpack.c.h.b16 %v3757
    %v3980 = vunpack.c.l.b16 %v3758
    %v3981 = vunpack.c.h.b16 %v3758
    %v3982 = vunpack.c.l.b16 %v3759
    %v3983 = vunpack.c.h.b16 %v3759
    %v3984 = vunpack.c.l.b16 %v3760
    %v3985 = vunpack.c.h.b16 %v3760
    %v3986 = vunpack.c.l.b16 %v3761
    %v3987 = vunpack.c.h.b16 %v3761
    %v3988 = vunpack.c.l.b16 %v3762
    %v3989 = vunpack.c.h.b16 %v3762
    %v3990 = vunpack.c.l.b16 %v3763
    %v3991 = vunpack.c.h.b16 %v3763
    %v3992 = vunpack.c.l.b16 %v3764
    %v3993 = vunpack.c.h.b16 %v3764
    %v3994 = vunpack.c.l.b16 %v3765
    %v3995 = vunpack.c.h.b16 %v3765
    %v3996 = vunpack.c.l.b16 %v3766
    %v3997 = vunpack.c.h.b16 %v3766
    %v3998 = vunpack.c.l.b16 %v3767
    %v3999 = vunpack.c.h.b16 %v3767
    %v4000 = vunpack.c.l.b16 %v3768
    %v4001 = vunpack.c.h.b16 %v3768
    %v4002 = vunpack.c.l.b16 %v3769
    %v4003 = vunpack.c.h.b16 %v3769
    %v4004 = vunpack.c.l.b16 %v3770
    %v4005 = vunpack.c.h.b16 %v3770
    %v4006 = vunpack.c.l.b16 %v3771
    %v4007 = vunpack.c.h.b16 %v3771
    %v4008 = vunpack.c.l.b16 %v3772
    %v4009 = vunpack.c.h.b16 %v3772
    %v4010 = vunpack.c.l.b16 %v3773
    %v4011 = vunpack.c.h.b16 %v3773
    %v4012 = vunpack.c.l.b16 %v3774
    %v4013 = vunpack.c.h.b16 %v3774
    %v4014 = vunpack.c.l.b16 %v3775
    %v4015 = vunpack.c.h.b16 %v3775
    %v4016 = vunpack.c.l.b16 %v3776
    %v4017 = vunpack.c.h.b16 %v3776
    %v4018 = vunpack.c.l.b16 %v3777
    %v4019 = vunpack.c.h.b16 %v3777
    %v4020 = vunpack.c.l.b16 %v3778
    %v4021 = vunpack.c.h.b16 %v3778
    %v4022 = vunpack.c.l.b16 %v3779
    %v4023 = vunpack.c.h.b16 %v3779
    %v4024 = vunpack.c.l.b16 %v3780
    %v4025 = vunpack.c.h.b16 %v3780
    %v4026 = vunpack.c.l.b16 %v3781
    %v4027 = vunpack.c.h.b16 %v3781
    %v4028 = vunpack.c.l.b16 %v3782
    %v4029 = vunpack.c.h.b16 %v3782
    %v4030 = vunpack.c.l.b16 %v3783
    %v4031 = vunpack.c.h.b16 %v3783
    %v4032 = vunpack.c.l.b16 %v3784
    %v4033 = vunpack.c.h.b16 %v3784
    %v4034 = vunpack.c.l.b16 %v3785
    %v4035 = vunpack.c.h.b16 %v3785
    %v4036 = vunpack.c.l.b16 %v3786
    %v4037 = vunpack.c.h.b16 %v3786
    %v4038 = vunpack.c.l.b16 %v3787
    %v4039 = vunpack.c.h.b16 %v3787
    %v4040 = vunpack.c.l.b16 %v3788
    %v4041 = vunpack.c.h.b16 %v3788
    %v4042 = vunpack.c.l.b16 %v3789
    %v4043 = vunpack.c.h.b16 %v3789
    %v4044 = vunpack.c.l.b16 %v3790
    %v4045 = vunpack.c.h.b16 %v3790
    %v4046 = vunpack.c.l.b16 %v3791
    %v4047 = vunpack.c.h.b16 %v3791
    %v4048 = vunpack.c.l.b16 %v3792
    %v4049 = vunpack.c.h.b16 %v3792
    %v4050 = vunpack.c.l.b16 %v3793
    %v4051 = vunpack.c.h.b16 %v3793
    %v4052 = vunpack.c.l.b16 %v3794
    %v4053 = vunpack.c.h.b16 %v3794
    %v4054 = vunpack.c.l.b16 %v3795
    %v4055 = vunpack.c.h.b16 %v3795
    %v4056 = vunpack.c.l.b16 %v3796
    %v4057 = vunpack.c.h.b16 %v3796
    %v4058 = vunpack.c.l.b16 %v3797
    %v4059 = vunpack.c.h.b16 %v3797
    %v4060 = vunpack.c.l.b16 %v3798
    %v4061 = vunpack.c.h.b16 %v3798
    %v4062 = vunpack.c.l.b16 %v3799
    %v4063 = vunpack.c.h.b16 %v3799
    %v4064 = vunpack.c.l.b16 %v3800
    %v4065 = vunpack.c.h.b16 %v3800
    %v4066 = vunpack.c.l.b16 %v3801
    %v4067 = vunpack.c.h.b16 %v3801
    %v4068 = vunpack.c.l.b16 %v3802
    %v4069 = vunpack.c.h.b16 %v3802
    %v4070 = vunpack.c.l.b16 %v3803
    %v4071 = vunpack.c.h.b16 %v3803
    %v4072 = vunpack.c.l.b16 %v3804
    %v4073 = vunpack.c.h.b16 %v3804
    %v4074 = vunpack.c.l.b16 %v3805
    %v4075 = vunpack.c.h.b16 %v3805
    %v4076 = vunpack.c.l.b16 %v3806
    %v4077 = vunpack.c.h.b16 %v3806
    %v4078 = vunpack.c.l.b16 %v3807
    %v4079 = vunpack.c.h.b16 %v3807
    %v4080 = vunpack.c.l.b16 %v3808
    %v4081 = vunpack.c.h.b16 %v3808
    %v4082 = vunpack.c.l.b16 %v3809
    %v4083 = vunpack.c.h.b16 %v3809
    %v4084 = vunpack.c.l.b16 %v3810
    %v4085 = vunpack.c.h.b16 %v3810
    %v4086 = vunpack.c.l.b16 %v3811
    %v4087 = vunpack.c.h.b16 %v3811
    %v4088 = vunpack.c.l.b16 %v3812
    %v4089 = vunpack.c.h.b16 %v3812
    %v4090 = vunpack.c.l.b16 %v3813
    %v4091 = vunpack.c.h.b16 %v3813
    %v4092 = vunpack.c.l.b16 %v3814
    %v4093 = vunpack.c.h.b16 %v3814
    %v4094 = vunpack.c.l.b16 %v3815
    %v4095 = vunpack.c.h.b16 %v3815
    %v4096 = vunpack.c.l.b16 %v3816
    %v4097 = vunpack.c.h.b16 %v3816
    %v4098 = vunpack.c.l.b16 %v3817
    %v4099 = vunpack.c.h.b16 %v3817
    %v4100 = vunpack.c.l.b16 %v3818
    %v4101 = vunpack.c.h.b16 %v3818
    %v4102 = vunpack.c.l.b16 %v3819
    %v4103 = vunpack.c.h.b16 %v3819
    %v4104 = vunpack.c.l.b16 %v3820
    %v4105 = vunpack.c.h.b16 %v3820
    %v4106 = vunpack.c.l.b16 %v3821
    %v4107 = vunpack.c.h.b16 %v3821
    %v4108 = vunpack.c.l.b16 %v3822
    %v4109 = vunpack.c.h.b16 %v3822
    %v4110 = vunpack.c.l.b16 %v3823
    %v4111 = vunpack.c.h.b16 %v3823
    %v4112 = vunpack.c.l.b16 %v3824
    %v4113 = vunpack.c.h.b16 %v3824
    %v4114 = vunpack.c.l.b16 %v3825
    %v4115 = vunpack.c.h.b16 %v3825
    %v4116 = vunpack.c.l.b16 %v3826
    %v4117 = vunpack.c.h.b16 %v3826
    %v4118 = vunpack.c.l.b16 %v3827
    %v4119 = vunpack.c.h.b16 %v3827
    %v4120 = vunpack.c.l.b16 %v3828
    %v4121 = vunpack.c.h.b16 %v3828
    %v4122 = vunpack.c.l.b16 %v3829
    %v4123 = vunpack.c.h.b16 %v3829
    %v4124 = vunpack.c.l.b16 %v3830
    %v4125 = vunpack.c.h.b16 %v3830
    %v4126 = vunpack.c.l.b16 %v3831
    %v4127 = vunpack.c.h.b16 %v3831
    %v4128 = vunpack.c.l.b16 %v3832
    %v4129 = vunpack.c.h.b16 %v3832
    %v4130 = vunpack.c.l.b16 %v3833
    %v4131 = vunpack.c.h.b16 %v3833
    %v4132 = vpack.c.b16 %v3944, %v3940
    %v4133 = vpack.c.b16 %v3945, %v3941
    %v4134 = vpack.c.b16 %v3946, %v3942
    %v4135 = vpack.c.b16 %v3947, %v3943
    %v4136 = vpack.c.b16 %v3952, %v3948
    %v4137 = vpack.c.b16 %v3953, %v3949
    %v4138 = vpack.c.b16 %v3954, %v3950
    %v4139 = vpack.c.b16 %v3955, %v3951
    %v4140 = vpack.c.b16 %v3960, %v3956
    %v4141 = vpack.c.b16 %v3961, %v3957
    %v4142 = vpack.c.b16 %v3962, %v3958
    %v4143 = vpack.c.b16 %v3963, %v3959
    %v4144 = vpack.c.b16 %v3968, %v3964
    %v4145 = vpack.c.b16 %v3969, %v3965
    %v4146 = vpack.c.b16 %v3970, %v3966
    %v4147 = vpack.c.b16 %v3971, %v3967
    %v4148 = vpack.c.b16 %v3976, %v3972
    %v4149 = vpack.c.b16 %v3977, %v3973
    %v4150 = vpack.c.b16 %v3978, %v3974
    %v4151 = vpack.c.b16 %v3979, %v3975
    %v4152 = vpack.c.b16 %v3984, %v3980
    %v4153 = vpack.c.b16 %v3985, %v3981
    %v4154 = vpack.c.b16 %v3986, %v3982
    %v4155 = vpack.c.b16 %v3987, %v3983
    %v4156 = vpack.c.b16 %v3992, %v3988
    %v4157 = vpack.c.b16 %v3993, %v3989
    %v4158 = vpack.c.b16 %v3994, %v3990
    %v4159 = vpack.c.b16 %v3995, %v3991
    %v4160 = vpack.c.b16 %v4000, %v3996
    %v4161 = vpack.c.b16 %v4001, %v3997
    %v4162 = vpack.c.b16 %v4002, %v3998
    %v4163 = vpack.c.b16 %v4003, %v3999
    %v4164 = vpack.c.b16 %v4008, %v4004
    %v4165 = vpack.c.b16 %v4009, %v4005
    %v4166 = vpack.c.b16 %v4010, %v4006
    %v4167 = vpack.c.b16 %v4011, %v4007
    %v4168 = vpack.c.b16 %v4016, %v4012
    %v4169 = vpack.c.b16 %v4017, %v4013
    %v4170 = vpack.c.b16 %v4018, %v4014
    %v4171 = vpack.c.b16 %v4019, %v4015
    %v4172 = vpack.c.b16 %v4024, %v4020
    %v4173 = vpack.c.b16 %v4025, %v4021
    %v4174 = vpack.c.b16 %v4026, %v4022
    %v4175 = vpack.c.b16 %v4027, %v4023
    %v4176 = vpack.c.b16 %v4032, %v4028
    %v4177 = vpack.c.b16 %v4033, %v4029
    %v4178 = vpack.c.b16 %v4034, %v4030
    %v4179 = vpack.c.b16 %v4035, %v4031
    %v4180 = vpack.c.b16 %v4040, %v4036
    %v4181 = vpack.c.b16 %v4041, %v4037
    %v4182 = vpack.c.b16 %v4042, %v4038
    %v4183 = vpack.c.b16 %v4043, %v4039
    %v4184 = vpack.c.b16 %v4048, %v4044
    %v4185 = vpack.c.b16 %v4049, %v4045
    %v4186 = vpack.c.b16 %v4050, %v4046
    %v4187 = vpack.c.b16 %v4051, %v4047
    %v4188 = vpack.c.b16 %v4056, %v4052
    %v4189 = vpack.c.b16 %v4057, %v4053
    %v4190 = vpack.c.b16 %v4058, %v4054
    %v4191 = vpack.c.b16 %v4059, %v4055
    %v4192 = vpack.c.b16 %v4064, %v4060
    %v4193 = vpack.c.b16 %v4065, %v4061
    %v4194 = vpack.c.b16 %v4066, %v4062
    %v4195 = vpack.c.b16 %v4067, %v4063
    %v4196 = vpack.c.b16 %v4072, %v4068
    %v4197 = vpack.c.b16 %v4073, %v4069
    %v4198 = vpack.c.b16 %v4074, %v4070
    %v4199 = vpack.c.b16 %v4075, %v4071
    %v4200 = vpack.c.b16 %v4080, %v4076
    %v4201 = vpack.c.b16 %v4081, %v4077
    %v4202 = vpack.c.b16 %v4082, %v4078
    %v4203 = vpack.c.b16 %v4083, %v4079
    %v4204 = vpack.c.b16 %v4088, %v4084
    %v4205 = vpack.c.b16 %v4089, %v4085
    %v4206 = vpack.c.b16 %v4090, %v4086
    %v4207 = vpack.c.b16 %v4091, %v4087
    %v4208 = vpack.c.b16 %v4096, %v4092
    %v4209 = vpack.c.b16 %v4097, %v4093
    %v4210 = vpack.c.b16 %v4098, %v4094
    %v4211 = vpack.c.b16 %v4099, %v4095
    %v4212 = vpack.c.b16 %v4104, %v4100
    %v4213 = vpack.c.b16 %v4105, %v4101
    %v4214 = vpack.c.b16 %v4106, %v4102
    %v4215 = vpack.c.b16 %v4107, %v4103
    %v4216 = vpack.c.b16 %v4112, %v4108
    %v4217 = vpack.c.b16 %v4113, %v4109
    %v4218 = vpack.c.b16 %v4114, %v4110
    %v4219 = vpack.c.b16 %v4115, %v4111
    %v4220 = vpack.c.b16 %v4120, %v4116
    %v4221 = vpack.c.b16 %v4121, %v4117
    %v4222 = vpack.c.b16 %v4122, %v4118
    %v4223 = vpack.c.b16 %v4123, %v4119
    %v4224 = vpack.c.b16 %v4128, %v4124
    %v4225 = vpack.c.b16 %v4129, %v4125
    %v4226 = vpack.c.b16 %v4130, %v4126
    %v4227 = vpack.c.b16 %v4131, %v4127
    %4324 = vmatpush.bf16.msra.mxu0 %v4160
    %4325 = vmatpush.bf16.msra.mxu0 %v4156
    %4326 = vmatpush.bf16.msra.mxu0 %v4152
    %4327 = vmatpush.bf16.msra.mxu0 %v4148
    %4328 = vmatpush.bf16.msra.mxu0 %v4144
    %4329 = vmatpush.bf16.msra.mxu0 %v4140
    %4330 = vmatpush.bf16.msra.mxu0 %v4136
    %4331 = vmatpush.bf16.msra.mxu0 %v4132
    %4332 = vmatmul.bf16.gmra.mxu0 %v3732
    %v4333 = vpop.f32.mrf.mxu0
    %v4334 = vadd.f32 %v3836, %v4333
    %v4335 = vpop.f32.mrf.mxu0
    %v4336 = vadd.f32 %v3836, %v4335
    %4337 = vmatmul.bf16.gmra.mxu0 %v3735
    %v4338 = vpop.f32.mrf.mxu0
    %v4339 = vadd.f32 %v3836, %v4338
    %v4340 = vpop.f32.mrf.mxu0
    %v4341 = vadd.f32 %v3836, %v4340
    %4342 = vdwg.mxu0
    %4343 = vmatpush.bf16.msra.mxu0 %v4192
    %4344 = vmatpush.bf16.msra.mxu0 %v4188
    %4345 = vmatpush.bf16.msra.mxu0 %v4184
    %4346 = vmatpush.bf16.msra.mxu0 %v4180
    %4347 = vmatpush.bf16.msra.mxu0 %v4176
    %4348 = vmatpush.bf16.msra.mxu0 %v4172
    %4349 = vmatpush.bf16.msra.mxu0 %v4168
    %4350 = vmatpush.bf16.msra.mxu0 %v4164
    %4351 = vmatmul.bf16.gmra.mxu0 %v3733
    %v4352 = vpop.f32.mrf.mxu0
    %v4353 = vadd.f32 %v4334, %v4352
    %v4354 = vpop.f32.mrf.mxu0
    %v4355 = vadd.f32 %v4336, %v4354
    %4356 = vmatmul.bf16.gmra.mxu0 %v3736
    %v4357 = vpop.f32.mrf.mxu0
    %v4358 = vadd.f32 %v4339, %v4357
    %v4359 = vpop.f32.mrf.mxu0
    %v4360 = vadd.f32 %v4341, %v4359
    %4361 = vdwg.mxu0
    %4362 = vmatpush.bf16.msra.mxu0 %v4224
    %4363 = vmatpush.bf16.msra.mxu0 %v4220
    %4364 = vmatpush.bf16.msra.mxu0 %v4216
    %4365 = vmatpush.bf16.msra.mxu0 %v4212
    %4366 = vmatpush.bf16.msra.mxu0 %v4208
    %4367 = vmatpush.bf16.msra.mxu0 %v4204
    %4368 = vmatpush.bf16.msra.mxu0 %v4200
    %4369 = vmatpush.bf16.msra.mxu0 %v4196
    %4370 = vmatmul.bf16.gmra.mxu0 %v3734
    %v4371 = vpop.f32.mrf.mxu0
    %v4372 = vadd.f32 %v4353, %v4371
    %v4373 = vpop.f32.mrf.mxu0
    %v4374 = vadd.f32 %v4355, %v4373
    %4375 = vmatmul.bf16.gmra.mxu0 %v3737
    %v4376 = vpop.f32.mrf.mxu0
    %v4377 = vadd.f32 %v4358, %v4376
    %v4378 = vpop.f32.mrf.mxu0
    %v4379 = vadd.f32 %v4360, %v4378
    %4380 = vdwg.mxu0
    %4381 = vmatpush.bf16.msra.mxu0 %v4161
    %4382 = vmatpush.bf16.msra.mxu0 %v4157
    %4383 = vmatpush.bf16.msra.mxu0 %v4153
    %4384 = vmatpush.bf16.msra.mxu0 %v4149
    %4385 = vmatpush.bf16.msra.mxu0 %v4145
    %4386 = vmatpush.bf16.msra.mxu0 %v4141
    %4387 = vmatpush.bf16.msra.mxu0 %v4137
    %4388 = vmatpush.bf16.msra.mxu0 %v4133
    %4389 = vmatmul.bf16.gmra.mxu0 %v3732
    %v4390 = vpop.f32.mrf.mxu0
    %v4391 = vadd.f32 %v3837, %v4390
    %v4392 = vpop.f32.mrf.mxu0
    %v4393 = vadd.f32 %v3837, %v4392
    %4394 = vmatmul.bf16.gmra.mxu0 %v3735
    %v4395 = vpop.f32.mrf.mxu0
    %v4396 = vadd.f32 %v3837, %v4395
    %v4397 = vpop.f32.mrf.mxu0
    %v4398 = vadd.f32 %v3837, %v4397
    %4399 = vdwg.mxu0
    %4400 = vmatpush.bf16.msra.mxu0 %v4193
    %4401 = vmatpush.bf16.msra.mxu0 %v4189
    %4402 = vmatpush.bf16.msra.mxu0 %v4185
    %4403 = vmatpush.bf16.msra.mxu0 %v4181
    %4404 = vmatpush.bf16.msra.mxu0 %v4177
    %4405 = vmatpush.bf16.msra.mxu0 %v4173
    %4406 = vmatpush.bf16.msra.mxu0 %v4169
    %4407 = vmatpush.bf16.msra.mxu0 %v4165
    %4408 = vmatmul.bf16.gmra.mxu0 %v3733
    %v4409 = vpop.f32.mrf.mxu0
    %v4410 = vadd.f32 %v4391, %v4409
    %v4411 = vpop.f32.mrf.mxu0
    %v4412 = vadd.f32 %v4393, %v4411
    %4413 = vmatmul.bf16.gmra.mxu0 %v3736
    %v4414 = vpop.f32.mrf.mxu0
    %v4415 = vadd.f32 %v4396, %v4414
    %v4416 = vpop.f32.mrf.mxu0
    %v4417 = vadd.f32 %v4398, %v4416
    %4418 = vdwg.mxu0
    %4419 = vmatpush.bf16.msra.mxu0 %v4225
    %4420 = vmatpush.bf16.msra.mxu0 %v4221
    %4421 = vmatpush.bf16.msra.mxu0 %v4217
    %4422 = vmatpush.bf16.msra.mxu0 %v4213
    %4423 = vmatpush.bf16.msra.mxu0 %v4209
    %4424 = vmatpush.bf16.msra.mxu0 %v4205
    %4425 = vmatpush.bf16.msra.mxu0 %v4201
    %4426 = vmatpush.bf16.msra.mxu0 %v4197
    %4427 = vmatmul.bf16.gmra.mxu0 %v3734
    %v4428 = vpop.f32.mrf.mxu0
    %v4429 = vadd.f32 %v4410, %v4428
    %v4430 = vpop.f32.mrf.mxu0
    %v4431 = vadd.f32 %v4412, %v4430
    %4432 = vmatmul.bf16.gmra.mxu0 %v3737
    %v4433 = vpop.f32.mrf.mxu0
    %v4434 = vadd.f32 %v4415, %v4433
    %v4435 = vpop.f32.mrf.mxu0
    %v4436 = vadd.f32 %v4417, %v4435
    %4437 = vdwg.mxu0
    %4438 = vmatpush.bf16.msra.mxu0 %v4162
    %4439 = vmatpush.bf16.msra.mxu0 %v4158
    %4440 = vmatpush.bf16.msra.mxu0 %v4154
    %4441 = vmatpush.bf16.msra.mxu0 %v4150
    %4442 = vmatpush.bf16.msra.mxu0 %v4146
    %4443 = vmatpush.bf16.msra.mxu0 %v4142
    %4444 = vmatpush.bf16.msra.mxu0 %v4138
    %4445 = vmatpush.bf16.msra.mxu0 %v4134
    %4446 = vmatmul.bf16.gmra.mxu0 %v3732
    %v4447 = vpop.f32.mrf.mxu0
    %v4448 = vadd.f32 %v3838, %v4447
    %v4449 = vpop.f32.mrf.mxu0
    %v4450 = vadd.f32 %v3838, %v4449
    %4451 = vmatmul.bf16.gmra.mxu0 %v3735
    %v4452 = vpop.f32.mrf.mxu0
    %v4453 = vadd.f32 %v3838, %v4452
    %v4454 = vpop.f32.mrf.mxu0
    %v4455 = vadd.f32 %v3838, %v4454
    %4456 = vdwg.mxu0
    %4457 = vmatpush.bf16.msra.mxu0 %v4194
    %4458 = vmatpush.bf16.msra.mxu0 %v4190
    %4459 = vmatpush.bf16.msra.mxu0 %v4186
    %4460 = vmatpush.bf16.msra.mxu0 %v4182
    %4461 = vmatpush.bf16.msra.mxu0 %v4178
    %4462 = vmatpush.bf16.msra.mxu0 %v4174
    %4463 = vmatpush.bf16.msra.mxu0 %v4170
    %4464 = vmatpush.bf16.msra.mxu0 %v4166
    %4465 = vmatmul.bf16.gmra.mxu0 %v3733
    %v4466 = vpop.f32.mrf.mxu0
    %v4467 = vadd.f32 %v4448, %v4466
    %v4468 = vpop.f32.mrf.mxu0
    %v4469 = vadd.f32 %v4450, %v4468
    %4470 = vmatmul.bf16.gmra.mxu0 %v3736
    %v4471 = vpop.f32.mrf.mxu0
    %v4472 = vadd.f32 %v4453, %v4471
    %v4473 = vpop.f32.mrf.mxu0
    %v4474 = vadd.f32 %v4455, %v4473
    %4475 = vdwg.mxu0
    %4476 = vmatpush.bf16.msra.mxu0 %v4226
    %4477 = vmatpush.bf16.msra.mxu0 %v4222
    %4478 = vmatpush.bf16.msra.mxu0 %v4218
    %4479 = vmatpush.bf16.msra.mxu0 %v4214
    %4480 = vmatpush.bf16.msra.mxu0 %v4210
    %4481 = vmatpush.bf16.msra.mxu0 %v4206
    %4482 = vmatpush.bf16.msra.mxu0 %v4202
    %4483 = vmatpush.bf16.msra.mxu0 %v4198
    %4484 = vmatmul.bf16.gmra.mxu0 %v3734
    %v4485 = vpop.f32.mrf.mxu0
    %v4486 = vadd.f32 %v4467, %v4485
    %v4487 = vpop.f32.mrf.mxu0
    %v4488 = vadd.f32 %v4469, %v4487
    %4489 = vmatmul.bf16.gmra.mxu0 %v3737
    %v4490 = vpop.f32.mrf.mxu0
    %v4491 = vadd.f32 %v4472, %v4490
    %v4492 = vpop.f32.mrf.mxu0
    %v4493 = vadd.f32 %v4474, %v4492
    %4494 = vdwg.mxu0
    %4495 = vmatpush.bf16.msra.mxu0 %v4163
    %4496 = vmatpush.bf16.msra.mxu0 %v4159
    %4497 = vmatpush.bf16.msra.mxu0 %v4155
    %4498 = vmatpush.bf16.msra.mxu0 %v4151
    %4499 = vmatpush.bf16.msra.mxu0 %v4147
    %4500 = vmatpush.bf16.msra.mxu0 %v4143
    %4501 = vmatpush.bf16.msra.mxu0 %v4139
    %4502 = vmatpush.bf16.msra.mxu0 %v4135
    %4503 = vmatmul.bf16.gmra.mxu0 %v3732
    %v4504 = vpop.f32.mrf.mxu0
    %v4505 = vadd.f32 %v3839, %v4504
    %v4506 = vpop.f32.mrf.mxu0
    %v4507 = vadd.f32 %v3839, %v4506
    %4508 = vmatmul.bf16.gmra.mxu0 %v3735
    %v4509 = vpop.f32.mrf.mxu0
    %v4510 = vadd.f32 %v3839, %v4509
    %v4511 = vpop.f32.mrf.mxu0
    %v4512 = vadd.f32 %v3839, %v4511
    %4513 = vdwg.mxu0
    %4514 = vmatpush.bf16.msra.mxu0 %v4195
    %4515 = vmatpush.bf16.msra.mxu0 %v4191
    %4516 = vmatpush.bf16.msra.mxu0 %v4187
    %4517 = vmatpush.bf16.msra.mxu0 %v4183
    %4518 = vmatpush.bf16.msra.mxu0 %v4179
    %4519 = vmatpush.bf16.msra.mxu0 %v4175
    %4520 = vmatpush.bf16.msra.mxu0 %v4171
    %4521 = vmatpush.bf16.msra.mxu0 %v4167
    %4522 = vmatmul.bf16.gmra.mxu0 %v3733
    %v4523 = vpop.f32.mrf.mxu0
    %v4524 = vadd.f32 %v4505, %v4523
    %v4525 = vpop.f32.mrf.mxu0
    %v4526 = vadd.f32 %v4507, %v4525
    %4527 = vmatmul.bf16.gmra.mxu0 %v3736
    %v4528 = vpop.f32.mrf.mxu0
    %v4529 = vadd.f32 %v4510, %v4528
    %v4530 = vpop.f32.mrf.mxu0
    %v4531 = vadd.f32 %v4512, %v4530
    %4532 = vdwg.mxu0
    %4533 = vmatpush.bf16.msra.mxu0 %v4227
    %4534 = vmatpush.bf16.msra.mxu0 %v4223
    %4535 = vmatpush.bf16.msra.mxu0 %v4219
    %4536 = vmatpush.bf16.msra.mxu0 %v4215
    %4537 = vmatpush.bf16.msra.mxu0 %v4211
    %4538 = vmatpush.bf16.msra.mxu0 %v4207
    %4539 = vmatpush.bf16.msra.mxu0 %v4203
    %4540 = vmatpush.bf16.msra.mxu0 %v4199
    %4541 = vmatmul.bf16.gmra.mxu0 %v3734
    %v4542 = vpop.f32.mrf.mxu0
    %v4543 = vadd.f32 %v4524, %v4542
    %v4544 = vpop.f32.mrf.mxu0
    %v4545 = vadd.f32 %v4526, %v4544
    %4546 = vmatmul.bf16.gmra.mxu0 %v3737
    %v4547 = vpop.f32.mrf.mxu0
    %v4548 = vadd.f32 %v4529, %v4547
    %v4549 = vpop.f32.mrf.mxu0
    %v4550 = vadd.f32 %v4531, %v4549
    %4551 = vdwg.mxu0
    %v4552 = vmax.f32 %v4372, 0.0
    %v4553 = vmax.f32 %v4429, 0.0
    %v4554 = vmax.f32 %v4486, 0.0
    %v4555 = vmax.f32 %v4543, 0.0
    %v4556 = vmax.f32 %v4374, 0.0
    %v4557 = vmax.f32 %v4431, 0.0
    %v4558 = vmax.f32 %v4488, 0.0
    %v4559 = vmax.f32 %v4545, 0.0
    %v4560 = vmax.f32 %v4377, 0.0
    %v4561 = vmax.f32 %v4434, 0.0
    %v4562 = vmax.f32 %v4491, 0.0
    %v4563 = vmax.f32 %v4548, 0.0
    %v4564 = vmax.f32 %v4379, 0.0
    %v4565 = vmax.f32 %v4436, 0.0
    %v4566 = vmax.f32 %v4493, 0.0
    %v4567 = vmax.f32 %v4550, 0.0
    %v4568 = vpack.c.bf16 %v4556, %v4552
    %v4569 = vpack.c.bf16 %v4557, %v4553
    %v4570 = vpack.c.bf16 %v4558, %v4554
    %v4571 = vpack.c.bf16 %v4559, %v4555
    %v4572 = vpack.c.bf16 %v4564, %v4560
    %v4573 = vpack.c.bf16 %v4565, %v4561
    %v4574 = vpack.c.bf16 %v4566, %v4562
    %v4575 = vpack.c.bf16 %v4567, %v4563
    %v4576 = vld [vmem:[%s8] sm:$0xff]
    %v4577 = vld [vmem:[%s8 + $0x8] sm:$0xff]
    %v4578 = vld [vmem:[%s8 + $0x10] sm:$0xff]
    %v4579 = vld [vmem:[%s8 + $0x18] sm:$0xf]
    %v4580 = vld [vmem:[%s8 + $0x1c] sm:$0xff]
    %v4581 = vld [vmem:[%s8 + $0x24] sm:$0xff]
    %v4582 = vld [vmem:[%s8 + $0x2c] sm:$0xff]
    %v4583 = vld [vmem:[%s8 + $0x34] sm:$0xf]
    %v4584 = vld [vmem:[%s8 + $0x38] sm:$0xff]
    %v4585 = vld [vmem:[%s8 + $0x40] sm:$0xff]
    %v4586 = vld [vmem:[%s8 + $0x48] sm:$0xff]
    %v4587 = vld [vmem:[%s8 + $0x50] sm:$0xf]
    %v4588 = vld [vmem:[%s8 + $0x54] sm:$0xff]
    %v4589 = vld [vmem:[%s8 + $0x5c] sm:$0xff]
    %v4590 = vld [vmem:[%s8 + $0x64] sm:$0xff]
    %v4591 = vld [vmem:[%s8 + $0x6c] sm:$0xf]
    %v4592 = vld [vmem:[%s8 + $0x70] sm:$0xff]
    %v4593 = vld [vmem:[%s8 + $0x78] sm:$0xff]
    %v4594 = vld [vmem:[%s8 + $0x80] sm:$0xff]
    %v4595 = vld [vmem:[%s8 + $0x88] sm:$0xf]
    %v4596 = vld [vmem:[%s8 + $0x8c] sm:$0xff]
    %v4597 = vld [vmem:[%s8 + $0x94] sm:$0xff]
    %v4598 = vld [vmem:[%s8 + $0x9c] sm:$0xff]
    %v4599 = vld [vmem:[%s8 + $0xa4] sm:$0xf]
    %v4600 = vld [vmem:[%s8 + $0xa8] sm:$0xff]
    %v4601 = vld [vmem:[%s8 + $0xb0] sm:$0xff]
    %v4602 = vld [vmem:[%s8 + $0xb8] sm:$0xff]
    %v4603 = vld [vmem:[%s8 + $0xc0] sm:$0xf]
    %v4604 = vld [vmem:[%s8 + $0xc4] sm:$0xff]
    %v4605 = vld [vmem:[%s8 + $0xcc] sm:$0xff]
    %v4606 = vld [vmem:[%s8 + $0xd4] sm:$0xff]
    %v4607 = vld [vmem:[%s8 + $0xdc] sm:$0xf]
    %v4608 = vld [vmem:[%s8 + $0xe0] sm:$0xff]
    %v4609 = vld [vmem:[%s8 + $0xe8] sm:$0xff]
    %v4610 = vld [vmem:[%s8 + $0xf0] sm:$0xff]
    %v4611 = vld [vmem:[%s8 + $0xf8] sm:$0xf]
    %v4612 = vld [vmem:[%s8 + $0xfc] sm:$0xff]
    %v4613 = vld [vmem:[%s8 + $0x104] sm:$0xff]
    %v4614 = vld [vmem:[%s8 + $0x10c] sm:$0xff]
    %v4615 = vld [vmem:[%s8 + $0x114] sm:$0xf]
    %v4616 = vld [vmem:[%s8 + $0x118] sm:$0xff]
    %v4617 = vld [vmem:[%s8 + $0x120] sm:$0xff]
    %v4618 = vld [vmem:[%s8 + $0x128] sm:$0xff]
    %v4619 = vld [vmem:[%s8 + $0x130] sm:$0xf]
    %v4620 = vld [vmem:[%s8 + $0x134] sm:$0xff]
    %v4621 = vld [vmem:[%s8 + $0x13c] sm:$0xff]
    %v4622 = vld [vmem:[%s8 + $0x144] sm:$0xff]
    %v4623 = vld [vmem:[%s8 + $0x14c] sm:$0xf]
    %v4624 = vld [vmem:[%s8 + $0x150] sm:$0xff]
    %v4625 = vld [vmem:[%s8 + $0x158] sm:$0xff]
    %v4626 = vld [vmem:[%s8 + $0x160] sm:$0xff]
    %v4627 = vld [vmem:[%s8 + $0x168] sm:$0xf]
    %v4628 = vld [vmem:[%s8 + $0x16c] sm:$0xff]
    %v4629 = vld [vmem:[%s8 + $0x174] sm:$0xff]
    %v4630 = vld [vmem:[%s8 + $0x17c] sm:$0xff]
    %v4631 = vld [vmem:[%s8 + $0x184] sm:$0xf]
    %v4632 = vld [vmem:[%s8 + $0x188] sm:$0xff]
    %v4633 = vld [vmem:[%s8 + $0x190] sm:$0xff]
    %v4634 = vld [vmem:[%s8 + $0x198] sm:$0xff]
    %v4635 = vld [vmem:[%s8 + $0x1a0] sm:$0xf]
    %v4636 = vld [vmem:[%s8 + $0x1a4] sm:$0xff]
    %v4637 = vld [vmem:[%s8 + $0x1ac] sm:$0xff]
    %v4638 = vld [vmem:[%s8 + $0x1b4] sm:$0xff]
    %v4639 = vld [vmem:[%s8 + $0x1bc] sm:$0xf]
    %v4640 = vld [vmem:[%s8 + $0x1c0] sm:$0xff]
    %v4641 = vld [vmem:[%s8 + $0x1c8] sm:$0xff]
    %v4642 = vld [vmem:[%s8 + $0x1d0] sm:$0xff]
    %v4643 = vld [vmem:[%s8 + $0x1d8] sm:$0xf]
    %v4644 = vld [vmem:[%s8 + $0x1dc] sm:$0xff]
    %v4645 = vld [vmem:[%s8 + $0x1e4] sm:$0xff]
    %v4646 = vld [vmem:[%s8 + $0x1ec] sm:$0xff]
    %v4647 = vld [vmem:[%s8 + $0x1f4] sm:$0xf]
    %v4648 = vld [vmem:[%s8 + $0x1f8] sm:$0xff]
    %v4649 = vld [vmem:[%s8 + $0x200] sm:$0xff]
    %v4650 = vld [vmem:[%s8 + $0x208] sm:$0xff]
    %v4651 = vld [vmem:[%s8 + $0x210] sm:$0xf]
    %v4652 = vld [vmem:[%s8 + $0x214] sm:$0xff]
    %v4653 = vld [vmem:[%s8 + $0x21c] sm:$0xff]
    %v4654 = vld [vmem:[%s8 + $0x224] sm:$0xff]
    %v4655 = vld [vmem:[%s8 + $0x22c] sm:$0xf]
    %v4656 = vld [vmem:[%s8 + $0x230] sm:$0xff]
    %v4657 = vld [vmem:[%s8 + $0x238] sm:$0xff]
    %v4658 = vld [vmem:[%s8 + $0x240] sm:$0xff]
    %v4659 = vld [vmem:[%s8 + $0x248] sm:$0xf]
    %v4660 = vld [vmem:[%s8 + $0x24c] sm:$0xff]
    %v4661 = vld [vmem:[%s8 + $0x254] sm:$0xff]
    %v4662 = vld [vmem:[%s8 + $0x25c] sm:$0xff]
    %v4663 = vld [vmem:[%s8 + $0x264] sm:$0xf]
    %v4664 = vld [vmem:[%s8 + $0x268] sm:$0xff]
    %v4665 = vld [vmem:[%s8 + $0x270] sm:$0xff]
    %v4666 = vld [vmem:[%s8 + $0x278] sm:$0xff]
    %v4667 = vld [vmem:[%s8 + $0x280] sm:$0xf]
    %v4668 = vld [vmem:[%s8 + $0x284] sm:$0xff]
    %v4669 = vld [vmem:[%s8 + $0x28c] sm:$0xff]
    %v4670 = vld [vmem:[%s8 + $0x294] sm:$0xff]
    %v4671 = vld [vmem:[%s8 + $0x29c] sm:$0xf]
    %v4672 = vld [vmem:[%s8 + $0x2a0] sm:$0xff]
    %v4673 = vld [vmem:[%s8 + $0x2a8] sm:$0xff]
    %v4674 = vld [vmem:[%s8 + $0x2b0] sm:$0xff]
    %v4675 = vld [vmem:[%s8 + $0x2b8] sm:$0xf]
    %v4676 = vld [vmem:[%s8 + $0x2bc] sm:$0xff]
    %v4677 = vld [vmem:[%s8 + $0x2c4] sm:$0xff]
    %v4678 = vld [vmem:[%s8 + $0x2cc] sm:$0xff]
    %v4679 = vld [vmem:[%s8 + $0x2d4] sm:$0xf]
    %v4680 = vld [vmem:[%s8 + $0x2d8] sm:$0xff]
    %v4681 = vld [vmem:[%s8 + $0x2e0] sm:$0xff]
    %v4682 = vld [vmem:[%s8 + $0x2e8] sm:$0xff]
    %v4683 = vld [vmem:[%s8 + $0x2f0] sm:$0xf]
    %v4684 = vld [vmem:[%s8 + $0x2f4] sm:$0xff]
    %v4685 = vld [vmem:[%s8 + $0x2fc] sm:$0xff]
    %v4686 = vld [vmem:[%s8 + $0x304] sm:$0xff]
    %v4687 = vld [vmem:[%s8 + $0x30c] sm:$0xf]
    %v4688 = vld [vmem:[%s8 + $0x310] sm:$0xff]
    %v4689 = vld [vmem:[%s8 + $0x318] sm:$0xff]
    %v4690 = vld [vmem:[%s8 + $0x320] sm:$0xff]
    %v4691 = vld [vmem:[%s8 + $0x328] sm:$0xf]
    %v4692 = vld [vmem:[%s8 + $0x32c] sm:$0xff]
    %v4693 = vld [vmem:[%s8 + $0x334] sm:$0xff]
    %v4694 = vld [vmem:[%s8 + $0x33c] sm:$0xff]
    %v4695 = vld [vmem:[%s8 + $0x344] sm:$0xf]
    %v4696 = vld [vmem:[%s8 + $0x348] sm:$0xff]
    %v4697 = vld [vmem:[%s8 + $0x350] sm:$0xff]
    %v4698 = vld [vmem:[%s8 + $0x358] sm:$0xff]
    %v4699 = vld [vmem:[%s8 + $0x360] sm:$0xf]
    %v4700 = vld [vmem:[%s8 + $0x364] sm:$0xff]
    %v4701 = vld [vmem:[%s8 + $0x36c] sm:$0xff]
    %v4702 = vld [vmem:[%s8 + $0x374] sm:$0xff]
    %v4703 = vld [vmem:[%s8 + $0x37c] sm:$0xf]
    %v4704 = vld [vmem:[%s8 + $0x380] sm:$0xff]
    %v4705 = vld [vmem:[%s8 + $0x388] sm:$0xff]
    %v4706 = vld [vmem:[%s8 + $0x390] sm:$0xff]
    %v4707 = vld [vmem:[%s8 + $0x398] sm:$0xf]
    %v4708 = vld [vmem:[%s8 + $0x39c] sm:$0xff]
    %v4709 = vld [vmem:[%s8 + $0x3a4] sm:$0xff]
    %v4710 = vld [vmem:[%s8 + $0x3ac] sm:$0xff]
    %v4711 = vld [vmem:[%s8 + $0x3b4] sm:$0xf]
    %v4712 = vld [vmem:[%s8 + $0x3b8] sm:$0xff]
    %v4713 = vld [vmem:[%s8 + $0x3c0] sm:$0xff]
    %v4714 = vld [vmem:[%s8 + $0x3c8] sm:$0xff]
    %v4715 = vld [vmem:[%s8 + $0x3d0] sm:$0xf]
    %v4716 = vld [vmem:[%s8 + $0x3d4] sm:$0xff]
    %v4717 = vld [vmem:[%s8 + $0x3dc] sm:$0xff]
    %v4718 = vld [vmem:[%s8 + $0x3e4] sm:$0xff]
    %v4719 = vld [vmem:[%s8 + $0x3ec] sm:$0xf]
    %v4720 = vld [vmem:[%s8 + $0x3f0] sm:$0xff]
    %v4721 = vld [vmem:[%s8 + $0x3f8] sm:$0xff]
    %v4722 = vld [vmem:[%s8 + $0x400] sm:$0xff]
    %v4723 = vld [vmem:[%s8 + $0x408] sm:$0xf]
    %v4724 = vld [vmem:[%s8 + $0x40c] sm:$0xff]
    %v4725 = vld [vmem:[%s8 + $0x414] sm:$0xff]
    %v4726 = vld [vmem:[%s8 + $0x41c] sm:$0xff]
    %v4727 = vld [vmem:[%s8 + $0x424] sm:$0xf]
    %v4728 = vld [vmem:[%s8 + $0x428] sm:$0xff]
    %v4729 = vld [vmem:[%s8 + $0x430] sm:$0xff]
    %v4730 = vld [vmem:[%s8 + $0x438] sm:$0xff]
    %v4731 = vld [vmem:[%s8 + $0x440] sm:$0xf]
    %v4732 = vld [vmem:[%s8 + $0x444] sm:$0xff]
    %v4733 = vld [vmem:[%s8 + $0x44c] sm:$0xff]
    %v4734 = vld [vmem:[%s8 + $0x454] sm:$0xff]
    %v4735 = vld [vmem:[%s8 + $0x45c] sm:$0xf]
    %v4736 = vld [vmem:[%s8 + $0x460] sm:$0xff]
    %v4737 = vld [vmem:[%s8 + $0x468] sm:$0xff]
    %v4738 = vld [vmem:[%s8 + $0x470] sm:$0xff]
    %v4739 = vld [vmem:[%s8 + $0x478] sm:$0xf]
    %v4740 = vld [vmem:[%s8 + $0x47c] sm:$0xff]
    %v4741 = vld [vmem:[%s8 + $0x484] sm:$0xff]
    %v4742 = vld [vmem:[%s8 + $0x48c] sm:$0xff]
    %v4743 = vld [vmem:[%s8 + $0x494] sm:$0xf]
    %v4744 = vld [vmem:[%s8 + $0x498] sm:$0xff]
    %v4745 = vld [vmem:[%s8 + $0x4a0] sm:$0xff]
    %v4746 = vld [vmem:[%s8 + $0x4a8] sm:$0xff]
    %v4747 = vld [vmem:[%s8 + $0x4b0] sm:$0xf]
    %v4748 = vld [vmem:[%s8 + $0x4b4] sm:$0xff]
    %v4749 = vld [vmem:[%s8 + $0x4bc] sm:$0xff]
    %v4750 = vld [vmem:[%s8 + $0x4c4] sm:$0xff]
    %v4751 = vld [vmem:[%s8 + $0x4cc] sm:$0xf]
    %v4752 = vld [vmem:[%s8 + $0x4d0] sm:$0xff]
    %v4753 = vld [vmem:[%s8 + $0x4d8] sm:$0xff]
    %v4754 = vld [vmem:[%s8 + $0x4e0] sm:$0xff]
    %v4755 = vld [vmem:[%s8 + $0x4e8] sm:$0xf]
    %v4756 = vld [vmem:[%s8 + $0x4ec] sm:$0xff]
    %v4757 = vld [vmem:[%s8 + $0x4f4] sm:$0xff]
    %v4758 = vld [vmem:[%s8 + $0x4fc] sm:$0xff]
    %v4759 = vld [vmem:[%s8 + $0x504] sm:$0xf]
    %v4760 = vld [vmem:[%s8 + $0x508] sm:$0xff]
    %v4761 = vld [vmem:[%s8 + $0x510] sm:$0xff]
    %v4762 = vld [vmem:[%s8 + $0x518] sm:$0xff]
    %v4763 = vld [vmem:[%s8 + $0x520] sm:$0xf]
    %v4764 = vld [vmem:[%s8 + $0x524] sm:$0xff]
    %v4765 = vld [vmem:[%s8 + $0x52c] sm:$0xff]
    %v4766 = vld [vmem:[%s8 + $0x534] sm:$0xff]
    %v4767 = vld [vmem:[%s8 + $0x53c] sm:$0xf]
    %v4768 = vld [vmem:[%s8 + $0x540] sm:$0xff]
    %v4769 = vld [vmem:[%s8 + $0x548] sm:$0xff]
    %v4770 = vld [vmem:[%s8 + $0x550] sm:$0xff]
    %v4771 = vld [vmem:[%s8 + $0x558] sm:$0xf]
    %v4772 = vld [vmem:[%s8 + $0x55c] sm:$0xff]
    %v4773 = vld [vmem:[%s8 + $0x564] sm:$0xff]
    %v4774 = vld [vmem:[%s8 + $0x56c] sm:$0xff]
    %v4775 = vld [vmem:[%s8 + $0x574] sm:$0xf]
    %v4776 = vld [vmem:[%s8 + $0x578] sm:$0xff]
    %v4777 = vld [vmem:[%s8 + $0x580] sm:$0xff]
    %v4778 = vld [vmem:[%s8 + $0x588] sm:$0xff]
    %v4779 = vld [vmem:[%s8 + $0x590] sm:$0xf]
    %v4780 = vld [vmem:[%s8 + $0x594] sm:$0xff]
    %v4781 = vld [vmem:[%s8 + $0x59c] sm:$0xff]
    %v4782 = vld [vmem:[%s8 + $0x5a4] sm:$0xff]
    %v4783 = vld [vmem:[%s8 + $0x5ac] sm:$0xf]
    %v4784 = vld [vmem:[%s8 + $0x5b0] sm:$0xff]
    %v4785 = vld [vmem:[%s8 + $0x5b8] sm:$0xff]
    %v4786 = vld [vmem:[%s8 + $0x5c0] sm:$0xff]
    %v4787 = vld [vmem:[%s8 + $0x5c8] sm:$0xf]
    %v4788 = vld [vmem:[%s8 + $0x5cc] sm:$0xff]
    %v4789 = vld [vmem:[%s8 + $0x5d4] sm:$0xff]
    %v4790 = vld [vmem:[%s8 + $0x5dc] sm:$0xff]
    %v4791 = vld [vmem:[%s8 + $0x5e4] sm:$0xf]
    %v4792 = vld [vmem:[%s8 + $0x5e8] sm:$0xff]
    %v4793 = vld [vmem:[%s8 + $0x5f0] sm:$0xff]
    %v4794 = vld [vmem:[%s8 + $0x5f8] sm:$0xff]
    %v4795 = vld [vmem:[%s8 + $0x600] sm:$0xf]
    %v4796 = vld [vmem:[%s8 + $0x604] sm:$0xff]
    %v4797 = vld [vmem:[%s8 + $0x60c] sm:$0xff]
    %v4798 = vld [vmem:[%s8 + $0x614] sm:$0xff]
    %v4799 = vld [vmem:[%s8 + $0x61c] sm:$0xf]
    %v4800 = vld [vmem:[%s8 + $0x620] sm:$0xff]
    %v4801 = vld [vmem:[%s8 + $0x628] sm:$0xff]
    %v4802 = vld [vmem:[%s8 + $0x630] sm:$0xff]
    %v4803 = vld [vmem:[%s8 + $0x638] sm:$0xf]
    %v4804 = vld [vmem:[%s8 + $0x63c] sm:$0xff]
    %v4805 = vld [vmem:[%s8 + $0x644] sm:$0xff]
    %v4806 = vld [vmem:[%s8 + $0x64c] sm:$0xff]
    %v4807 = vld [vmem:[%s8 + $0x654] sm:$0xf]
    %v4808 = vld [vmem:[%s8 + $0x658] sm:$0xff]
    %v4809 = vld [vmem:[%s8 + $0x660] sm:$0xff]
    %v4810 = vld [vmem:[%s8 + $0x668] sm:$0xff]
    %v4811 = vld [vmem:[%s8 + $0x670] sm:$0xf]
    %v4812 = vld [vmem:[%s8 + $0x674] sm:$0xff]
    %v4813 = vld [vmem:[%s8 + $0x67c] sm:$0xff]
    %v4814 = vld [vmem:[%s8 + $0x684] sm:$0xff]
    %v4815 = vld [vmem:[%s8 + $0x68c] sm:$0xf]
    %v4816 = vld [vmem:[%s8 + $0x690] sm:$0xff]
    %v4817 = vld [vmem:[%s8 + $0x698] sm:$0xff]
    %v4818 = vld [vmem:[%s8 + $0x6a0] sm:$0xff]
    %v4819 = vld [vmem:[%s8 + $0x6a8] sm:$0xf]
    %v4820 = vld [vmem:[%s8 + $0x6ac] sm:$0xff]
    %v4821 = vld [vmem:[%s8 + $0x6b4] sm:$0xff]
    %v4822 = vld [vmem:[%s8 + $0x6bc] sm:$0xff]
    %v4823 = vld [vmem:[%s8 + $0x6c4] sm:$0xf]
    %v4824 = vld [vmem:[%s8 + $0x6c8] sm:$0xff]
    %v4825 = vld [vmem:[%s8 + $0x6d0] sm:$0xff]
    %v4826 = vld [vmem:[%s8 + $0x6d8] sm:$0xff]
    %v4827 = vld [vmem:[%s8 + $0x6e0] sm:$0xf]
    %v4828 = vld [vmem:[%s8 + $0x6e4] sm:$0xff]
    %v4829 = vld [vmem:[%s8 + $0x6ec] sm:$0xff]
    %v4830 = vld [vmem:[%s8 + $0x6f4] sm:$0xff]
    %v4831 = vld [vmem:[%s8 + $0x6fc] sm:$0xf]
    %v4832 = vld [vmem:[%s9] sm:$0xff]
    %v4834 = vperm.slane %v4832, 0
    %v4835 = vperm.slane %v4832, 1
    %v4836 = vperm.slane %v4832, 2
    %v4837 = vperm.slane %v4832, 3
    %v4838 = vperm.slane %v4832, 4
    %v4839 = vperm.slane %v4832, 5
    %v4840 = vperm.slane %v4832, 6
    %v5104 = vunpack.c.l.b16 %v4576
    %v5105 = vunpack.c.h.b16 %v4576
    %v5106 = vunpack.c.l.b16 %v4577
    %v5107 = vunpack.c.h.b16 %v4577
    %v5108 = vunpack.c.l.b16 %v4578
    %v5109 = vunpack.c.h.b16 %v4578
    %v5110 = vunpack.c.l.b16 %v4579
    %v5111 = vunpack.c.l.b16 %v4580
    %v5112 = vunpack.c.h.b16 %v4580
    %v5113 = vunpack.c.l.b16 %v4581
    %v5114 = vunpack.c.h.b16 %v4581
    %v5115 = vunpack.c.l.b16 %v4582
    %v5116 = vunpack.c.h.b16 %v4582
    %v5117 = vunpack.c.l.b16 %v4583
    %v5118 = vunpack.c.l.b16 %v4584
    %v5119 = vunpack.c.h.b16 %v4584
    %v5120 = vunpack.c.l.b16 %v4585
    %v5121 = vunpack.c.h.b16 %v4585
    %v5122 = vunpack.c.l.b16 %v4586
    %v5123 = vunpack.c.h.b16 %v4586
    %v5124 = vunpack.c.l.b16 %v4587
    %v5125 = vunpack.c.l.b16 %v4588
    %v5126 = vunpack.c.h.b16 %v4588
    %v5127 = vunpack.c.l.b16 %v4589
    %v5128 = vunpack.c.h.b16 %v4589
    %v5129 = vunpack.c.l.b16 %v4590
    %v5130 = vunpack.c.h.b16 %v4590
    %v5131 = vunpack.c.l.b16 %v4591
    %v5132 = vunpack.c.l.b16 %v4592
    %v5133 = vunpack.c.h.b16 %v4592
    %v5134 = vunpack.c.l.b16 %v4593
    %v5135 = vunpack.c.h.b16 %v4593
    %v5136 = vunpack.c.l.b16 %v4594
    %v5137 = vunpack.c.h.b16 %v4594
    %v5138 = vunpack.c.l.b16 %v4595
    %v5139 = vunpack.c.l.b16 %v4596
    %v5140 = vunpack.c.h.b16 %v4596
    %v5141 = vunpack.c.l.b16 %v4597
    %v5142 = vunpack.c.h.b16 %v4597
    %v5143 = vunpack.c.l.b16 %v4598
    %v5144 = vunpack.c.h.b16 %v4598
    %v5145 = vunpack.c.l.b16 %v4599
    %v5146 = vunpack.c.l.b16 %v4600
    %v5147 = vunpack.c.h.b16 %v4600
    %v5148 = vunpack.c.l.b16 %v4601
    %v5149 = vunpack.c.h.b16 %v4601
    %v5150 = vunpack.c.l.b16 %v4602
    %v5151 = vunpack.c.h.b16 %v4602
    %v5152 = vunpack.c.l.b16 %v4603
    %v5153 = vunpack.c.l.b16 %v4604
    %v5154 = vunpack.c.h.b16 %v4604
    %v5155 = vunpack.c.l.b16 %v4605
    %v5156 = vunpack.c.h.b16 %v4605
    %v5157 = vunpack.c.l.b16 %v4606
    %v5158 = vunpack.c.h.b16 %v4606
    %v5159 = vunpack.c.l.b16 %v4607
    %v5160 = vunpack.c.l.b16 %v4608
    %v5161 = vunpack.c.h.b16 %v4608
    %v5162 = vunpack.c.l.b16 %v4609
    %v5163 = vunpack.c.h.b16 %v4609
    %v5164 = vunpack.c.l.b16 %v4610
    %v5165 = vunpack.c.h.b16 %v4610
    %v5166 = vunpack.c.l.b16 %v4611
    %v5167 = vunpack.c.l.b16 %v4612
    %v5168 = vunpack.c.h.b16 %v4612
    %v5169 = vunpack.c.l.b16 %v4613
    %v5170 = vunpack.c.h.b16 %v4613
    %v5171 = vunpack.c.l.b16 %v4614
    %v5172 = vunpack.c.h.b16 %v4614
    %v5173 = vunpack.c.l.b16 %v4615
    %v5174 = vunpack.c.l.b16 %v4616
    %v5175 = vunpack.c.h.b16 %v4616
    %v5176 = vunpack.c.l.b16 %v4617
    %v5177 = vunpack.c.h.b16 %v4617
    %v5178 = vunpack.c.l.b16 %v4618
    %v5179 = vunpack.c.h.b16 %v4618
    %v5180 = vunpack.c.l.b16 %v4619
    %v5181 = vunpack.c.l.b16 %v4620
    %v5182 = vunpack.c.h.b16 %v4620
    %v5183 = vunpack.c.l.b16 %v4621
    %v5184 = vunpack.c.h.b16 %v4621
    %v5185 = vunpack.c.l.b16 %v4622
    %v5186 = vunpack.c.h.b16 %v4622
    %v5187 = vunpack.c.l.b16 %v4623
    %v5188 = vunpack.c.l.b16 %v4624
    %v5189 = vunpack.c.h.b16 %v4624
    %v5190 = vunpack.c.l.b16 %v4625
    %v5191 = vunpack.c.h.b16 %v4625
    %v5192 = vunpack.c.l.b16 %v4626
    %v5193 = vunpack.c.h.b16 %v4626
    %v5194 = vunpack.c.l.b16 %v4627
    %v5195 = vunpack.c.l.b16 %v4628
    %v5196 = vunpack.c.h.b16 %v4628
    %v5197 = vunpack.c.l.b16 %v4629
    %v5198 = vunpack.c.h.b16 %v4629
    %v5199 = vunpack.c.l.b16 %v4630
    %v5200 = vunpack.c.h.b16 %v4630
    %v5201 = vunpack.c.l.b16 %v4631
    %v5202 = vunpack.c.l.b16 %v4632
    %v5203 = vunpack.c.h.b16 %v4632
    %v5204 = vunpack.c.l.b16 %v4633
    %v5205 = vunpack.c.h.b16 %v4633
    %v5206 = vunpack.c.l.b16 %v4634
    %v5207 = vunpack.c.h.b16 %v4634
    %v5208 = vunpack.c.l.b16 %v4635
    %v5209 = vunpack.c.l.b16 %v4636
    %v5210 = vunpack.c.h.b16 %v4636
    %v5211 = vunpack.c.l.b16 %v4637
    %v5212 = vunpack.c.h.b16 %v4637
    %v5213 = vunpack.c.l.b16 %v4638
    %v5214 = vunpack.c.h.b16 %v4638
    %v5215 = vunpack.c.l.b16 %v4639
    %v5216 = vunpack.c.l.b16 %v4640
    %v5217 = vunpack.c.h.b16 %v4640
    %v5218 = vunpack.c.l.b16 %v4641
    %v5219 = vunpack.c.h.b16 %v4641
    %v5220 = vunpack.c.l.b16 %v4642
    %v5221 = vunpack.c.h.b16 %v4642
    %v5222 = vunpack.c.l.b16 %v4643
    %v5223 = vunpack.c.l.b16 %v4644
    %v5224 = vunpack.c.h.b16 %v4644
    %v5225 = vunpack.c.l.b16 %v4645
    %v5226 = vunpack.c.h.b16 %v4645
    %v5227 = vunpack.c.l.b16 %v4646
    %v5228 = vunpack.c.h.b16 %v4646
    %v5229 = vunpack.c.l.b16 %v4647
    %v5230 = vunpack.c.l.b16 %v4648
    %v5231 = vunpack.c.h.b16 %v4648
    %v5232 = vunpack.c.l.b16 %v4649
    %v5233 = vunpack.c.h.b16 %v4649
    %v5234 = vunpack.c.l.b16 %v4650
    %v5235 = vunpack.c.h.b16 %v4650
    %v5236 = vunpack.c.l.b16 %v4651
    %v5237 = vunpack.c.l.b16 %v4652
    %v5238 = vunpack.c.h.b16 %v4652
    %v5239 = vunpack.c.l.b16 %v4653
    %v5240 = vunpack.c.h.b16 %v4653
    %v5241 = vunpack.c.l.b16 %v4654
    %v5242 = vunpack.c.h.b16 %v4654
    %v5243 = vunpack.c.l.b16 %v4655
    %v5244 = vunpack.c.l.b16 %v4656
    %v5245 = vunpack.c.h.b16 %v4656
    %v5246 = vunpack.c.l.b16 %v4657
    %v5247 = vunpack.c.h.b16 %v4657
    %v5248 = vunpack.c.l.b16 %v4658
    %v5249 = vunpack.c.h.b16 %v4658
    %v5250 = vunpack.c.l.b16 %v4659
    %v5251 = vunpack.c.l.b16 %v4660
    %v5252 = vunpack.c.h.b16 %v4660
    %v5253 = vunpack.c.l.b16 %v4661
    %v5254 = vunpack.c.h.b16 %v4661
    %v5255 = vunpack.c.l.b16 %v4662
    %v5256 = vunpack.c.h.b16 %v4662
    %v5257 = vunpack.c.l.b16 %v4663
    %v5258 = vunpack.c.l.b16 %v4664
    %v5259 = vunpack.c.h.b16 %v4664
    %v5260 = vunpack.c.l.b16 %v4665
    %v5261 = vunpack.c.h.b16 %v4665
    %v5262 = vunpack.c.l.b16 %v4666
    %v5263 = vunpack.c.h.b16 %v4666
    %v5264 = vunpack.c.l.b16 %v4667
    %v5265 = vunpack.c.l.b16 %v4668
    %v5266 = vunpack.c.h.b16 %v4668
    %v5267 = vunpack.c.l.b16 %v4669
    %v5268 = vunpack.c.h.b16 %v4669
    %v5269 = vunpack.c.l.b16 %v4670
    %v5270 = vunpack.c.h.b16 %v4670
    %v5271 = vunpack.c.l.b16 %v4671
    %v5272 = vunpack.c.l.b16 %v4672
    %v5273 = vunpack.c.h.b16 %v4672
    %v5274 = vunpack.c.l.b16 %v4673
    %v5275 = vunpack.c.h.b16 %v4673
    %v5276 = vunpack.c.l.b16 %v4674
    %v5277 = vunpack.c.h.b16 %v4674
    %v5278 = vunpack.c.l.b16 %v4675
    %v5279 = vunpack.c.l.b16 %v4676
    %v5280 = vunpack.c.h.b16 %v4676
    %v5281 = vunpack.c.l.b16 %v4677
    %v5282 = vunpack.c.h.b16 %v4677
    %v5283 = vunpack.c.l.b16 %v4678
    %v5284 = vunpack.c.h.b16 %v4678
    %v5285 = vunpack.c.l.b16 %v4679
    %v5286 = vunpack.c.l.b16 %v4680
    %v5287 = vunpack.c.h.b16 %v4680
    %v5288 = vunpack.c.l.b16 %v4681
    %v5289 = vunpack.c.h.b16 %v4681
    %v5290 = vunpack.c.l.b16 %v4682
    %v5291 = vunpack.c.h.b16 %v4682
    %v5292 = vunpack.c.l.b16 %v4683
    %v5293 = vunpack.c.l.b16 %v4684
    %v5294 = vunpack.c.h.b16 %v4684
    %v5295 = vunpack.c.l.b16 %v4685
    %v5296 = vunpack.c.h.b16 %v4685
    %v5297 = vunpack.c.l.b16 %v4686
    %v5298 = vunpack.c.h.b16 %v4686
    %v5299 = vunpack.c.l.b16 %v4687
    %v5300 = vunpack.c.l.b16 %v4688
    %v5301 = vunpack.c.h.b16 %v4688
    %v5302 = vunpack.c.l.b16 %v4689
    %v5303 = vunpack.c.h.b16 %v4689
    %v5304 = vunpack.c.l.b16 %v4690
    %v5305 = vunpack.c.h.b16 %v4690
    %v5306 = vunpack.c.l.b16 %v4691
    %v5307 = vunpack.c.l.b16 %v4692
    %v5308 = vunpack.c.h.b16 %v4692
    %v5309 = vunpack.c.l.b16 %v4693
    %v5310 = vunpack.c.h.b16 %v4693
    %v5311 = vunpack.c.l.b16 %v4694
    %v5312 = vunpack.c.h.b16 %v4694
    %v5313 = vunpack.c.l.b16 %v4695
    %v5314 = vunpack.c.l.b16 %v4696
    %v5315 = vunpack.c.h.b16 %v4696
    %v5316 = vunpack.c.l.b16 %v4697
    %v5317 = vunpack.c.h.b16 %v4697
    %v5318 = vunpack.c.l.b16 %v4698
    %v5319 = vunpack.c.h.b16 %v4698
    %v5320 = vunpack.c.l.b16 %v4699
    %v5321 = vunpack.c.l.b16 %v4700
    %v5322 = vunpack.c.h.b16 %v4700
    %v5323 = vunpack.c.l.b16 %v4701
    %v5324 = vunpack.c.h.b16 %v4701
    %v5325 = vunpack.c.l.b16 %v4702
    %v5326 = vunpack.c.h.b16 %v4702
    %v5327 = vunpack.c.l.b16 %v4703
    %v5328 = vunpack.c.l.b16 %v4704
    %v5329 = vunpack.c.h.b16 %v4704
    %v5330 = vunpack.c.l.b16 %v4705
    %v5331 = vunpack.c.h.b16 %v4705
    %v5332 = vunpack.c.l.b16 %v4706
    %v5333 = vunpack.c.h.b16 %v4706
    %v5334 = vunpack.c.l.b16 %v4707
    %v5335 = vunpack.c.l.b16 %v4708
    %v5336 = vunpack.c.h.b16 %v4708
    %v5337 = vunpack.c.l.b16 %v4709
    %v5338 = vunpack.c.h.b16 %v4709
    %v5339 = vunpack.c.l.b16 %v4710
    %v5340 = vunpack.c.h.b16 %v4710
    %v5341 = vunpack.c.l.b16 %v4711
    %v5342 = vunpack.c.l.b16 %v4712
    %v5343 = vunpack.c.h.b16 %v4712
    %v5344 = vunpack.c.l.b16 %v4713
    %v5345 = vunpack.c.h.b16 %v4713
    %v5346 = vunpack.c.l.b16 %v4714
    %v5347 = vunpack.c.h.b16 %v4714
    %v5348 = vunpack.c.l.b16 %v4715
    %v5349 = vunpack.c.l.b16 %v4716
    %v5350 = vunpack.c.h.b16 %v4716
    %v5351 = vunpack.c.l.b16 %v4717
    %v5352 = vunpack.c.h.b16 %v4717
    %v5353 = vunpack.c.l.b16 %v4718
    %v5354 = vunpack.c.h.b16 %v4718
    %v5355 = vunpack.c.l.b16 %v4719
    %v5356 = vunpack.c.l.b16 %v4720
    %v5357 = vunpack.c.h.b16 %v4720
    %v5358 = vunpack.c.l.b16 %v4721
    %v5359 = vunpack.c.h.b16 %v4721
    %v5360 = vunpack.c.l.b16 %v4722
    %v5361 = vunpack.c.h.b16 %v4722
    %v5362 = vunpack.c.l.b16 %v4723
    %v5363 = vunpack.c.l.b16 %v4724
    %v5364 = vunpack.c.h.b16 %v4724
    %v5365 = vunpack.c.l.b16 %v4725
    %v5366 = vunpack.c.h.b16 %v4725
    %v5367 = vunpack.c.l.b16 %v4726
    %v5368 = vunpack.c.h.b16 %v4726
    %v5369 = vunpack.c.l.b16 %v4727
    %v5370 = vunpack.c.l.b16 %v4728
    %v5371 = vunpack.c.h.b16 %v4728
    %v5372 = vunpack.c.l.b16 %v4729
    %v5373 = vunpack.c.h.b16 %v4729
    %v5374 = vunpack.c.l.b16 %v4730
    %v5375 = vunpack.c.h.b16 %v4730
    %v5376 = vunpack.c.l.b16 %v4731
    %v5377 = vunpack.c.l.b16 %v4732
    %v5378 = vunpack.c.h.b16 %v4732
    %v5379 = vunpack.c.l.b16 %v4733
    %v5380 = vunpack.c.h.b16 %v4733
    %v5381 = vunpack.c.l.b16 %v4734
    %v5382 = vunpack.c.h.b16 %v4734
    %v5383 = vunpack.c.l.b16 %v4735
    %v5384 = vunpack.c.l.b16 %v4736
    %v5385 = vunpack.c.h.b16 %v4736
    %v5386 = vunpack.c.l.b16 %v4737
    %v5387 = vunpack.c.h.b16 %v4737
    %v5388 = vunpack.c.l.b16 %v4738
    %v5389 = vunpack.c.h.b16 %v4738
    %v5390 = vunpack.c.l.b16 %v4739
    %v5391 = vunpack.c.l.b16 %v4740
    %v5392 = vunpack.c.h.b16 %v4740
    %v5393 = vunpack.c.l.b16 %v4741
    %v5394 = vunpack.c.h.b16 %v4741
    %v5395 = vunpack.c.l.b16 %v4742
    %v5396 = vunpack.c.h.b16 %v4742
    %v5397 = vunpack.c.l.b16 %v4743
    %v5398 = vunpack.c.l.b16 %v4744
    %v5399 = vunpack.c.h.b16 %v4744
    %v5400 = vunpack.c.l.b16 %v4745
    %v5401 = vunpack.c.h.b16 %v4745
    %v5402 = vunpack.c.l.b16 %v4746
    %v5403 = vunpack.c.h.b16 %v4746
    %v5404 = vunpack.c.l.b16 %v4747
    %v5405 = vunpack.c.l.b16 %v4748
    %v5406 = vunpack.c.h.b16 %v4748
    %v5407 = vunpack.c.l.b16 %v4749
    %v5408 = vunpack.c.h.b16 %v4749
    %v5409 = vunpack.c.l.b16 %v4750
    %v5410 = vunpack.c.h.b16 %v4750
    %v5411 = vunpack.c.l.b16 %v4751
    %v5412 = vunpack.c.l.b16 %v4752
    %v5413 = vunpack.c.h.b16 %v4752
    %v5414 = vunpack.c.l.b16 %v4753
    %v5415 = vunpack.c.h.b16 %v4753
    %v5416 = vunpack.c.l.b16 %v4754
    %v5417 = vunpack.c.h.b16 %v4754
    %v5418 = vunpack.c.l.b16 %v4755
    %v5419 = vunpack.c.l.b16 %v4756
    %v5420 = vunpack.c.h.b16 %v4756
    %v5421 = vunpack.c.l.b16 %v4757
    %v5422 = vunpack.c.h.b16 %v4757
    %v5423 = vunpack.c.l.b16 %v4758
    %v5424 = vunpack.c.h.b16 %v4758
    %v5425 = vunpack.c.l.b16 %v4759
    %v5426 = vunpack.c.l.b16 %v4760
    %v5427 = vunpack.c.h.b16 %v4760
    %v5428 = vunpack.c.l.b16 %v4761
    %v5429 = vunpack.c.h.b16 %v4761
    %v5430 = vunpack.c.l.b16 %v4762
    %v5431 = vunpack.c.h.b16 %v4762
    %v5432 = vunpack.c.l.b16 %v4763
    %v5433 = vunpack.c.l.b16 %v4764
    %v5434 = vunpack.c.h.b16 %v4764
    %v5435 = vunpack.c.l.b16 %v4765
    %v5436 = vunpack.c.h.b16 %v4765
    %v5437 = vunpack.c.l.b16 %v4766
    %v5438 = vunpack.c.h.b16 %v4766
    %v5439 = vunpack.c.l.b16 %v4767
    %v5440 = vunpack.c.l.b16 %v4768
    %v5441 = vunpack.c.h.b16 %v4768
    %v5442 = vunpack.c.l.b16 %v4769
    %v5443 = vunpack.c.h.b16 %v4769
    %v5444 = vunpack.c.l.b16 %v4770
    %v5445 = vunpack.c.h.b16 %v4770
    %v5446 = vunpack.c.l.b16 %v4771
    %v5447 = vunpack.c.l.b16 %v4772
    %v5448 = vunpack.c.h.b16 %v4772
    %v5449 = vunpack.c.l.b16 %v4773
    %v5450 = vunpack.c.h.b16 %v4773
    %v5451 = vunpack.c.l.b16 %v4774
    %v5452 = vunpack.c.h.b16 %v4774
    %v5453 = vunpack.c.l.b16 %v4775
    %v5454 = vunpack.c.l.b16 %v4776
    %v5455 = vunpack.c.h.b16 %v4776
    %v5456 = vunpack.c.l.b16 %v4777
    %v5457 = vunpack.c.h.b16 %v4777
    %v5458 = vunpack.c.l.b16 %v4778
    %v5459 = vunpack.c.h.b16 %v4778
    %v5460 = vunpack.c.l.b16 %v4779
    %v5461 = vunpack.c.l.b16 %v4780
    %v5462 = vunpack.c.h.b16 %v4780
    %v5463 = vunpack.c.l.b16 %v4781
    %v5464 = vunpack.c.h.b16 %v4781
    %v5465 = vunpack.c.l.b16 %v4782
    %v5466 = vunpack.c.h.b16 %v4782
    %v5467 = vunpack.c.l.b16 %v4783
    %v5468 = vunpack.c.l.b16 %v4784
    %v5469 = vunpack.c.h.b16 %v4784
    %v5470 = vunpack.c.l.b16 %v4785
    %v5471 = vunpack.c.h.b16 %v4785
    %v5472 = vunpack.c.l.b16 %v4786
    %v5473 = vunpack.c.h.b16 %v4786
    %v5474 = vunpack.c.l.b16 %v4787
    %v5475 = vunpack.c.l.b16 %v4788
    %v5476 = vunpack.c.h.b16 %v4788
    %v5477 = vunpack.c.l.b16 %v4789
    %v5478 = vunpack.c.h.b16 %v4789
    %v5479 = vunpack.c.l.b16 %v4790
    %v5480 = vunpack.c.h.b16 %v4790
    %v5481 = vunpack.c.l.b16 %v4791
    %v5482 = vunpack.c.l.b16 %v4792
    %v5483 = vunpack.c.h.b16 %v4792
    %v5484 = vunpack.c.l.b16 %v4793
    %v5485 = vunpack.c.h.b16 %v4793
    %v5486 = vunpack.c.l.b16 %v4794
    %v5487 = vunpack.c.h.b16 %v4794
    %v5488 = vunpack.c.l.b16 %v4795
    %v5489 = vunpack.c.l.b16 %v4796
    %v5490 = vunpack.c.h.b16 %v4796
    %v5491 = vunpack.c.l.b16 %v4797
    %v5492 = vunpack.c.h.b16 %v4797
    %v5493 = vunpack.c.l.b16 %v4798
    %v5494 = vunpack.c.h.b16 %v4798
    %v5495 = vunpack.c.l.b16 %v4799
    %v5496 = vunpack.c.l.b16 %v4800
    %v5497 = vunpack.c.h.b16 %v4800
    %v5498 = vunpack.c.l.b16 %v4801
    %v5499 = vunpack.c.h.b16 %v4801
    %v5500 = vunpack.c.l.b16 %v4802
    %v5501 = vunpack.c.h.b16 %v4802
    %v5502 = vunpack.c.l.b16 %v4803
    %v5503 = vunpack.c.l.b16 %v4804
    %v5504 = vunpack.c.h.b16 %v4804
    %v5505 = vunpack.c.l.b16 %v4805
    %v5506 = vunpack.c.h.b16 %v4805
    %v5507 = vunpack.c.l.b16 %v4806
    %v5508 = vunpack.c.h.b16 %v4806
    %v5509 = vunpack.c.l.b16 %v4807
    %v5510 = vunpack.c.l.b16 %v4808
    %v5511 = vunpack.c.h.b16 %v4808
    %v5512 = vunpack.c.l.b16 %v4809
    %v5513 = vunpack.c.h.b16 %v4809
    %v5514 = vunpack.c.l.b16 %v4810
    %v5515 = vunpack.c.h.b16 %v4810
    %v5516 = vunpack.c.l.b16 %v4811
    %v5517 = vunpack.c.l.b16 %v4812
    %v5518 = vunpack.c.h.b16 %v4812
    %v5519 = vunpack.c.l.b16 %v4813
    %v5520 = vunpack.c.h.b16 %v4813
    %v5521 = vunpack.c.l.b16 %v4814
    %v5522 = vunpack.c.h.b16 %v4814
    %v5523 = vunpack.c.l.b16 %v4815
    %v5524 = vunpack.c.l.b16 %v4816
    %v5525 = vunpack.c.h.b16 %v4816
    %v5526 = vunpack.c.l.b16 %v4817
    %v5527 = vunpack.c.h.b16 %v4817
    %v5528 = vunpack.c.l.b16 %v4818
    %v5529 = vunpack.c.h.b16 %v4818
    %v5530 = vunpack.c.l.b16 %v4819
    %v5531 = vunpack.c.l.b16 %v4820
    %v5532 = vunpack.c.h.b16 %v4820
    %v5533 = vunpack.c.l.b16 %v4821
    %v5534 = vunpack.c.h.b16 %v4821
    %v5535 = vunpack.c.l.b16 %v4822
    %v5536 = vunpack.c.h.b16 %v4822
    %v5537 = vunpack.c.l.b16 %v4823
    %v5538 = vunpack.c.l.b16 %v4824
    %v5539 = vunpack.c.h.b16 %v4824
    %v5540 = vunpack.c.l.b16 %v4825
    %v5541 = vunpack.c.h.b16 %v4825
    %v5542 = vunpack.c.l.b16 %v4826
    %v5543 = vunpack.c.h.b16 %v4826
    %v5544 = vunpack.c.l.b16 %v4827
    %v5545 = vunpack.c.l.b16 %v4828
    %v5546 = vunpack.c.h.b16 %v4828
    %v5547 = vunpack.c.l.b16 %v4829
    %v5548 = vunpack.c.h.b16 %v4829
    %v5549 = vunpack.c.l.b16 %v4830
    %v5550 = vunpack.c.h.b16 %v4830
    %v5551 = vunpack.c.l.b16 %v4831
    %v5552 = vpack.c.b16 %v5111, %v5104
    %v5553 = vpack.c.b16 %v5112, %v5105
    %v5554 = vpack.c.b16 %v5113, %v5106
    %v5555 = vpack.c.b16 %v5114, %v5107
    %v5556 = vpack.c.b16 %v5115, %v5108
    %v5557 = vpack.c.b16 %v5116, %v5109
    %v5558 = vpack.c.b16 %v5117, %v5110
    %v5559 = vpack.c.b16 %v5125, %v5118
    %v5560 = vpack.c.b16 %v5126, %v5119
    %v5561 = vpack.c.b16 %v5127, %v5120
    %v5562 = vpack.c.b16 %v5128, %v5121
    %v5563 = vpack.c.b16 %v5129, %v5122
    %v5564 = vpack.c.b16 %v5130, %v5123
    %v5565 = vpack.c.b16 %v5131, %v5124
    %v5566 = vpack.c.b16 %v5139, %v5132
    %v5567 = vpack.c.b16 %v5140, %v5133
    %v5568 = vpack.c.b16 %v5141, %v5134
    %v5569 = vpack.c.b16 %v5142, %v5135
    %v5570 = vpack.c.b16 %v5143, %v5136
    %v5571 = vpack.c.b16 %v5144, %v5137
    %v5572 = vpack.c.b16 %v5145, %v5138
    %v5573 = vpack.c.b16 %v5153, %v5146
    %v5574 = vpack.c.b16 %v5154, %v5147
    %v5575 = vpack.c.b16 %v5155, %v5148
    %v5576 = vpack.c.b16 %v5156, %v5149
    %v5577 = vpack.c.b16 %v5157, %v5150
    %v5578 = vpack.c.b16 %v5158, %v5151
    %v5579 = vpack.c.b16 %v5159, %v5152
    %v5580 = vpack.c.b16 %v5167, %v5160
    %v5581 = vpack.c.b16 %v5168, %v5161
    %v5582 = vpack.c.b16 %v5169, %v5162
    %v5583 = vpack.c.b16 %v5170, %v5163
    %v5584 = vpack.c.b16 %v5171, %v5164
    %v5585 = vpack.c.b16 %v5172, %v5165
    %v5586 = vpack.c.b16 %v5173, %v5166
    %v5587 = vpack.c.b16 %v5181, %v5174
    %v5588 = vpack.c.b16 %v5182, %v5175
    %v5589 = vpack.c.b16 %v5183, %v5176
    %v5590 = vpack.c.b16 %v5184, %v5177
    %v5591 = vpack.c.b16 %v5185, %v5178
    %v5592 = vpack.c.b16 %v5186, %v5179
    %v5593 = vpack.c.b16 %v5187, %v5180
    %v5594 = vpack.c.b16 %v5195, %v5188
    %v5595 = vpack.c.b16 %v5196, %v5189
    %v5596 = vpack.c.b16 %v5197, %v5190
    %v5597 = vpack.c.b16 %v5198, %v5191
    %v5598 = vpack.c.b16 %v5199, %v5192
    %v5599 = vpack.c.b16 %v5200, %v5193
    %v5600 = vpack.c.b16 %v5201, %v5194
    %v5601 = vpack.c.b16 %v5209, %v5202
    %v5602 = vpack.c.b16 %v5210, %v5203
    %v5603 = vpack.c.b16 %v5211, %v5204
    %v5604 = vpack.c.b16 %v5212, %v5205
    %v5605 = vpack.c.b16 %v5213, %v5206
    %v5606 = vpack.c.b16 %v5214, %v5207
    %v5607 = vpack.c.b16 %v5215, %v5208
    %v5608 = vpack.c.b16 %v5223, %v5216
    %v5609 = vpack.c.b16 %v5224, %v5217
    %v5610 = vpack.c.b16 %v5225, %v5218
    %v5611 = vpack.c.b16 %v5226, %v5219
    %v5612 = vpack.c.b16 %v5227, %v5220
    %v5613 = vpack.c.b16 %v5228, %v5221
    %v5614 = vpack.c.b16 %v5229, %v5222
    %v5615 = vpack.c.b16 %v5237, %v5230
    %v5616 = vpack.c.b16 %v5238, %v5231
    %v5617 = vpack.c.b16 %v5239, %v5232
    %v5618 = vpack.c.b16 %v5240, %v5233
    %v5619 = vpack.c.b16 %v5241, %v5234
    %v5620 = vpack.c.b16 %v5242, %v5235
    %v5621 = vpack.c.b16 %v5243, %v5236
    %v5622 = vpack.c.b16 %v5251, %v5244
    %v5623 = vpack.c.b16 %v5252, %v5245
    %v5624 = vpack.c.b16 %v5253, %v5246
    %v5625 = vpack.c.b16 %v5254, %v5247
    %v5626 = vpack.c.b16 %v5255, %v5248
    %v5627 = vpack.c.b16 %v5256, %v5249
    %v5628 = vpack.c.b16 %v5257, %v5250
    %v5629 = vpack.c.b16 %v5265, %v5258
    %v5630 = vpack.c.b16 %v5266, %v5259
    %v5631 = vpack.c.b16 %v5267, %v5260
    %v5632 = vpack.c.b16 %v5268, %v5261
    %v5633 = vpack.c.b16 %v5269, %v5262
    %v5634 = vpack.c.b16 %v5270, %v5263
    %v5635 = vpack.c.b16 %v5271, %v5264
    %v5636 = vpack.c.b16 %v5279, %v5272
    %v5637 = vpack.c.b16 %v5280, %v5273
    %v5638 = vpack.c.b16 %v5281, %v5274
    %v5639 = vpack.c.b16 %v5282, %v5275
    %v5640 = vpack.c.b16 %v5283, %v5276
    %v5641 = vpack.c.b16 %v5284, %v5277
    %v5642 = vpack.c.b16 %v5285, %v5278
    %v5643 = vpack.c.b16 %v5293, %v5286
    %v5644 = vpack.c.b16 %v5294, %v5287
    %v5645 = vpack.c.b16 %v5295, %v5288
    %v5646 = vpack.c.b16 %v5296, %v5289
    %v5647 = vpack.c.b16 %v5297, %v5290
    %v5648 = vpack.c.b16 %v5298, %v5291
    %v5649 = vpack.c.b16 %v5299, %v5292
    %v5650 = vpack.c.b16 %v5307, %v5300
    %v5651 = vpack.c.b16 %v5308, %v5301
    %v5652 = vpack.c.b16 %v5309, %v5302
    %v5653 = vpack.c.b16 %v5310, %v5303
    %v5654 = vpack.c.b16 %v5311, %v5304
    %v5655 = vpack.c.b16 %v5312, %v5305
    %v5656 = vpack.c.b16 %v5313, %v5306
    %v5657 = vpack.c.b16 %v5321, %v5314
    %v5658 = vpack.c.b16 %v5322, %v5315
    %v5659 = vpack.c.b16 %v5323, %v5316
    %v5660 = vpack.c.b16 %v5324, %v5317
    %v5661 = vpack.c.b16 %v5325, %v5318
    %v5662 = vpack.c.b16 %v5326, %v5319
    %v5663 = vpack.c.b16 %v5327, %v5320
    %v5664 = vpack.c.b16 %v5335, %v5328
    %v5665 = vpack.c.b16 %v5336, %v5329
    %v5666 = vpack.c.b16 %v5337, %v5330
    %v5667 = vpack.c.b16 %v5338, %v5331
    %v5668 = vpack.c.b16 %v5339, %v5332
    %v5669 = vpack.c.b16 %v5340, %v5333
    %v5670 = vpack.c.b16 %v5341, %v5334
    %v5671 = vpack.c.b16 %v5349, %v5342
    %v5672 = vpack.c.b16 %v5350, %v5343
    %v5673 = vpack.c.b16 %v5351, %v5344
    %v5674 = vpack.c.b16 %v5352, %v5345
    %v5675 = vpack.c.b16 %v5353, %v5346
    %v5676 = vpack.c.b16 %v5354, %v5347
    %v5677 = vpack.c.b16 %v5355, %v5348
    %v5678 = vpack.c.b16 %v5363, %v5356
    %v5679 = vpack.c.b16 %v5364, %v5357
    %v5680 = vpack.c.b16 %v5365, %v5358
    %v5681 = vpack.c.b16 %v5366, %v5359
    %v5682 = vpack.c.b16 %v5367, %v5360
    %v5683 = vpack.c.b16 %v5368, %v5361
    %v5684 = vpack.c.b16 %v5369, %v5362
    %v5685 = vpack.c.b16 %v5377, %v5370
    %v5686 = vpack.c.b16 %v5378, %v5371
    %v5687 = vpack.c.b16 %v5379, %v5372
    %v5688 = vpack.c.b16 %v5380, %v5373
    %v5689 = vpack.c.b16 %v5381, %v5374
    %v5690 = vpack.c.b16 %v5382, %v5375
    %v5691 = vpack.c.b16 %v5383, %v5376
    %v5692 = vpack.c.b16 %v5391, %v5384
    %v5693 = vpack.c.b16 %v5392, %v5385
    %v5694 = vpack.c.b16 %v5393, %v5386
    %v5695 = vpack.c.b16 %v5394, %v5387
    %v5696 = vpack.c.b16 %v5395, %v5388
    %v5697 = vpack.c.b16 %v5396, %v5389
    %v5698 = vpack.c.b16 %v5397, %v5390
    %v5699 = vpack.c.b16 %v5405, %v5398
    %v5700 = vpack.c.b16 %v5406, %v5399
    %v5701 = vpack.c.b16 %v5407, %v5400
    %v5702 = vpack.c.b16 %v5408, %v5401
    %v5703 = vpack.c.b16 %v5409, %v5402
    %v5704 = vpack.c.b16 %v5410, %v5403
    %v5705 = vpack.c.b16 %v5411, %v5404
    %v5706 = vpack.c.b16 %v5419, %v5412
    %v5707 = vpack.c.b16 %v5420, %v5413
    %v5708 = vpack.c.b16 %v5421, %v5414
    %v5709 = vpack.c.b16 %v5422, %v5415
    %v5710 = vpack.c.b16 %v5423, %v5416
    %v5711 = vpack.c.b16 %v5424, %v5417
    %v5712 = vpack.c.b16 %v5425, %v5418
    %v5713 = vpack.c.b16 %v5433, %v5426
    %v5714 = vpack.c.b16 %v5434, %v5427
    %v5715 = vpack.c.b16 %v5435, %v5428
    %v5716 = vpack.c.b16 %v5436, %v5429
    %v5717 = vpack.c.b16 %v5437, %v5430
    %v5718 = vpack.c.b16 %v5438, %v5431
    %v5719 = vpack.c.b16 %v5439, %v5432
    %v5720 = vpack.c.b16 %v5447, %v5440
    %v5721 = vpack.c.b16 %v5448, %v5441
    %v5722 = vpack.c.b16 %v5449, %v5442
    %v5723 = vpack.c.b16 %v5450, %v5443
    %v5724 = vpack.c.b16 %v5451, %v5444
    %v5725 = vpack.c.b16 %v5452, %v5445
    %v5726 = vpack.c.b16 %v5453, %v5446
    %v5727 = vpack.c.b16 %v5461, %v5454
    %v5728 = vpack.c.b16 %v5462, %v5455
    %v5729 = vpack.c.b16 %v5463, %v5456
    %v5730 = vpack.c.b16 %v5464, %v5457
    %v5731 = vpack.c.b16 %v5465, %v5458
    %v5732 = vpack.c.b16 %v5466, %v5459
    %v5733 = vpack.c.b16 %v5467, %v5460
    %v5734 = vpack.c.b16 %v5475, %v5468
    %v5735 = vpack.c.b16 %v5476, %v5469
    %v5736 = vpack.c.b16 %v5477, %v5470
    %v5737 = vpack.c.b16 %v5478, %v5471
    %v5738 = vpack.c.b16 %v5479, %v5472
    %v5739 = vpack.c.b16 %v5480, %v5473
    %v5740 = vpack.c.b16 %v5481, %v5474
    %v5741 = vpack.c.b16 %v5489, %v5482
    %v5742 = vpack.c.b16 %v5490, %v5483
    %v5743 = vpack.c.b16 %v5491, %v5484
    %v5744 = vpack.c.b16 %v5492, %v5485
    %v5745 = vpack.c.b16 %v5493, %v5486
    %v5746 = vpack.c.b16 %v5494, %v5487
    %v5747 = vpack.c.b16 %v5495, %v5488
    %v5748 = vpack.c.b16 %v5503, %v5496
    %v5749 = vpack.c.b16 %v5504, %v5497
    %v5750 = vpack.c.b16 %v5505, %v5498
    %v5751 = vpack.c.b16 %v5506, %v5499
    %v5752 = vpack.c.b16 %v5507, %v5500
    %v5753 = vpack.c.b16 %v5508, %v5501
    %v5754 = vpack.c.b16 %v5509, %v5502
    %v5755 = vpack.c.b16 %v5517, %v5510
    %v5756 = vpack.c.b16 %v5518, %v5511
    %v5757 = vpack.c.b16 %v5519, %v5512
    %v5758 = vpack.c.b16 %v5520, %v5513
    %v5759 = vpack.c.b16 %v5521, %v5514
    %v5760 = vpack.c.b16 %v5522, %v5515
    %v5761 = vpack.c.b16 %v5523, %v5516
    %v5762 = vpack.c.b16 %v5531, %v5524
    %v5763 = vpack.c.b16 %v5532, %v5525
    %v5764 = vpack.c.b16 %v5533, %v5526
    %v5765 = vpack.c.b16 %v5534, %v5527
    %v5766 = vpack.c.b16 %v5535, %v5528
    %v5767 = vpack.c.b16 %v5536, %v5529
    %v5768 = vpack.c.b16 %v5537, %v5530
    %v5769 = vpack.c.b16 %v5545, %v5538
    %v5770 = vpack.c.b16 %v5546, %v5539
    %v5771 = vpack.c.b16 %v5547, %v5540
    %v5772 = vpack.c.b16 %v5548, %v5541
    %v5773 = vpack.c.b16 %v5549, %v5542
    %v5774 = vpack.c.b16 %v5550, %v5543
    %v5775 = vpack.c.b16 %v5551, %v5544
    %6000 = vmatpush.bf16.msra.mxu0 %v5601
    %6001 = vmatpush.bf16.msra.mxu0 %v5594
    %6002 = vmatpush.bf16.msra.mxu0 %v5587
    %6003 = vmatpush.bf16.msra.mxu0 %v5580
    %6004 = vmatpush.bf16.msra.mxu0 %v5573
    %6005 = vmatpush.bf16.msra.mxu0 %v5566
    %6006 = vmatpush.bf16.msra.mxu0 %v5559
    %6007 = vmatpush.bf16.msra.mxu0 %v5552
    %6008 = vmatmul.bf16.gmra.mxu0 %v4568
    %v6009 = vpop.f32.mrf.mxu0
    %v6010 = vadd.f32 %v4834, %v6009
    %v6011 = vpop.f32.mrf.mxu0
    %v6012 = vadd.f32 %v4834, %v6011
    %6013 = vmatmul.bf16.gmra.mxu0 %v4572
    %v6014 = vpop.f32.mrf.mxu0
    %v6015 = vadd.f32 %v4834, %v6014
    %v6016 = vpop.f32.mrf.mxu0
    %v6017 = vadd.f32 %v4834, %v6016
    %6018 = vdwg.mxu0
    %6019 = vmatpush.bf16.msra.mxu0 %v5657
    %6020 = vmatpush.bf16.msra.mxu0 %v5650
    %6021 = vmatpush.bf16.msra.mxu0 %v5643
    %6022 = vmatpush.bf16.msra.mxu0 %v5636
    %6023 = vmatpush.bf16.msra.mxu0 %v5629
    %6024 = vmatpush.bf16.msra.mxu0 %v5622
    %6025 = vmatpush.bf16.msra.mxu0 %v5615
    %6026 = vmatpush.bf16.msra.mxu0 %v5608
    %6027 = vmatmul.bf16.gmra.mxu0 %v4569
    %v6028 = vpop.f32.mrf.mxu0
    %v6029 = vadd.f32 %v6010, %v6028
    %v6030 = vpop.f32.mrf.mxu0
    %v6031 = vadd.f32 %v6012, %v6030
    %6032 = vmatmul.bf16.gmra.mxu0 %v4573
    %v6033 = vpop.f32.mrf.mxu0
    %v6034 = vadd.f32 %v6015, %v6033
    %v6035 = vpop.f32.mrf.mxu0
    %v6036 = vadd.f32 %v6017, %v6035
    %6037 = vdwg.mxu0
    %6038 = vmatpush.bf16.msra.mxu0 %v5713
    %6039 = vmatpush.bf16.msra.mxu0 %v5706
    %6040 = vmatpush.bf16.msra.mxu0 %v5699
    %6041 = vmatpush.bf16.msra.mxu0 %v5692
    %6042 = vmatpush.bf16.msra.mxu0 %v5685
    %6043 = vmatpush.bf16.msra.mxu0 %v5678
    %6044 = vmatpush.bf16.msra.mxu0 %v5671
    %6045 = vmatpush.bf16.msra.mxu0 %v5664
    %6046 = vmatmul.bf16.gmra.mxu0 %v4570
    %v6047 = vpop.f32.mrf.mxu0
    %v6048 = vadd.f32 %v6029, %v6047
    %v6049 = vpop.f32.mrf.mxu0
    %v6050 = vadd.f32 %v6031, %v6049
    %6051 = vmatmul.bf16.gmra.mxu0 %v4574
    %v6052 = vpop.f32.mrf.mxu0
    %v6053 = vadd.f32 %v6034, %v6052
    %v6054 = vpop.f32.mrf.mxu0
    %v6055 = vadd.f32 %v6036, %v6054
    %6056 = vdwg.mxu0
    %6057 = vmatpush.bf16.msra.mxu0 %v5769
    %6058 = vmatpush.bf16.msra.mxu0 %v5762
    %6059 = vmatpush.bf16.msra.mxu0 %v5755
    %6060 = vmatpush.bf16.msra.mxu0 %v5748
    %6061 = vmatpush.bf16.msra.mxu0 %v5741
    %6062 = vmatpush.bf16.msra.mxu0 %v5734
    %6063 = vmatpush.bf16.msra.mxu0 %v5727
    %6064 = vmatpush.bf16.msra.mxu0 %v5720
    %6065 = vmatmul.bf16.gmra.mxu0 %v4571
    %v6066 = vpop.f32.mrf.mxu0
    %v6067 = vadd.f32 %v6048, %v6066
    %v6068 = vpop.f32.mrf.mxu0
    %v6069 = vadd.f32 %v6050, %v6068
    %6070 = vmatmul.bf16.gmra.mxu0 %v4575
    %v6071 = vpop.f32.mrf.mxu0
    %v6072 = vadd.f32 %v6053, %v6071
    %v6073 = vpop.f32.mrf.mxu0
    %v6074 = vadd.f32 %v6055, %v6073
    %6075 = vdwg.mxu0
    %6076 = vmatpush.bf16.msra.mxu0 %v5602
    %6077 = vmatpush.bf16.msra.mxu0 %v5595
    %6078 = vmatpush.bf16.msra.mxu0 %v5588
    %6079 = vmatpush.bf16.msra.mxu0 %v5581
    %6080 = vmatpush.bf16.msra.mxu0 %v5574
    %6081 = vmatpush.bf16.msra.mxu0 %v5567
    %6082 = vmatpush.bf16.msra.mxu0 %v5560
    %6083 = vmatpush.bf16.msra.mxu0 %v5553
    %6084 = vmatmul.bf16.gmra.mxu0 %v4568
    %v6085 = vpop.f32.mrf.mxu0
    %v6086 = vadd.f32 %v4835, %v6085
    %v6087 = vpop.f32.mrf.mxu0
    %v6088 = vadd.f32 %v4835, %v6087
    %6089 = vmatmul.bf16.gmra.mxu0 %v4572
    %v6090 = vpop.f32.mrf.mxu0
    %v6091 = vadd.f32 %v4835, %v6090
    %v6092 = vpop.f32.mrf.mxu0
    %v6093 = vadd.f32 %v4835, %v6092
    %6094 = vdwg.mxu0
    %6095 = vmatpush.bf16.msra.mxu0 %v5658
    %6096 = vmatpush.bf16.msra.mxu0 %v5651
    %6097 = vmatpush.bf16.msra.mxu0 %v5644
    %6098 = vmatpush.bf16.msra.mxu0 %v5637
    %6099 = vmatpush.bf16.msra.mxu0 %v5630
    %6100 = vmatpush.bf16.msra.mxu0 %v5623
    %6101 = vmatpush.bf16.msra.mxu0 %v5616
    %6102 = vmatpush.bf16.msra.mxu0 %v5609
    %6103 = vmatmul.bf16.gmra.mxu0 %v4569
    %v6104 = vpop.f32.mrf.mxu0
    %v6105 = vadd.f32 %v6086, %v6104
    %v6106 = vpop.f32.mrf.mxu0
    %v6107 = vadd.f32 %v6088, %v6106
    %6108 = vmatmul.bf16.gmra.mxu0 %v4573
    %v6109 = vpop.f32.mrf.mxu0
    %v6110 = vadd.f32 %v6091, %v6109
    %v6111 = vpop.f32.mrf.mxu0
    %v6112 = vadd.f32 %v6093, %v6111
    %6113 = vdwg.mxu0
    %6114 = vmatpush.bf16.msra.mxu0 %v5714
    %6115 = vmatpush.bf16.msra.mxu0 %v5707
    %6116 = vmatpush.bf16.msra.mxu0 %v5700
    %6117 = vmatpush.bf16.msra.mxu0 %v5693
    %6118 = vmatpush.bf16.msra.mxu0 %v5686
    %6119 = vmatpush.bf16.msra.mxu0 %v5679
    %6120 = vmatpush.bf16.msra.mxu0 %v5672
    %6121 = vmatpush.bf16.msra.mxu0 %v5665
    %6122 = vmatmul.bf16.gmra.mxu0 %v4570
    %v6123 = vpop.f32.mrf.mxu0
    %v6124 = vadd.f32 %v6105, %v6123
    %v6125 = vpop.f32.mrf.mxu0
    %v6126 = vadd.f32 %v6107, %v6125
    %6127 = vmatmul.bf16.gmra.mxu0 %v4574
    %v6128 = vpop.f32.mrf.mxu0
    %v6129 = vadd.f32 %v6110, %v6128
    %v6130 = vpop.f32.mrf.mxu0
    %v6131 = vadd.f32 %v6112, %v6130
    %6132 = vdwg.mxu0
    %6133 = vmatpush.bf16.msra.mxu0 %v5770
    %6134 = vmatpush.bf16.msra.mxu0 %v5763
    %6135 = vmatpush.bf16.msra.mxu0 %v5756
    %6136 = vmatpush.bf16.msra.mxu0 %v5749
    %6137 = vmatpush.bf16.msra.mxu0 %v5742
    %6138 = vmatpush.bf16.msra.mxu0 %v5735
    %6139 = vmatpush.bf16.msra.mxu0 %v5728
    %6140 = vmatpush.bf16.msra.mxu0 %v5721
    %6141 = vmatmul.bf16.gmra.mxu0 %v4571
    %v6142 = vpop.f32.mrf.mxu0
    %v6143 = vadd.f32 %v6124, %v6142
    %v6144 = vpop.f32.mrf.mxu0
    %v6145 = vadd.f32 %v6126, %v6144
    %6146 = vmatmul.bf16.gmra.mxu0 %v4575
    %v6147 = vpop.f32.mrf.mxu0
    %v6148 = vadd.f32 %v6129, %v6147
    %v6149 = vpop.f32.mrf.mxu0
    %v6150 = vadd.f32 %v6131, %v6149
    %6151 = vdwg.mxu0
    %6152 = vmatpush.bf16.msra.mxu0 %v5603
    %6153 = vmatpush.bf16.msra.mxu0 %v5596
    %6154 = vmatpush.bf16.msra.mxu0 %v5589
    %6155 = vmatpush.bf16.msra.mxu0 %v5582
    %6156 = vmatpush.bf16.msra.mxu0 %v5575
    %6157 = vmatpush.bf16.msra.mxu0 %v5568
    %6158 = vmatpush.bf16.msra.mxu0 %v5561
    %6159 = vmatpush.bf16.msra.mxu0 %v5554
    %6160 = vmatmul.bf16.gmra.mxu0 %v4568
    %v6161 = vpop.f32.mrf.mxu0
    %v6162 = vadd.f32 %v4836, %v6161
    %v6163 = vpop.f32.mrf.mxu0
    %v6164 = vadd.f32 %v4836, %v6163
    %6165 = vmatmul.bf16.gmra.mxu0 %v4572
    %v6166 = vpop.f32.mrf.mxu0
    %v6167 = vadd.f32 %v4836, %v6166
    %v6168 = vpop.f32.mrf.mxu0
    %v6169 = vadd.f32 %v4836, %v6168
    %6170 = vdwg.mxu0
    %6171 = vmatpush.bf16.msra.mxu0 %v5659
    %6172 = vmatpush.bf16.msra.mxu0 %v5652
    %6173 = vmatpush.bf16.msra.mxu0 %v5645
    %6174 = vmatpush.bf16.msra.mxu0 %v5638
    %6175 = vmatpush.bf16.msra.mxu0 %v5631
    %6176 = vmatpush.bf16.msra.mxu0 %v5624
    %6177 = vmatpush.bf16.msra.mxu0 %v5617
    %6178 = vmatpush.bf16.msra.mxu0 %v5610
    %6179 = vmatmul.bf16.gmra.mxu0 %v4569
    %v6180 = vpop.f32.mrf.mxu0
    %v6181 = vadd.f32 %v6162, %v6180
    %v6182 = vpop.f32.mrf.mxu0
    %v6183 = vadd.f32 %v6164, %v6182
    %6184 = vmatmul.bf16.gmra.mxu0 %v4573
    %v6185 = vpop.f32.mrf.mxu0
    %v6186 = vadd.f32 %v6167, %v6185
    %v6187 = vpop.f32.mrf.mxu0
    %v6188 = vadd.f32 %v6169, %v6187
    %6189 = vdwg.mxu0
    %6190 = vmatpush.bf16.msra.mxu0 %v5715
    %6191 = vmatpush.bf16.msra.mxu0 %v5708
    %6192 = vmatpush.bf16.msra.mxu0 %v5701
    %6193 = vmatpush.bf16.msra.mxu0 %v5694
    %6194 = vmatpush.bf16.msra.mxu0 %v5687
    %6195 = vmatpush.bf16.msra.mxu0 %v5680
    %6196 = vmatpush.bf16.msra.mxu0 %v5673
    %6197 = vmatpush.bf16.msra.mxu0 %v5666
    %6198 = vmatmul.bf16.gmra.mxu0 %v4570
    %v6199 = vpop.f32.mrf.mxu0
    %v6200 = vadd.f32 %v6181, %v6199
    %v6201 = vpop.f32.mrf.mxu0
    %v6202 = vadd.f32 %v6183, %v6201
    %6203 = vmatmul.bf16.gmra.mxu0 %v4574
    %v6204 = vpop.f32.mrf.mxu0
    %v6205 = vadd.f32 %v6186, %v6204
    %v6206 = vpop.f32.mrf.mxu0
    %v6207 = vadd.f32 %v6188, %v6206
    %6208 = vdwg.mxu0
    %6209 = vmatpush.bf16.msra.mxu0 %v5771
    %6210 = vmatpush.bf16.msra.mxu0 %v5764
    %6211 = vmatpush.bf16.msra.mxu0 %v5757
    %6212 = vmatpush.bf16.msra.mxu0 %v5750
    %6213 = vmatpush.bf16.msra.mxu0 %v5743
    %6214 = vmatpush.bf16.msra.mxu0 %v5736
    %6215 = vmatpush.bf16.msra.mxu0 %v5729
    %6216 = vmatpush.bf16.msra.mxu0 %v5722
    %6217 = vmatmul.bf16.gmra.mxu0 %v4571
    %v6218 = vpop.f32.mrf.mxu0
    %v6219 = vadd.f32 %v6200, %v6218
    %v6220 = vpop.f32.mrf.mxu0
    %v6221 = vadd.f32 %v6202, %v6220
    %6222 = vmatmul.bf16.gmra.mxu0 %v4575
    %v6223 = vpop.f32.mrf.mxu0
    %v6224 = vadd.f32 %v6205, %v6223
    %v6225 = vpop.f32.mrf.mxu0
    %v6226 = vadd.f32 %v6207, %v6225
    %6227 = vdwg.mxu0
    %6228 = vmatpush.bf16.msra.mxu0 %v5604
    %6229 = vmatpush.bf16.msra.mxu0 %v5597
    %6230 = vmatpush.bf16.msra.mxu0 %v5590
    %6231 = vmatpush.bf16.msra.mxu0 %v5583
    %6232 = vmatpush.bf16.msra.mxu0 %v5576
    %6233 = vmatpush.bf16.msra.mxu0 %v5569
    %6234 = vmatpush.bf16.msra.mxu0 %v5562
    %6235 = vmatpush.bf16.msra.mxu0 %v5555
    %6236 = vmatmul.bf16.gmra.mxu0 %v4568
    %v6237 = vpop.f32.mrf.mxu0
    %v6238 = vadd.f32 %v4837, %v6237
    %v6239 = vpop.f32.mrf.mxu0
    %v6240 = vadd.f32 %v4837, %v6239
    %6241 = vmatmul.bf16.gmra.mxu0 %v4572
    %v6242 = vpop.f32.mrf.mxu0
    %v6243 = vadd.f32 %v4837, %v6242
    %v6244 = vpop.f32.mrf.mxu0
    %v6245 = vadd.f32 %v4837, %v6244
    %6246 = vdwg.mxu0
    %6247 = vmatpush.bf16.msra.mxu0 %v5660
    %6248 = vmatpush.bf16.msra.mxu0 %v5653
    %6249 = vmatpush.bf16.msra.mxu0 %v5646
    %6250 = vmatpush.bf16.msra.mxu0 %v5639
    %6251 = vmatpush.bf16.msra.mxu0 %v5632
    %6252 = vmatpush.bf16.msra.mxu0 %v5625
    %6253 = vmatpush.bf16.msra.mxu0 %v5618
    %6254 = vmatpush.bf16.msra.mxu0 %v5611
    %6255 = vmatmul.bf16.gmra.mxu0 %v4569
    %v6256 = vpop.f32.mrf.mxu0
    %v6257 = vadd.f32 %v6238, %v6256
    %v6258 = vpop.f32.mrf.mxu0
    %v6259 = vadd.f32 %v6240, %v6258
    %6260 = vmatmul.bf16.gmra.mxu0 %v4573
    %v6261 = vpop.f32.mrf.mxu0
    %v6262 = vadd.f32 %v6243, %v6261
    %v6263 = vpop.f32.mrf.mxu0
    %v6264 = vadd.f32 %v6245, %v6263
    %6265 = vdwg.mxu0
    %6266 = vmatpush.bf16.msra.mxu0 %v5716
    %6267 = vmatpush.bf16.msra.mxu0 %v5709
    %6268 = vmatpush.bf16.msra.mxu0 %v5702
    %6269 = vmatpush.bf16.msra.mxu0 %v5695
    %6270 = vmatpush.bf16.msra.mxu0 %v5688
    %6271 = vmatpush.bf16.msra.mxu0 %v5681
    %6272 = vmatpush.bf16.msra.mxu0 %v5674
    %6273 = vmatpush.bf16.msra.mxu0 %v5667
    %6274 = vmatmul.bf16.gmra.mxu0 %v4570
    %v6275 = vpop.f32.mrf.mxu0
    %v6276 = vadd.f32 %v6257, %v6275
    %v6277 = vpop.f32.mrf.mxu0
    %v6278 = vadd.f32 %v6259, %v6277
    %6279 = vmatmul.bf16.gmra.mxu0 %v4574
    %v6280 = vpop.f32.mrf.mxu0
    %v6281 = vadd.f32 %v6262, %v6280
    %v6282 = vpop.f32.mrf.mxu0
    %v6283 = vadd.f32 %v6264, %v6282
    %6284 = vdwg.mxu0
    %6285 = vmatpush.bf16.msra.mxu0 %v5772
    %6286 = vmatpush.bf16.msra.mxu0 %v5765
    %6287 = vmatpush.bf16.msra.mxu0 %v5758
    %6288 = vmatpush.bf16.msra.mxu0 %v5751
    %6289 = vmatpush.bf16.msra.mxu0 %v5744
    %6290 = vmatpush.bf16.msra.mxu0 %v5737
    %6291 = vmatpush.bf16.msra.mxu0 %v5730
    %6292 = vmatpush.bf16.msra.mxu0 %v5723
    %6293 = vmatmul.bf16.gmra.mxu0 %v4571
    %v6294 = vpop.f32.mrf.mxu0
    %v6295 = vadd.f32 %v6276, %v6294
    %v6296 = vpop.f32.mrf.mxu0
    %v6297 = vadd.f32 %v6278, %v6296
    %6298 = vmatmul.bf16.gmra.mxu0 %v4575
    %v6299 = vpop.f32.mrf.mxu0
    %v6300 = vadd.f32 %v6281, %v6299
    %v6301 = vpop.f32.mrf.mxu0
    %v6302 = vadd.f32 %v6283, %v6301
    %6303 = vdwg.mxu0
    %6304 = vmatpush.bf16.msra.mxu0 %v5605
    %6305 = vmatpush.bf16.msra.mxu0 %v5598
    %6306 = vmatpush.bf16.msra.mxu0 %v5591
    %6307 = vmatpush.bf16.msra.mxu0 %v5584
    %6308 = vmatpush.bf16.msra.mxu0 %v5577
    %6309 = vmatpush.bf16.msra.mxu0 %v5570
    %6310 = vmatpush.bf16.msra.mxu0 %v5563
    %6311 = vmatpush.bf16.msra.mxu0 %v5556
    %6312 = vmatmul.bf16.gmra.mxu0 %v4568
    %v6313 = vpop.f32.mrf.mxu0
    %v6314 = vadd.f32 %v4838, %v6313
    %v6315 = vpop.f32.mrf.mxu0
    %v6316 = vadd.f32 %v4838, %v6315
    %6317 = vmatmul.bf16.gmra.mxu0 %v4572
    %v6318 = vpop.f32.mrf.mxu0
    %v6319 = vadd.f32 %v4838, %v6318
    %v6320 = vpop.f32.mrf.mxu0
    %v6321 = vadd.f32 %v4838, %v6320
    %6322 = vdwg.mxu0
    %6323 = vmatpush.bf16.msra.mxu0 %v5661
    %6324 = vmatpush.bf16.msra.mxu0 %v5654
    %6325 = vmatpush.bf16.msra.mxu0 %v5647
    %6326 = vmatpush.bf16.msra.mxu0 %v5640
    %6327 = vmatpush.bf16.msra.mxu0 %v5633
    %6328 = vmatpush.bf16.msra.mxu0 %v5626
    %6329 = vmatpush.bf16.msra.mxu0 %v5619
    %6330 = vmatpush.bf16.msra.mxu0 %v5612
    %6331 = vmatmul.bf16.gmra.mxu0 %v4569
    %v6332 = vpop.f32.mrf.mxu0
    %v6333 = vadd.f32 %v6314, %v6332
    %v6334 = vpop.f32.mrf.mxu0
    %v6335 = vadd.f32 %v6316, %v6334
    %6336 = vmatmul.bf16.gmra.mxu0 %v4573
    %v6337 = vpop.f32.mrf.mxu0
    %v6338 = vadd.f32 %v6319, %v6337
    %v6339 = vpop.f32.mrf.mxu0
    %v6340 = vadd.f32 %v6321, %v6339
    %6341 = vdwg.mxu0
    %6342 = vmatpush.bf16.msra.mxu0 %v5717
    %6343 = vmatpush.bf16.msra.mxu0 %v5710
    %6344 = vmatpush.bf16.msra.mxu0 %v5703
    %6345 = vmatpush.bf16.msra.mxu0 %v5696
    %6346 = vmatpush.bf16.msra.mxu0 %v5689
    %6347 = vmatpush.bf16.msra.mxu0 %v5682
    %6348 = vmatpush.bf16.msra.mxu0 %v5675
    %6349 = vmatpush.bf16.msra.mxu0 %v5668
    %6350 = vmatmul.bf16.gmra.mxu0 %v4570
    %v6351 = vpop.f32.mrf.mxu0
    %v6352 = vadd.f32 %v6333, %v6351
    %v6353 = vpop.f32.mrf.mxu0
    %v6354 = vadd.f32 %v6335, %v6353
    %6355 = vmatmul.bf16.gmra.mxu0 %v4574
    %v6356 = vpop.f32.mrf.mxu0
    %v6357 = vadd.f32 %v6338, %v6356
    %v6358 = vpop.f32.mrf.mxu0
    %v6359 = vadd.f32 %v6340, %v6358
    %6360 = vdwg.mxu0
    %6361 = vmatpush.bf16.msra.mxu0 %v5773
    %6362 = vmatpush.bf16.msra.mxu0 %v5766
    %6363 = vmatpush.bf16.msra.mxu0 %v5759
    %6364 = vmatpush.bf16.msra.mxu0 %v5752
    %6365 = vmatpush.bf16.msra.mxu0 %v5745
    %6366 = vmatpush.bf16.msra.mxu0 %v5738
    %6367 = vmatpush.bf16.msra.mxu0 %v5731
    %6368 = vmatpush.bf16.msra.mxu0 %v5724
    %6369 = vmatmul.bf16.gmra.mxu0 %v4571
    %v6370 = vpop.f32.mrf.mxu0
    %v6371 = vadd.f32 %v6352, %v6370
    %v6372 = vpop.f32.mrf.mxu0
    %v6373 = vadd.f32 %v6354, %v6372
    %6374 = vmatmul.bf16.gmra.mxu0 %v4575
    %v6375 = vpop.f32.mrf.mxu0
    %v6376 = vadd.f32 %v6357, %v6375
    %v6377 = vpop.f32.mrf.mxu0
    %v6378 = vadd.f32 %v6359, %v6377
    %6379 = vdwg.mxu0
    %6380 = vmatpush.bf16.msra.mxu0 %v5606
    %6381 = vmatpush.bf16.msra.mxu0 %v5599
    %6382 = vmatpush.bf16.msra.mxu0 %v5592
    %6383 = vmatpush.bf16.msra.mxu0 %v5585
    %6384 = vmatpush.bf16.msra.mxu0 %v5578
    %6385 = vmatpush.bf16.msra.mxu0 %v5571
    %6386 = vmatpush.bf16.msra.mxu0 %v5564
    %6387 = vmatpush.bf16.msra.mxu0 %v5557
    %6388 = vmatmul.bf16.gmra.mxu0 %v4568
    %v6389 = vpop.f32.mrf.mxu0
    %v6390 = vadd.f32 %v4839, %v6389
    %v6391 = vpop.f32.mrf.mxu0
    %v6392 = vadd.f32 %v4839, %v6391
    %6393 = vmatmul.bf16.gmra.mxu0 %v4572
    %v6394 = vpop.f32.mrf.mxu0
    %v6395 = vadd.f32 %v4839, %v6394
    %v6396 = vpop.f32.mrf.mxu0
    %v6397 = vadd.f32 %v4839, %v6396
    %6398 = vdwg.mxu0
    %6399 = vmatpush.bf16.msra.mxu0 %v5662
    %6400 = vmatpush.bf16.msra.mxu0 %v5655
    %6401 = vmatpush.bf16.msra.mxu0 %v5648
    %6402 = vmatpush.bf16.msra.mxu0 %v5641
    %6403 = vmatpush.bf16.msra.mxu0 %v5634
    %6404 = vmatpush.bf16.msra.mxu0 %v5627
    %6405 = vmatpush.bf16.msra.mxu0 %v5620
    %6406 = vmatpush.bf16.msra.mxu0 %v5613
    %6407 = vmatmul.bf16.gmra.mxu0 %v4569
    %v6408 = vpop.f32.mrf.mxu0
    %v6409 = vadd.f32 %v6390, %v6408
    %v6410 = vpop.f32.mrf.mxu0
    %v6411 = vadd.f32 %v6392, %v6410
    %6412 = vmatmul.bf16.gmra.mxu0 %v4573
    %v6413 = vpop.f32.mrf.mxu0
    %v6414 = vadd.f32 %v6395, %v6413
    %v6415 = vpop.f32.mrf.mxu0
    %v6416 = vadd.f32 %v6397, %v6415
    %6417 = vdwg.mxu0
    %6418 = vmatpush.bf16.msra.mxu0 %v5718
    %6419 = vmatpush.bf16.msra.mxu0 %v5711
    %6420 = vmatpush.bf16.msra.mxu0 %v5704
    %6421 = vmatpush.bf16.msra.mxu0 %v5697
    %6422 = vmatpush.bf16.msra.mxu0 %v5690
    %6423 = vmatpush.bf16.msra.mxu0 %v5683
    %6424 = vmatpush.bf16.msra.mxu0 %v5676
    %6425 = vmatpush.bf16.msra.mxu0 %v5669
    %6426 = vmatmul.bf16.gmra.mxu0 %v4570
    %v6427 = vpop.f32.mrf.mxu0
    %v6428 = vadd.f32 %v6409, %v6427
    %v6429 = vpop.f32.mrf.mxu0
    %v6430 = vadd.f32 %v6411, %v6429
    %6431 = vmatmul.bf16.gmra.mxu0 %v4574
    %v6432 = vpop.f32.mrf.mxu0
    %v6433 = vadd.f32 %v6414, %v6432
    %v6434 = vpop.f32.mrf.mxu0
    %v6435 = vadd.f32 %v6416, %v6434
    %6436 = vdwg.mxu0
    %6437 = vmatpush.bf16.msra.mxu0 %v5774
    %6438 = vmatpush.bf16.msra.mxu0 %v5767
    %6439 = vmatpush.bf16.msra.mxu0 %v5760
    %6440 = vmatpush.bf16.msra.mxu0 %v5753
    %6441 = vmatpush.bf16.msra.mxu0 %v5746
    %6442 = vmatpush.bf16.msra.mxu0 %v5739
    %6443 = vmatpush.bf16.msra.mxu0 %v5732
    %6444 = vmatpush.bf16.msra.mxu0 %v5725
    %6445 = vmatmul.bf16.gmra.mxu0 %v4571
    %v6446 = vpop.f32.mrf.mxu0
    %v6447 = vadd.f32 %v6428, %v6446
    %v6448 = vpop.f32.mrf.mxu0
    %v6449 = vadd.f32 %v6430, %v6448
    %6450 = vmatmul.bf16.gmra.mxu0 %v4575
    %v6451 = vpop.f32.mrf.mxu0
    %v6452 = vadd.f32 %v6433, %v6451
    %v6453 = vpop.f32.mrf.mxu0
    %v6454 = vadd.f32 %v6435, %v6453
    %6455 = vdwg.mxu0
    %6456 = vmatpush.bf16.msra.mxu0 %v5607
    %6457 = vmatpush.bf16.msra.mxu0 %v5600
    %6458 = vmatpush.bf16.msra.mxu0 %v5593
    %6459 = vmatpush.bf16.msra.mxu0 %v5586
    %6460 = vmatpush.bf16.msra.mxu0 %v5579
    %6461 = vmatpush.bf16.msra.mxu0 %v5572
    %6462 = vmatpush.bf16.msra.mxu0 %v5565
    %6463 = vmatpush.bf16.msra.mxu0 %v5558
    %6464 = vmatmul.bf16.gmra.mxu0 %v4568
    %v6465 = vpop.f32.mrf.mxu0
    %v6466 = vadd.f32 %v4840, %v6465
    %v6467 = vpop.f32.mrf.mxu0
    %v6468 = vadd.f32 %v4840, %v6467
    %6469 = vmatmul.bf16.gmra.mxu0 %v4572
    %v6470 = vpop.f32.mrf.mxu0
    %v6471 = vadd.f32 %v4840, %v6470
    %v6472 = vpop.f32.mrf.mxu0
    %v6473 = vadd.f32 %v4840, %v6472
    %6474 = vdwg.mxu0
    %6475 = vmatpush.bf16.msra.mxu0 %v5663
    %6476 = vmatpush.bf16.msra.mxu0 %v5656
    %6477 = vmatpush.bf16.msra.mxu0 %v5649
    %6478 = vmatpush.bf16.msra.mxu0 %v5642
    %6479 = vmatpush.bf16.msra.mxu0 %v5635
    %6480 = vmatpush.bf16.msra.mxu0 %v5628
    %6481 = vmatpush.bf16.msra.mxu0 %v5621
    %6482 = vmatpush.bf16.msra.mxu0 %v5614
    %6483 = vmatmul.bf16.gmra.mxu0 %v4569
    %v6484 = vpop.f32.mrf.mxu0
    %v6485 = vadd.f32 %v6466, %v6484
    %v6486 = vpop.f32.mrf.mxu0
    %v6487 = vadd.f32 %v6468, %v6486
    %6488 = vmatmul.bf16.gmra.mxu0 %v4573
    %v6489 = vpop.f32.mrf.mxu0
    %v6490 = vadd.f32 %v6471, %v6489
    %v6491 = vpop.f32.mrf.mxu0
    %v6492 = vadd.f32 %v6473, %v6491
    %6493 = vdwg.mxu0
    %6494 = vmatpush.bf16.msra.mxu0 %v5719
    %6495 = vmatpush.bf16.msra.mxu0 %v5712
    %6496 = vmatpush.bf16.msra.mxu0 %v5705
    %6497 = vmatpush.bf16.msra.mxu0 %v5698
    %6498 = vmatpush.bf16.msra.mxu0 %v5691
    %6499 = vmatpush.bf16.msra.mxu0 %v5684
    %6500 = vmatpush.bf16.msra.mxu0 %v5677
    %6501 = vmatpush.bf16.msra.mxu0 %v5670
    %6502 = vmatmul.bf16.gmra.mxu0 %v4570
    %v6503 = vpop.f32.mrf.mxu0
    %v6504 = vadd.f32 %v6485, %v6503
    %v6505 = vpop.f32.mrf.mxu0
    %v6506 = vadd.f32 %v6487, %v6505
    %6507 = vmatmul.bf16.gmra.mxu0 %v4574
    %v6508 = vpop.f32.mrf.mxu0
    %v6509 = vadd.f32 %v6490, %v6508
    %v6510 = vpop.f32.mrf.mxu0
    %v6511 = vadd.f32 %v6492, %v6510
    %6512 = vdwg.mxu0
    %6513 = vmatpush.bf16.msra.mxu0 %v5775
    %6514 = vmatpush.bf16.msra.mxu0 %v5768
    %6515 = vmatpush.bf16.msra.mxu0 %v5761
    %6516 = vmatpush.bf16.msra.mxu0 %v5754
    %6517 = vmatpush.bf16.msra.mxu0 %v5747
    %6518 = vmatpush.bf16.msra.mxu0 %v5740
    %6519 = vmatpush.bf16.msra.mxu0 %v5733
    %6520 = vmatpush.bf16.msra.mxu0 %v5726
    %6521 = vmatmul.bf16.gmra.mxu0 %v4571
    %v6522 = vpop.f32.mrf.mxu0
    %v6523 = vadd.f32 %v6504, %v6522
    %v6524 = vpop.f32.mrf.mxu0
    %v6525 = vadd.f32 %v6506, %v6524
    %6526 = vmatmul.bf16.gmra.mxu0 %v4575
    %v6527 = vpop.f32.mrf.mxu0
    %v6528 = vadd.f32 %v6509, %v6527
    %v6529 = vpop.f32.mrf.mxu0
    %v6530 = vadd.f32 %v6511, %v6529
    %6531 = vdwg.mxu0
    %v6532 = vxor.u32 %v6067, 2147483648
    %v6533 = vxor.u32 %v6143, 2147483648
    %v6534 = vxor.u32 %v6219, 2147483648
    %v6535 = vxor.u32 %v6295, 2147483648
    %v6536 = vxor.u32 %v6371, 2147483648
    %v6537 = vxor.u32 %v6447, 2147483648
    %v6538 = vxor.u32 %v6523, 2147483648
    %v6539 = vxor.u32 %v6069, 2147483648
    %v6540 = vxor.u32 %v6145, 2147483648
    %v6541 = vxor.u32 %v6221, 2147483648
    %v6542 = vxor.u32 %v6297, 2147483648
    %v6543 = vxor.u32 %v6373, 2147483648
    %v6544 = vxor.u32 %v6449, 2147483648
    %v6545 = vxor.u32 %v6525, 2147483648
    %v6546 = vxor.u32 %v6072, 2147483648
    %v6547 = vxor.u32 %v6148, 2147483648
    %v6548 = vxor.u32 %v6224, 2147483648
    %v6549 = vxor.u32 %v6300, 2147483648
    %v6550 = vxor.u32 %v6376, 2147483648
    %v6551 = vxor.u32 %v6452, 2147483648
    %v6552 = vxor.u32 %v6528, 2147483648
    %v6553 = vxor.u32 %v6074, 2147483648
    %v6554 = vxor.u32 %v6150, 2147483648
    %v6555 = vxor.u32 %v6226, 2147483648
    %v6556 = vxor.u32 %v6302, 2147483648
    %v6557 = vxor.u32 %v6378, 2147483648
    %v6558 = vxor.u32 %v6454, 2147483648
    %v6559 = vxor.u32 %v6530, 2147483648
    %v6560 = vmul.f32 %v6532, 1.442695
    %v6561 = vpow.pop %v6560
    %v6562 = vmul.f32 %v6533, 1.442695
    %v6563 = vpow.pop %v6562
    %v6564 = vmul.f32 %v6534, 1.442695
    %v6565 = vpow.pop %v6564
    %v6566 = vmul.f32 %v6535, 1.442695
    %v6567 = vpow.pop %v6566
    %v6568 = vmul.f32 %v6536, 1.442695
    %v6569 = vpow.pop %v6568
    %v6570 = vmul.f32 %v6537, 1.442695
    %v6571 = vpow.pop %v6570
    %v6572 = vmul.f32 %v6538, 1.442695
    %v6573 = vpow.pop %v6572
    %v6574 = vmul.f32 %v6539, 1.442695
    %v6575 = vpow.pop %v6574
    %v6576 = vmul.f32 %v6540, 1.442695
    %v6577 = vpow.pop %v6576
    %v6578 = vmul.f32 %v6541, 1.442695
    %v6579 = vpow.pop %v6578
    %v6580 = vmul.f32 %v6542, 1.442695
    %v6581 = vpow.pop %v6580
    %v6582 = vmul.f32 %v6543, 1.442695
    %v6583 = vpow.pop %v6582
    %v6584 = vmul.f32 %v6544, 1.442695
    %v6585 = vpow.pop %v6584
    %v6586 = vmul.f32 %v6545, 1.442695
    %v6587 = vpow.pop %v6586
    %v6588 = vmul.f32 %v6546, 1.442695
    %v6589 = vpow.pop %v6588
    %v6590 = vmul.f32 %v6547, 1.442695
    %v6591 = vpow.pop %v6590
    %v6592 = vmul.f32 %v6548, 1.442695
    %v6593 = vpow.pop %v6592
    %v6594 = vmul.f32 %v6549, 1.442695
    %v6595 = vpow.pop %v6594
    %v6596 = vmul.f32 %v6550, 1.442695
    %v6597 = vpow.pop %v6596
    %v6598 = vmul.f32 %v6551, 1.442695
    %v6599 = vpow.pop %v6598
    %v6600 = vmul.f32 %v6552, 1.442695
    %v6601 = vpow.pop %v6600
    %v6602 = vmul.f32 %v6553, 1.442695
    %v6603 = vpow.pop %v6602
    %v6604 = vmul.f32 %v6554, 1.442695
    %v6605 = vpow.pop %v6604
    %v6606 = vmul.f32 %v6555, 1.442695
    %v6607 = vpow.pop %v6606
    %v6608 = vmul.f32 %v6556, 1.442695
    %v6609 = vpow.pop %v6608
    %v6610 = vmul.f32 %v6557, 1.442695
    %v6611 = vpow.pop %v6610
    %v6612 = vmul.f32 %v6558, 1.442695
    %v6613 = vpow.pop %v6612
    %v6614 = vmul.f32 %v6559, 1.442695
    %v6615 = vpow.pop %v6614
    %v6616 = vadd.f32 %v6561, 1.0
    %v6617 = vadd.f32 %v6563, 1.0
    %v6618 = vadd.f32 %v6565, 1.0
    %v6619 = vadd.f32 %v6567, 1.0
    %v6620 = vadd.f32 %v6569, 1.0
    %v6621 = vadd.f32 %v6571, 1.0
    %v6622 = vadd.f32 %v6573, 1.0
    %v6623 = vadd.f32 %v6575, 1.0
    %v6624 = vadd.f32 %v6577, 1.0
    %v6625 = vadd.f32 %v6579, 1.0
    %v6626 = vadd.f32 %v6581, 1.0
    %v6627 = vadd.f32 %v6583, 1.0
    %v6628 = vadd.f32 %v6585, 1.0
    %v6629 = vadd.f32 %v6587, 1.0
    %v6630 = vadd.f32 %v6589, 1.0
    %v6631 = vadd.f32 %v6591, 1.0
    %v6632 = vadd.f32 %v6593, 1.0
    %v6633 = vadd.f32 %v6595, 1.0
    %v6634 = vadd.f32 %v6597, 1.0
    %v6635 = vadd.f32 %v6599, 1.0
    %v6636 = vadd.f32 %v6601, 1.0
    %v6637 = vadd.f32 %v6603, 1.0
    %v6638 = vadd.f32 %v6605, 1.0
    %v6639 = vadd.f32 %v6607, 1.0
    %v6640 = vadd.f32 %v6609, 1.0
    %v6641 = vadd.f32 %v6611, 1.0
    %v6642 = vadd.f32 %v6613, 1.0
    %v6643 = vadd.f32 %v6615, 1.0
    %v6644 = vrcp.pop %v6616
    %v6645 = vmul.f32 %v6616, %v6644
    %v6646 = vsub.f32 1.0, %v6645
    %v6647 = vmul.f32 %v6644, %v6646
    %v6648 = vadd.f32 %v6644, %v6647
    %vm6649 = vweird.f32 %v6616
    %vm6650 = vweird.f32 %v6644
    %vm6651 = vmor %vm6649, %vm6650
    %v6652 = vsel %vm6651, %v6644, %v6648
    %v6653 = vand.u32 2147483647, %v6616
    %vm6654 = vcmp.eq.f32.partialorder %v6653, 8.507059e+37
    %v6655 = vand.u32 %v6616, 2147483648
    %v6656 = vor.u32 1.1754944e-38, %v6655
    %v6657 = vsel %vm6654, %v6656, %v6652
    %v6658 = vmul.f32 1.0, %v6657
    %v6659 = vrcp.pop %v6617
    %v6660 = vmul.f32 %v6617, %v6659
    %v6661 = vsub.f32 1.0, %v6660
    %v6662 = vmul.f32 %v6659, %v6661
    %v6663 = vadd.f32 %v6659, %v6662
    %vm6664 = vweird.f32 %v6617
    %vm6665 = vweird.f32 %v6659
    %vm6666 = vmor %vm6664, %vm6665
    %v6667 = vsel %vm6666, %v6659, %v6663
    %v6668 = vand.u32 2147483647, %v6617
    %vm6669 = vcmp.eq.f32.partialorder %v6668, 8.507059e+37
    %v6670 = vand.u32 %v6617, 2147483648
    %v6671 = vor.u32 1.1754944e-38, %v6670
    %v6672 = vsel %vm6669, %v6671, %v6667
    %v6673 = vmul.f32 1.0, %v6672
    %v6674 = vrcp.pop %v6618
    %v6675 = vmul.f32 %v6618, %v6674
    %v6676 = vsub.f32 1.0, %v6675
    %v6677 = vmul.f32 %v6674, %v6676
    %v6678 = vadd.f32 %v6674, %v6677
    %vm6679 = vweird.f32 %v6618
    %vm6680 = vweird.f32 %v6674
    %vm6681 = vmor %vm6679, %vm6680
    %v6682 = vsel %vm6681, %v6674, %v6678
    %v6683 = vand.u32 2147483647, %v6618
    %vm6684 = vcmp.eq.f32.partialorder %v6683, 8.507059e+37
    %v6685 = vand.u32 %v6618, 2147483648
    %v6686 = vor.u32 1.1754944e-38, %v6685
    %v6687 = vsel %vm6684, %v6686, %v6682
    %v6688 = vmul.f32 1.0, %v6687
    %v6689 = vrcp.pop %v6619
    %v6690 = vmul.f32 %v6619, %v6689
    %v6691 = vsub.f32 1.0, %v6690
    %v6692 = vmul.f32 %v6689, %v6691
    %v6693 = vadd.f32 %v6689, %v6692
    %vm6694 = vweird.f32 %v6619
    %vm6695 = vweird.f32 %v6689
    %vm6696 = vmor %vm6694, %vm6695
    %v6697 = vsel %vm6696, %v6689, %v6693
    %v6698 = vand.u32 2147483647, %v6619
    %vm6699 = vcmp.eq.f32.partialorder %v6698, 8.507059e+37
    %v6700 = vand.u32 %v6619, 2147483648
    %v6701 = vor.u32 1.1754944e-38, %v6700
    %v6702 = vsel %vm6699, %v6701, %v6697
    %v6703 = vmul.f32 1.0, %v6702
    %v6704 = vrcp.pop %v6620
    %v6705 = vmul.f32 %v6620, %v6704
    %v6706 = vsub.f32 1.0, %v6705
    %v6707 = vmul.f32 %v6704, %v6706
    %v6708 = vadd.f32 %v6704, %v6707
    %vm6709 = vweird.f32 %v6620
    %vm6710 = vweird.f32 %v6704
    %vm6711 = vmor %vm6709, %vm6710
    %v6712 = vsel %vm6711, %v6704, %v6708
    %v6713 = vand.u32 2147483647, %v6620
    %vm6714 = vcmp.eq.f32.partialorder %v6713, 8.507059e+37
    %v6715 = vand.u32 %v6620, 2147483648
    %v6716 = vor.u32 1.1754944e-38, %v6715
    %v6717 = vsel %vm6714, %v6716, %v6712
    %v6718 = vmul.f32 1.0, %v6717
    %v6719 = vrcp.pop %v6621
    %v6720 = vmul.f32 %v6621, %v6719
    %v6721 = vsub.f32 1.0, %v6720
    %v6722 = vmul.f32 %v6719, %v6721
    %v6723 = vadd.f32 %v6719, %v6722
    %vm6724 = vweird.f32 %v6621
    %vm6725 = vweird.f32 %v6719
    %vm6726 = vmor %vm6724, %vm6725
    %v6727 = vsel %vm6726, %v6719, %v6723
    %v6728 = vand.u32 2147483647, %v6621
    %vm6729 = vcmp.eq.f32.partialorder %v6728, 8.507059e+37
    %v6730 = vand.u32 %v6621, 2147483648
    %v6731 = vor.u32 1.1754944e-38, %v6730
    %v6732 = vsel %vm6729, %v6731, %v6727
    %v6733 = vmul.f32 1.0, %v6732
    %v6734 = vrcp.pop %v6622
    %v6735 = vmul.f32 %v6622, %v6734
    %v6736 = vsub.f32 1.0, %v6735
    %v6737 = vmul.f32 %v6734, %v6736
    %v6738 = vadd.f32 %v6734, %v6737
    %vm6739 = vweird.f32 %v6622
    %vm6740 = vweird.f32 %v6734
    %vm6741 = vmor %vm6739, %vm6740
    %v6742 = vsel %vm6741, %v6734, %v6738
    %v6743 = vand.u32 2147483647, %v6622
    %vm6744 = vcmp.eq.f32.partialorder %v6743, 8.507059e+37
    %v6745 = vand.u32 %v6622, 2147483648
    %v6746 = vor.u32 1.1754944e-38, %v6745
    %v6747 = vsel %vm6744, %v6746, %v6742
    %v6748 = vmul.f32 1.0, %v6747
    %v6749 = vrcp.pop %v6623
    %v6750 = vmul.f32 %v6623, %v6749
    %v6751 = vsub.f32 1.0, %v6750
    %v6752 = vmul.f32 %v6749, %v6751
    %v6753 = vadd.f32 %v6749, %v6752
    %vm6754 = vweird.f32 %v6623
    %vm6755 = vweird.f32 %v6749
    %vm6756 = vmor %vm6754, %vm6755
    %v6757 = vsel %vm6756, %v6749, %v6753
    %v6758 = vand.u32 2147483647, %v6623
    %vm6759 = vcmp.eq.f32.partialorder %v6758, 8.507059e+37
    %v6760 = vand.u32 %v6623, 2147483648
    %v6761 = vor.u32 1.1754944e-38, %v6760
    %v6762 = vsel %vm6759, %v6761, %v6757
    %v6763 = vmul.f32 1.0, %v6762
    %v6764 = vrcp.pop %v6624
    %v6765 = vmul.f32 %v6624, %v6764
    %v6766 = vsub.f32 1.0, %v6765
    %v6767 = vmul.f32 %v6764, %v6766
    %v6768 = vadd.f32 %v6764, %v6767
    %vm6769 = vweird.f32 %v6624
    %vm6770 = vweird.f32 %v6764
    %vm6771 = vmor %vm6769, %vm6770
    %v6772 = vsel %vm6771, %v6764, %v6768
    %v6773 = vand.u32 2147483647, %v6624
    %vm6774 = vcmp.eq.f32.partialorder %v6773, 8.507059e+37
    %v6775 = vand.u32 %v6624, 2147483648
    %v6776 = vor.u32 1.1754944e-38, %v6775
    %v6777 = vsel %vm6774, %v6776, %v6772
    %v6778 = vmul.f32 1.0, %v6777
    %v6779 = vrcp.pop %v6625
    %v6780 = vmul.f32 %v6625, %v6779
    %v6781 = vsub.f32 1.0, %v6780
    %v6782 = vmul.f32 %v6779, %v6781
    %v6783 = vadd.f32 %v6779, %v6782
    %vm6784 = vweird.f32 %v6625
    %vm6785 = vweird.f32 %v6779
    %vm6786 = vmor %vm6784, %vm6785
    %v6787 = vsel %vm6786, %v6779, %v6783
    %v6788 = vand.u32 2147483647, %v6625
    %vm6789 = vcmp.eq.f32.partialorder %v6788, 8.507059e+37
    %v6790 = vand.u32 %v6625, 2147483648
    %v6791 = vor.u32 1.1754944e-38, %v6790
    %v6792 = vsel %vm6789, %v6791, %v6787
    %v6793 = vmul.f32 1.0, %v6792
    %v6794 = vrcp.pop %v6626
    %v6795 = vmul.f32 %v6626, %v6794
    %v6796 = vsub.f32 1.0, %v6795
    %v6797 = vmul.f32 %v6794, %v6796
    %v6798 = vadd.f32 %v6794, %v6797
    %vm6799 = vweird.f32 %v6626
    %vm6800 = vweird.f32 %v6794
    %vm6801 = vmor %vm6799, %vm6800
    %v6802 = vsel %vm6801, %v6794, %v6798
    %v6803 = vand.u32 2147483647, %v6626
    %vm6804 = vcmp.eq.f32.partialorder %v6803, 8.507059e+37
    %v6805 = vand.u32 %v6626, 2147483648
    %v6806 = vor.u32 1.1754944e-38, %v6805
    %v6807 = vsel %vm6804, %v6806, %v6802
    %v6808 = vmul.f32 1.0, %v6807
    %v6809 = vrcp.pop %v6627
    %v6810 = vmul.f32 %v6627, %v6809
    %v6811 = vsub.f32 1.0, %v6810
    %v6812 = vmul.f32 %v6809, %v6811
    %v6813 = vadd.f32 %v6809, %v6812
    %vm6814 = vweird.f32 %v6627
    %vm6815 = vweird.f32 %v6809
    %vm6816 = vmor %vm6814, %vm6815
    %v6817 = vsel %vm6816, %v6809, %v6813
    %v6818 = vand.u32 2147483647, %v6627
    %vm6819 = vcmp.eq.f32.partialorder %v6818, 8.507059e+37
    %v6820 = vand.u32 %v6627, 2147483648
    %v6821 = vor.u32 1.1754944e-38, %v6820
    %v6822 = vsel %vm6819, %v6821, %v6817
    %v6823 = vmul.f32 1.0, %v6822
    %v6824 = vrcp.pop %v6628
    %v6825 = vmul.f32 %v6628, %v6824
    %v6826 = vsub.f32 1.0, %v6825
    %v6827 = vmul.f32 %v6824, %v6826
    %v6828 = vadd.f32 %v6824, %v6827
    %vm6829 = vweird.f32 %v6628
    %vm6830 = vweird.f32 %v6824
    %vm6831 = vmor %vm6829, %vm6830
    %v6832 = vsel %vm6831, %v6824, %v6828
    %v6833 = vand.u32 2147483647, %v6628
    %vm6834 = vcmp.eq.f32.partialorder %v6833, 8.507059e+37
    %v6835 = vand.u32 %v6628, 2147483648
    %v6836 = vor.u32 1.1754944e-38, %v6835
    %v6837 = vsel %vm6834, %v6836, %v6832
    %v6838 = vmul.f32 1.0, %v6837
    %v6839 = vrcp.pop %v6629
    %v6840 = vmul.f32 %v6629, %v6839
    %v6841 = vsub.f32 1.0, %v6840
    %v6842 = vmul.f32 %v6839, %v6841
    %v6843 = vadd.f32 %v6839, %v6842
    %vm6844 = vweird.f32 %v6629
    %vm6845 = vweird.f32 %v6839
    %vm6846 = vmor %vm6844, %vm6845
    %v6847 = vsel %vm6846, %v6839, %v6843
    %v6848 = vand.u32 2147483647, %v6629
    %vm6849 = vcmp.eq.f32.partialorder %v6848, 8.507059e+37
    %v6850 = vand.u32 %v6629, 2147483648
    %v6851 = vor.u32 1.1754944e-38, %v6850
    %v6852 = vsel %vm6849, %v6851, %v6847
    %v6853 = vmul.f32 1.0, %v6852
    %v6854 = vrcp.pop %v6630
    %v6855 = vmul.f32 %v6630, %v6854
    %v6856 = vsub.f32 1.0, %v6855
    %v6857 = vmul.f32 %v6854, %v6856
    %v6858 = vadd.f32 %v6854, %v6857
    %vm6859 = vweird.f32 %v6630
    %vm6860 = vweird.f32 %v6854
    %vm6861 = vmor %vm6859, %vm6860
    %v6862 = vsel %vm6861, %v6854, %v6858
    %v6863 = vand.u32 2147483647, %v6630
    %vm6864 = vcmp.eq.f32.partialorder %v6863, 8.507059e+37
    %v6865 = vand.u32 %v6630, 2147483648
    %v6866 = vor.u32 1.1754944e-38, %v6865
    %v6867 = vsel %vm6864, %v6866, %v6862
    %v6868 = vmul.f32 1.0, %v6867
    %v6869 = vrcp.pop %v6631
    %v6870 = vmul.f32 %v6631, %v6869
    %v6871 = vsub.f32 1.0, %v6870
    %v6872 = vmul.f32 %v6869, %v6871
    %v6873 = vadd.f32 %v6869, %v6872
    %vm6874 = vweird.f32 %v6631
    %vm6875 = vweird.f32 %v6869
    %vm6876 = vmor %vm6874, %vm6875
    %v6877 = vsel %vm6876, %v6869, %v6873
    %v6878 = vand.u32 2147483647, %v6631
    %vm6879 = vcmp.eq.f32.partialorder %v6878, 8.507059e+37
    %v6880 = vand.u32 %v6631, 2147483648
    %v6881 = vor.u32 1.1754944e-38, %v6880
    %v6882 = vsel %vm6879, %v6881, %v6877
    %v6883 = vmul.f32 1.0, %v6882
    %v6884 = vrcp.pop %v6632
    %v6885 = vmul.f32 %v6632, %v6884
    %v6886 = vsub.f32 1.0, %v6885
    %v6887 = vmul.f32 %v6884, %v6886
    %v6888 = vadd.f32 %v6884, %v6887
    %vm6889 = vweird.f32 %v6632
    %vm6890 = vweird.f32 %v6884
    %vm6891 = vmor %vm6889, %vm6890
    %v6892 = vsel %vm6891, %v6884, %v6888
    %v6893 = vand.u32 2147483647, %v6632
    %vm6894 = vcmp.eq.f32.partialorder %v6893, 8.507059e+37
    %v6895 = vand.u32 %v6632, 2147483648
    %v6896 = vor.u32 1.1754944e-38, %v6895
    %v6897 = vsel %vm6894, %v6896, %v6892
    %v6898 = vmul.f32 1.0, %v6897
    %v6899 = vrcp.pop %v6633
    %v6900 = vmul.f32 %v6633, %v6899
    %v6901 = vsub.f32 1.0, %v6900
    %v6902 = vmul.f32 %v6899, %v6901
    %v6903 = vadd.f32 %v6899, %v6902
    %vm6904 = vweird.f32 %v6633
    %vm6905 = vweird.f32 %v6899
    %vm6906 = vmor %vm6904, %vm6905
    %v6907 = vsel %vm6906, %v6899, %v6903
    %v6908 = vand.u32 2147483647, %v6633
    %vm6909 = vcmp.eq.f32.partialorder %v6908, 8.507059e+37
    %v6910 = vand.u32 %v6633, 2147483648
    %v6911 = vor.u32 1.1754944e-38, %v6910
    %v6912 = vsel %vm6909, %v6911, %v6907
    %v6913 = vmul.f32 1.0, %v6912
    %v6914 = vrcp.pop %v6634
    %v6915 = vmul.f32 %v6634, %v6914
    %v6916 = vsub.f32 1.0, %v6915
    %v6917 = vmul.f32 %v6914, %v6916
    %v6918 = vadd.f32 %v6914, %v6917
    %vm6919 = vweird.f32 %v6634
    %vm6920 = vweird.f32 %v6914
    %vm6921 = vmor %vm6919, %vm6920
    %v6922 = vsel %vm6921, %v6914, %v6918
    %v6923 = vand.u32 2147483647, %v6634
    %vm6924 = vcmp.eq.f32.partialorder %v6923, 8.507059e+37
    %v6925 = vand.u32 %v6634, 2147483648
    %v6926 = vor.u32 1.1754944e-38, %v6925
    %v6927 = vsel %vm6924, %v6926, %v6922
    %v6928 = vmul.f32 1.0, %v6927
    %v6929 = vrcp.pop %v6635
    %v6930 = vmul.f32 %v6635, %v6929
    %v6931 = vsub.f32 1.0, %v6930
    %v6932 = vmul.f32 %v6929, %v6931
    %v6933 = vadd.f32 %v6929, %v6932
    %vm6934 = vweird.f32 %v6635
    %vm6935 = vweird.f32 %v6929
    %vm6936 = vmor %vm6934, %vm6935
    %v6937 = vsel %vm6936, %v6929, %v6933
    %v6938 = vand.u32 2147483647, %v6635
    %vm6939 = vcmp.eq.f32.partialorder %v6938, 8.507059e+37
    %v6940 = vand.u32 %v6635, 2147483648
    %v6941 = vor.u32 1.1754944e-38, %v6940
    %v6942 = vsel %vm6939, %v6941, %v6937
    %v6943 = vmul.f32 1.0, %v6942
    %v6944 = vrcp.pop %v6636
    %v6945 = vmul.f32 %v6636, %v6944
    %v6946 = vsub.f32 1.0, %v6945
    %v6947 = vmul.f32 %v6944, %v6946
    %v6948 = vadd.f32 %v6944, %v6947
    %vm6949 = vweird.f32 %v6636
    %vm6950 = vweird.f32 %v6944
    %vm6951 = vmor %vm6949, %vm6950
    %v6952 = vsel %vm6951, %v6944, %v6948
    %v6953 = vand.u32 2147483647, %v6636
    %vm6954 = vcmp.eq.f32.partialorder %v6953, 8.507059e+37
    %v6955 = vand.u32 %v6636, 2147483648
    %v6956 = vor.u32 1.1754944e-38, %v6955
    %v6957 = vsel %vm6954, %v6956, %v6952
    %v6958 = vmul.f32 1.0, %v6957
    %v6959 = vrcp.pop %v6637
    %v6960 = vmul.f32 %v6637, %v6959
    %v6961 = vsub.f32 1.0, %v6960
    %v6962 = vmul.f32 %v6959, %v6961
    %v6963 = vadd.f32 %v6959, %v6962
    %vm6964 = vweird.f32 %v6637
    %vm6965 = vweird.f32 %v6959
    %vm6966 = vmor %vm6964, %vm6965
    %v6967 = vsel %vm6966, %v6959, %v6963
    %v6968 = vand.u32 2147483647, %v6637
    %vm6969 = vcmp.eq.f32.partialorder %v6968, 8.507059e+37
    %v6970 = vand.u32 %v6637, 2147483648
    %v6971 = vor.u32 1.1754944e-38, %v6970
    %v6972 = vsel %vm6969, %v6971, %v6967
    %v6973 = vmul.f32 1.0, %v6972
    %v6974 = vrcp.pop %v6638
    %v6975 = vmul.f32 %v6638, %v6974
    %v6976 = vsub.f32 1.0, %v6975
    %v6977 = vmul.f32 %v6974, %v6976
    %v6978 = vadd.f32 %v6974, %v6977
    %vm6979 = vweird.f32 %v6638
    %vm6980 = vweird.f32 %v6974
    %vm6981 = vmor %vm6979, %vm6980
    %v6982 = vsel %vm6981, %v6974, %v6978
    %v6983 = vand.u32 2147483647, %v6638
    %vm6984 = vcmp.eq.f32.partialorder %v6983, 8.507059e+37
    %v6985 = vand.u32 %v6638, 2147483648
    %v6986 = vor.u32 1.1754944e-38, %v6985
    %v6987 = vsel %vm6984, %v6986, %v6982
    %v6988 = vmul.f32 1.0, %v6987
    %v6989 = vrcp.pop %v6639
    %v6990 = vmul.f32 %v6639, %v6989
    %v6991 = vsub.f32 1.0, %v6990
    %v6992 = vmul.f32 %v6989, %v6991
    %v6993 = vadd.f32 %v6989, %v6992
    %vm6994 = vweird.f32 %v6639
    %vm6995 = vweird.f32 %v6989
    %vm6996 = vmor %vm6994, %vm6995
    %v6997 = vsel %vm6996, %v6989, %v6993
    %v6998 = vand.u32 2147483647, %v6639
    %vm6999 = vcmp.eq.f32.partialorder %v6998, 8.507059e+37
    %v7000 = vand.u32 %v6639, 2147483648
    %v7001 = vor.u32 1.1754944e-38, %v7000
    %v7002 = vsel %vm6999, %v7001, %v6997
    %v7003 = vmul.f32 1.0, %v7002
    %v7004 = vrcp.pop %v6640
    %v7005 = vmul.f32 %v6640, %v7004
    %v7006 = vsub.f32 1.0, %v7005
    %v7007 = vmul.f32 %v7004, %v7006
    %v7008 = vadd.f32 %v7004, %v7007
    %vm7009 = vweird.f32 %v6640
    %vm7010 = vweird.f32 %v7004
    %vm7011 = vmor %vm7009, %vm7010
    %v7012 = vsel %vm7011, %v7004, %v7008
    %v7013 = vand.u32 2147483647, %v6640
    %vm7014 = vcmp.eq.f32.partialorder %v7013, 8.507059e+37
    %v7015 = vand.u32 %v6640, 2147483648
    %v7016 = vor.u32 1.1754944e-38, %v7015
    %v7017 = vsel %vm7014, %v7016, %v7012
    %v7018 = vmul.f32 1.0, %v7017
    %v7019 = vrcp.pop %v6641
    %v7020 = vmul.f32 %v6641, %v7019
    %v7021 = vsub.f32 1.0, %v7020
    %v7022 = vmul.f32 %v7019, %v7021
    %v7023 = vadd.f32 %v7019, %v7022
    %vm7024 = vweird.f32 %v6641
    %vm7025 = vweird.f32 %v7019
    %vm7026 = vmor %vm7024, %vm7025
    %v7027 = vsel %vm7026, %v7019, %v7023
    %v7028 = vand.u32 2147483647, %v6641
    %vm7029 = vcmp.eq.f32.partialorder %v7028, 8.507059e+37
    %v7030 = vand.u32 %v6641, 2147483648
    %v7031 = vor.u32 1.1754944e-38, %v7030
    %v7032 = vsel %vm7029, %v7031, %v7027
    %v7033 = vmul.f32 1.0, %v7032
    %v7034 = vrcp.pop %v6642
    %v7035 = vmul.f32 %v6642, %v7034
    %v7036 = vsub.f32 1.0, %v7035
    %v7037 = vmul.f32 %v7034, %v7036
    %v7038 = vadd.f32 %v7034, %v7037
    %vm7039 = vweird.f32 %v6642
    %vm7040 = vweird.f32 %v7034
    %vm7041 = vmor %vm7039, %vm7040
    %v7042 = vsel %vm7041, %v7034, %v7038
    %v7043 = vand.u32 2147483647, %v6642
    %vm7044 = vcmp.eq.f32.partialorder %v7043, 8.507059e+37
    %v7045 = vand.u32 %v6642, 2147483648
    %v7046 = vor.u32 1.1754944e-38, %v7045
    %v7047 = vsel %vm7044, %v7046, %v7042
    %v7048 = vmul.f32 1.0, %v7047
    %v7049 = vrcp.pop %v6643
    %v7050 = vmul.f32 %v6643, %v7049
    %v7051 = vsub.f32 1.0, %v7050
    %v7052 = vmul.f32 %v7049, %v7051
    %v7053 = vadd.f32 %v7049, %v7052
    %vm7054 = vweird.f32 %v6643
    %vm7055 = vweird.f32 %v7049
    %vm7056 = vmor %vm7054, %vm7055
    %v7057 = vsel %vm7056, %v7049, %v7053
    %v7058 = vand.u32 2147483647, %v6643
    %vm7059 = vcmp.eq.f32.partialorder %v7058, 8.507059e+37
    %v7060 = vand.u32 %v6643, 2147483648
    %v7061 = vor.u32 1.1754944e-38, %v7060
    %v7062 = vsel %vm7059, %v7061, %v7057
    %v7063 = vmul.f32 1.0, %v7062
    %7064 = vst [vmem:[#allocation2] sm:$0xff] %v6658
    %7065 = vst [vmem:[#allocation2 + $0x8] sm:$0xff] %v6673
    %7066 = vst [vmem:[#allocation2 + $0x10] sm:$0xff] %v6688
    %7067 = vst [vmem:[#allocation2 + $0x18] sm:$0xff] %v6703
    %7068 = vst [vmem:[#allocation2 + $0x20] sm:$0xff] %v6718
    %7069 = vst [vmem:[#allocation2 + $0x28] sm:$0xff] %v6733
    %7070 = vst [vmem:[#allocation2 + $0x30] sm:$0xff] %v6748
    %7071 = vst [vmem:[#allocation2 + $0x38] sm:$0xff] %v6763
    %7072 = vst [vmem:[#allocation2 + $0x40] sm:$0xff] %v6778
    %7073 = vst [vmem:[#allocation2 + $0x48] sm:$0xff] %v6793
    %7074 = vst [vmem:[#allocation2 + $0x50] sm:$0xff] %v6808
    %7075 = vst [vmem:[#allocation2 + $0x58] sm:$0xff] %v6823
    %7076 = vst [vmem:[#allocation2 + $0x60] sm:$0xff] %v6838
    %7077 = vst [vmem:[#allocation2 + $0x68] sm:$0xff] %v6853
    %7078 = vst [vmem:[#allocation2 + $0x70] sm:$0xff] %v6868
    %7079 = vst [vmem:[#allocation2 + $0x78] sm:$0xff] %v6883
    %7080 = vst [vmem:[#allocation2 + $0x80] sm:$0xff] %v6898
    %7081 = vst [vmem:[#allocation2 + $0x88] sm:$0xff] %v6913
    %7082 = vst [vmem:[#allocation2 + $0x90] sm:$0xff] %v6928
    %7083 = vst [vmem:[#allocation2 + $0x98] sm:$0xff] %v6943
    %7084 = vst [vmem:[#allocation2 + $0xa0] sm:$0xff] %v6958
    %7085 = vst [vmem:[#allocation2 + $0xa8] sm:$0xff] %v6973
    %7086 = vst [vmem:[#allocation2 + $0xb0] sm:$0xff] %v6988
    %7087 = vst [vmem:[#allocation2 + $0xb8] sm:$0xff] %v7003
    %7088 = vst [vmem:[#allocation2 + $0xc0] sm:$0xff] %v7018
    %7089 = vst [vmem:[#allocation2 + $0xc8] sm:$0xff] %v7033
    %7090 = vst [vmem:[#allocation2 + $0xd0] sm:$0xff] %v7048
    %7091 = vst [vmem:[#allocation2 + $0xd8] sm:$0xff] %v7063
    %7092 = vst [vmem:[#allocation4] sm:$0xff] %v3271
    %7093 = vst [vmem:[#allocation4 + $0x8] sm:$0xff] %v3347
    %7094 = vst [vmem:[#allocation4 + $0x10] sm:$0xff] %v3423
    %7095 = vst [vmem:[#allocation4 + $0x18] sm:$0xff] %v3273
    %7096 = vst [vmem:[#allocation4 + $0x20] sm:$0xff] %v3349
    %7097 = vst [vmem:[#allocation4 + $0x28] sm:$0xff] %v3425
    %7098 = vst [vmem:[#allocation4 + $0x30] sm:$0xff] %v3276
    %7099 = vst [vmem:[#allocation4 + $0x38] sm:$0xff] %v3352
    %7100 = vst [vmem:[#allocation4 + $0x40] sm:$0xff] %v3428
    %7101 = vst [vmem:[#allocation4 + $0x48] sm:$0xff] %v3278
    %7102 = vst [vmem:[#allocation4 + $0x50] sm:$0xff] %v3354
    %7103 = vst [vmem:[#allocation4 + $0x58] sm:$0xff] %v3430
    %7104 = vst [vmem:[#allocation6] sm:$0xff] %v3499
    %7105 = vst [vmem:[#allocation6 + $0x8] sm:$0xff] %v3575
    %7106 = vst [vmem:[#allocation6 + $0x10] sm:$0xff] %v3651
    %7107 = vst [vmem:[#allocation6 + $0x18] sm:$0xff] %v3501
    %7108 = vst [vmem:[#allocation6 + $0x20] sm:$0xff] %v3577
    %7109 = vst [vmem:[#allocation6 + $0x28] sm:$0xff] %v3653
    %7110 = vst [vmem:[#allocation6 + $0x30] sm:$0xff] %v3504
    %7111 = vst [vmem:[#allocation6 + $0x38] sm:$0xff] %v3580
    %7112 = vst [vmem:[#allocation6 + $0x40] sm:$0xff] %v3656
    %7113 = vst [vmem:[#allocation6 + $0x48] sm:$0xff] %v3506
    %7114 = vst [vmem:[#allocation6 + $0x50] sm:$0xff] %v3582
    %7115 = vst [vmem:[#allocation6 + $0x58] sm:$0xff] %v3658
    // Predicated region
    $region42: #{vae_forward.1} parent=1 // pred_check
      _
    $region43: #{vae_forward.1} parent=1 // pred_check_branch
      %7117 = sbr.rel (0) target = $region45
    $region44: #{vae_forward.1} parent=1 // pred_region
      %7119 = vsyncadd [#allocation3], 0
      %s7120 = sshll.u32 [#allocation2], 4
      %s7121 = int_to_ptr.vmem [resolvable:$true] %s7120
      %s7122 = sshll.u32 %s10, 4
      %s7123 = int_to_ptr.hbm [resolvable:$true] %s7122
      %7128 = dma.vmem_to_hbm [thread:$0]  %s7121, 3584, %s7123, [#allocation3], 896, 896, 56
    $region45: #{vae_forward.1} parent=1 // pred_fallthru
      _
    // Predicated region
    $region46: #{vae_forward.1} parent=1 // pred_check
      _
    $region47: #{vae_forward.1} parent=1 // pred_check_branch
      %7130 = sbr.rel (0) target = $region49
    $region48: #{vae_forward.1} parent=1 // pred_region
      %7132 = vsyncadd [#allocation5], 0
      %s7133 = sshll.u32 [#allocation4], 4
      %s7134 = int_to_ptr.vmem [resolvable:$true] %s7133
      %s7135 = sshll.u32 %s11, 4
      %s7136 = int_to_ptr.hbm [resolvable:$true] %s7135
      %7141 = dma.vmem_to_hbm [thread:$0]  %s7134, 1536, %s7136, [#allocation5], 384, 384, 24
    $region49: #{vae_forward.1} parent=1 // pred_fallthru
      _
    // Predicated region
    $region50: #{vae_forward.1} parent=1 // pred_check
      _
    $region51: #{vae_forward.1} parent=1 // pred_check_branch
      %7143 = sbr.rel (0) target = $region53
    $region52: #{vae_forward.1} parent=1 // pred_region
      %7145 = vsyncadd [#allocation5], 0
      %s7146 = sshll.u32 [#allocation6], 4
      %s7147 = int_to_ptr.vmem [resolvable:$true] %s7146
      %s7148 = sshll.u32 %s12, 4
      %s7149 = int_to_ptr.hbm [resolvable:$true] %s7148
      %7154 = dma.vmem_to_hbm [thread:$0]  %s7147, 1536, %s7149, [#allocation5], 384, 384, 24
    $region53: #{vae_forward.1} parent=1 // pred_fallthru
      _
    // Predicated region
    $region54: #{vae_forward.1} parent=1 // pred_check
      _
    $region55: #{vae_forward.1} parent=1 // pred_check_branch
      %7156 = sbr.rel (0) target = $region57
    $region56: #{vae_forward.1} parent=1 // pred_region
      %7158 = dma.done [#allocation3], 3584
    $region57: #{vae_forward.1} parent=1 // pred_fallthru
      _
    // Predicated region
    $region58: #{vae_forward.1} parent=1 // pred_check
      _
    $region59: #{vae_forward.1} parent=1 // pred_check_branch
      %7160 = sbr.rel (0) target = $region61
    $region60: #{vae_forward.1} parent=1 // pred_region
      %7162 = dma.done [#allocation5], 1536
    $region61: #{vae_forward.1} parent=1 // pred_fallthru
      _
    // Predicated region
    $region62: #{vae_forward.1} parent=1 // pred_check
      _
    $region63: #{vae_forward.1} parent=1 // pred_check_branch
      %7164 = sbr.rel (0) target = $region65
    $region64: #{vae_forward.1} parent=1 // pred_region
      %7166 = dma.done [#allocation5], 1536
    $region65: #{vae_forward.1} parent=1 // pred_fallthru
      _
    %7167 = vsyncpa [#allocation3], 1
    %7168 = vsyncpa [#allocation5], 1

</llo_original>
